<compile_context>
chip_gen: v7x
topology: tpu7x:2x2x1
jax: 0.10.0
libtpu: 0.0.40
codegen_flags: <defaults>
</compile_context>

<pallas_src>
import functools

import jax
import jax.numpy as jnp
from jax import lax
from jax.experimental import pallas as pl
from jax.experimental.pallas import tpu as pltpu


_NEG_SLOPE = 0.01   # F.leaky_relu default
_BN_EPS = 1e-5      # nn.BatchNorm1d default
_TILE_ROWS = 128    # destination-row tile


# ----------------------------------------------------------------------------
# shared in-kernel helpers
# ----------------------------------------------------------------------------
def _leaky(x):
    return jnp.where(x >= 0.0, x, _NEG_SLOPE * x)


def _apply_mlp(z, mlp_refs, n_hidden):
    """MLP forward: [Linear -> BatchNorm1d(eval) -> ReLU] * n_hidden -> Linear.

    mlp_refs layout: [w, b, gamma, beta, running_mean, running_var] * n_hidden
                     + [out_w, out_b]      (weights stored as (c_in, c_out))
    BatchNorm is folded to a per-feature scale/shift computed on (1, hidden)
    vectors inside the kernel (2 full-tile VPU ops instead of 4).
    """
    idx = 0
    for _ in range(n_hidden):
        w, b, g, be, mu, var = mlp_refs[idx:idx + 6]
        idx += 6
        scale = g[...] * lax.rsqrt(var[...] + _BN_EPS)      # (1, hidden) — cheap
        shift = be[...] - mu[...] * scale
        z = jnp.dot(z, w[...], preferred_element_type=jnp.float32) + b[...]
        z = jnp.maximum(z * scale + shift, 0.0)
    w, b = mlp_refs[idx], mlp_refs[idx + 1]
    return jnp.dot(z, w[...], preferred_element_type=jnp.float32) + b[...]


# ----------------------------------------------------------------------------
# Kernel A: go-path aggregation + GIN update, fused, tiled over dst rows.
#   out = MLP((1 + eps) * act(h_dst) + A @ act(h_src))
# ----------------------------------------------------------------------------
def _go_update_kernel(n_hidden, src_act, dst_act,
                      adj_ref, hsrc_ref, hdst_ref, eps_ref, *rest):
    o_ref = rest[-1]
    mlp_refs = rest[:-1]

    hsrc = hsrc_ref[...]
    if src_act == "leaky":           # fused inter-layer leaky_relu
        hsrc = _leaky(hsrc)
    hdst = hdst_ref[...]
    if dst_act == "leaky":
        hdst = _leaky(hdst)

    agg = jnp.dot(adj_ref[...], hsrc, preferred_element_type=jnp.float32)
    z = (1.0 + eps_ref[0, 0]) * hdst + agg
    o_ref[...] = _apply_mlp(z, mlp_refs, n_hidden)


# ----------------------------------------------------------------------------
# Kernel B: return-path aggregation (multi_update_all 'sum') + project + Return
#           MLP, fused, tiled over target rows.
#   out = MLP_R((1 + eps_R) * (act(h_tgt) @ Wp + bp) + sum_e A_e @ h_src_e)
# ----------------------------------------------------------------------------
def _return_update_kernel(n_return, n_hidden, tgt_act, src_acts, *refs):
    o_ref = refs[-1]
    pos = 0
    agg = None
    for e in range(n_return):
        a_ref, h_ref = refs[pos], refs[pos + 1]
        pos += 2
        h = h_ref[...]
        if src_acts[e] == "leaky":
            h = _leaky(h)
        part = jnp.dot(a_ref[...], h, preferred_element_type=jnp.float32)
        agg = part if agg is None else agg + part

    htgt_ref, wp_ref, bp_ref, eps_ref = refs[pos:pos + 4]
    pos += 4
    mlp_refs = refs[pos:-1]

    ht = htgt_ref[...]
    if tgt_act == "leaky":
        ht = _leaky(ht)
    hp = jnp.dot(ht, wp_ref[...], preferred_element_type=jnp.float32) + bp_ref[...]
    z = (1.0 + eps_ref[0, 0]) * hp + agg
    o_ref[...] = _apply_mlp(z, mlp_refs, n_hidden)


# ----------------------------------------------------------------------------
# Kernel C: plain linear (the final `predict`), tiled over rows.
# ----------------------------------------------------------------------------
def _linear_kernel(in_act, x_ref, w_ref, b_ref, o_ref):
    x = x_ref[...]
    if in_act == "leaky":
        x = _leaky(x)
    o_ref[...] = jnp.dot(x, w_ref[...], preferred_element_type=jnp.float32) + b_ref[...]


# ----------------------------------------------------------------------------
# pallas_call wrappers
# ----------------------------------------------------------------------------
def _row_tile(n_rows):
    # full array if small (block == full dim is always legal), else 128 (8-aligned)
    return n_rows if n_rows < _TILE_ROWS else _TILE_ROWS


def _row_spec(tq, ncols):
    return pl.BlockSpec((tq, ncols), lambda i: (i, 0))


def _full_spec(shape):
    # constant block index -> DMA'd once, stays VMEM-resident across the grid
    return pl.BlockSpec(shape, lambda i, _n=len(shape): (0,) * _n)


def _smem_spec():
    return pl.BlockSpec(memory_space=pltpu.MemorySpace.SMEM)


def _cparams():
    return pltpu.CompilerParams(
        dimension_semantics=("parallel",),       # row tiles independent -> split across TCs
        vmem_limit_bytes=64 * 1024 * 1024,       # explicit, fits v7x's 64 MiB VMEM
    )


def _flatten_mlp(mlp):
    arrays = []
    for layer in mlp["hidden"]:
        arrays += [layer["w"], layer["b"], layer["gamma"], layer["beta"],
                   layer["mean"], layer["var"]]
    arrays += [mlp["out_w"], mlp["out_b"]]
    return arrays


def gin_go_update(adj, h_src, h_dst, eps, mlp, *, src_act=None, dst_act=None):
    n_dst, n_src = adj.shape
    c_out = mlp["out_w"].shape[1]
    tq = _row_tile(n_dst)
    mlp_arrays = _flatten_mlp(mlp)
    kernel = functools.partial(_go_update_kernel, len(mlp["hidden"]), src_act, dst_act)
    in_specs = [
        _row_spec(tq, n_src),                 # adjacency row slab (streamed / pipelined)
        _full_spec(h_src.shape),              # source features: resident
        _row_spec(tq, h_dst.shape[1]),        # destination features row slab
        _smem_spec(),                         # eps scalar
    ] + [_full_spec(a.shape) for a in mlp_arrays]
    return pl.pallas_call(
        kernel,
        out_shape=jax.ShapeDtypeStruct((n_dst, c_out), jnp.float32),
        grid=(pl.cdiv(n_dst, tq),),
        in_specs=in_specs,
        out_specs=_row_spec(tq, c_out),
        compiler_params=_cparams(),
    )(adj, h_src, h_dst, eps, *mlp_arrays)


def gin_return_update(ret_pairs, h_tgt, project_w, project_b, eps, mlp, *,
                      tgt_act=None, src_acts=None):
    assert len(ret_pairs) >= 1
    n_dst = h_tgt.shape[0]
    c_out = mlp["out_w"].shape[1]
    tq = _row_tile(n_dst)
    if src_acts is None:
        src_acts = tuple(None for _ in ret_pairs)
    mlp_arrays = _flatten_mlp(mlp)
    kernel = functools.partial(_return_update_kernel, len(ret_pairs),
                               len(mlp["hidden"]), tgt_act, tuple(src_acts))
    args, in_specs = [], []
    for adj_e, h_src_e in ret_pairs:
        args += [adj_e, h_src_e]
        in_specs += [_row_spec(tq, adj_e.shape[1]), _full_spec(h_src_e.shape)]
    args += [h_tgt, project_w, project_b, eps] + mlp_arrays
    in_specs += [_row_spec(tq, h_tgt.shape[1]),
                 _full_spec(project_w.shape),
                 _full_spec(project_b.shape),
                 _smem_spec()]
    in_specs += [_full_spec(a.shape) for a in mlp_arrays]
    return pl.pallas_call(
        kernel,
        out_shape=jax.ShapeDtypeStruct((n_dst, c_out), jnp.float32),
        grid=(pl.cdiv(n_dst, tq),),
        in_specs=in_specs,
        out_specs=_row_spec(tq, c_out),
        compiler_params=_cparams(),
    )(*args)


def linear(x, w, b, *, in_act=None):
    n, c_in = x.shape
    c_out = w.shape[1]
    tq = _row_tile(n)
    return pl.pallas_call(
        functools.partial(_linear_kernel, in_act),
        out_shape=jax.ShapeDtypeStruct((n, c_out), jnp.float32),
        grid=(pl.cdiv(n, tq),),
        in_specs=[_row_spec(tq, c_in), _full_spec(w.shape), _full_spec(b.shape)],
        out_specs=_row_spec(tq, c_out),
        compiler_params=_cparams(),
    )(x, w, b)


# ----------------------------------------------------------------------------
# HGINLayer / HGIN forward (eval mode)
# ----------------------------------------------------------------------------
def hgin_layer_forward(lp, adjs, feats, meta, stale_act):
    """One HGINLayer. `stale_act` is the pending leaky_relu from the previous
    layer, fused into the kernels that consume features which were NOT refreshed
    inside this layer yet."""
    target = meta["target"]
    h = dict(feats)
    fresh = set()
    # go paths (sequential, matching the DGL loop order)
    for (src, etype, dst) in meta["go_paths"]:
        h[dst] = gin_go_update(
            adjs[etype], h[src], h[dst], lp["eps"][etype], lp["mlp"][etype],
            src_act=None if src in fresh else stale_act,
            dst_act=None if dst in fresh else stale_act)
        fresh.add(dst)
    # return paths -> multi_update_all('sum') + project + Return MLP, fused
    ret_pairs, src_acts = [], []
    for (src, etype, dst) in meta["return_paths"]:
        ret_pairs.append((adjs[etype], h[src]))
        src_acts.append(None if src in fresh else stale_act)
    h[target] = gin_return_update(
        ret_pairs, h[target], lp["project_w"], lp["project_b"],
        lp["eps"]["Return"], lp["mlp"]["Return"],
        tgt_act=None if target in fresh else stale_act,
        src_acts=tuple(src_acts))
    return h


def hgin_forward(params, adjs, target_node_emb, meta):
    target = meta["target"]
    h = dict(params["embed"])
    h[target] = target_node_emb
    stale_act = None                      # layer-0 inputs (eval dropout = identity)
    for lp in params["layers"]:
        h = hgin_layer_forward(lp, adjs, h, meta, stale_act)
        stale_act = "leaky"               # leaky_relu after every layer, fused forward
    # predict(leaky_relu(h_target))
    return linear(h[target], params["predict_w"], params["predict_b"], in_act="leaky")


# ----------------------------------------------------------------------------
# Parameter init (mirrors the module's structure; weights stored (c_in, c_out))
# ----------------------------------------------------------------------------
def _xavier(key, shape):
    a = (6.0 / (shape[0] + shape[1])) ** 0.5
    return jax.random.uniform(key, shape, jnp.float32, -a, a)


def init_mlp(key, num_mlp_layers, in_size, hidden_size, out_size):
    ks = jax.random.split(key, num_mlp_layers + 1)
    if num_mlp_layers == 1:
        return {"hidden": [],
                "out_w": _xavier(ks[0], (in_size, out_size)),
                "out_b": jnp.zeros((1, out_size), jnp.float32)}
    dims = [in_size] + [hidden_size] * (num_mlp_layers - 1)
    hidden = []
    for l in range(num_mlp_layers - 1):
        hidden.append(dict(
            w=_xavier(ks[l], (dims[l], dims[l + 1])),
            b=jnp.zeros((1, dims[l + 1]), jnp.float32),
            gamma=jnp.ones((1, dims[l + 1]), jnp.float32),
            beta=jnp.zeros((1, dims[l + 1]), jnp.float32),
            mean=jnp.zeros((1, dims[l + 1]), jnp.float32),
            var=jnp.ones((1, dims[l + 1]), jnp.float32)))
    return {"hidden": hidden,
            "out_w": _xavier(ks[-1], (dims[-1], out_size)),
            "out_b": jnp.zeros((1, out_size), jnp.float32)}


def init_hgin_layer(key, go_etypes, in_size, out_size, num_mlp_layers):
    n = len(go_etypes)
    ks = jax.random.split(key, n + 2)
    mlps = {e: init_mlp(ks[i], num_mlp_layers, in_size, out_size, out_size)
            for i, e in enumerate(go_etypes)}
    mlps["Return"] = init_mlp(ks[n], num_mlp_layers, out_size, out_size, out_size)
    eps = {e: jnp.zeros((1, 1), jnp.float32) for e in go_etypes}
    eps["Return"] = jnp.zeros((1, 1), jnp.float32)
    return dict(mlp=mlps, eps=eps,
                project_w=_xavier(ks[n + 1], (in_size, out_size)),
                project_b=jnp.zeros((1, out_size), jnp.float32))


def init_hgin(key, meta, node_counts, in_size, hidden_size, out_size,
              num_layers, num_mlp_layers):
    go_etypes = [e for (_, e, _) in meta["go_paths"]]
    ks = jax.random.split(key, num_layers + len(node_counts) + 1)
    layers = [init_hgin_layer(ks[0], go_etypes, in_size, hidden_size, num_mlp_layers)]
    for l in range(1, num_layers):
        layers.append(init_hgin_layer(ks[l], go_etypes, hidden_size, hidden_size,
                                      num_mlp_layers))
    embed, i = {}, num_layers
    for ntype, n in node_counts.items():
        if ntype == meta["target"]:
            continue
        embed[ntype] = _xavier(ks[i], (n, in_size))
        i += 1
    return dict(layers=layers, embed=embed,
                predict_w=_xavier(ks[-1], (hidden_size, out_size)),
                predict_b=jnp.zeros((1, out_size), jnp.float32))


# ----------------------------------------------------------------------------
# pure-JAX reference (same eval-mode semantics) for a correctness check
# ----------------------------------------------------------------------------
def _ref_mlp(x, mlp):
    for layer in mlp["hidden"]:
        x = x @ layer["w"] + layer["b"]
        x = (x - layer["mean"]) / jnp.sqrt(layer["var"] + _BN_EPS) * layer["gamma"] \
            + layer["beta"]
        x = jnp.maximum(x, 0.0)
    return x @ mlp["out_w"] + mlp["out_b"]


def _ref_forward(params, adjs, target_emb, meta):
    lrelu = lambda x: jnp.where(x >= 0.0, x, _NEG_SLOPE * x)
    target = meta["target"]
    h = dict(params["embed"])
    h[target] = target_emb
    for lp in params["layers"]:
        for (src, etype, dst) in meta["go_paths"]:
            a = adjs[etype] @ h[src]
            h[dst] = _ref_mlp((1.0 + lp["eps"][etype][0, 0]) * h[dst] + a,
                              lp["mlp"][etype])
        agg = 0.0
        for (src, etype, dst) in meta["return_paths"]:
            agg = agg + adjs[etype] @ h[src]
        hp = h[target] @ lp["project_w"] + lp["project_b"]
        h[target] = _ref_mlp((1.0 + lp["eps"]["Return"][0, 0]) * hp + agg,
                             lp["mlp"]["Return"])
        h = {k: lrelu(v) for k, v in h.items()}
    return h[target] @ params["predict_w"] + params["predict_b"]


# ----------------------------------------------------------------------------
if __name__ == "__main__":
    key = jax.random.PRNGKey(0)

    # heterogeneous graph: target 'spot' + two intermediate node types,
    # paths = [('s2a','a2s'), ('s2b','b2s')]  (go, return) per path
    meta = dict(
        target="spot",
        go_paths=[("spot", "s2a", "typeA"), ("spot", "s2b", "typeB")],
        return_paths=[("typeA", "a2s", "spot"), ("typeB", "b2s", "spot")],
    )
    n_spot, n_a, n_b = 24, 16, 16
    in_size, hidden_size, out_size = 32, 32, 8
    num_layers, num_mlp_layers = 2, 2

    ks = jax.random.split(key, 8)
    params = init_hgin(ks[0], meta,
                       {"spot": n_spot, "typeA": n_a, "typeB": n_b},
                       in_size, hidden_size, out_size, num_layers, num_mlp_layers)

    def rand_adj(k, n_dst, n_src, p=0.4):
        return (jax.random.uniform(k, (n_dst, n_src)) < p).astype(jnp.float32)

    adjs = {
        "s2a": rand_adj(ks[1], n_a, n_spot),
        "s2b": rand_adj(ks[2], n_b, n_spot),
        "a2s": rand_adj(ks[3], n_spot, n_a),
        "b2s": rand_adj(ks[4], n_spot, n_b),
    }
    target_emb = jax.random.normal(ks[5], (n_spot, in_size), jnp.float32)

    # jit the whole forward (meta closed over statically) so the per-update
    # pallas_calls run back-to-back without host dispatch gaps.
    fwd = jax.jit(functools.partial(hgin_forward, meta=meta))
    out = fwd(params, adjs, target_emb)
    jax.block_until_ready(out)

    ref = _ref_forward(params, adjs, target_emb, meta)
    assert out.shape == (n_spot, out_size)
    assert bool(jnp.all(jnp.isfinite(out)))
    max_err = float(jnp.max(jnp.abs(out - ref)))
    tol = 5e-2 * max(1.0, float(jnp.max(jnp.abs(ref))))
    assert max_err < tol, (max_err, tol)
    print("KERNEL_OK")
</pallas_src>

<mosaic_0001>
module attributes {stable_mosaic.version = 11 : i64} {
  func.func @_go_update_kernel(%arg0: i32, %arg1: memref<16x24xf32, #tpu.memory_space<vmem>>, %arg2: memref<24x32xf32, #tpu.memory_space<vmem>>, %arg3: memref<16x32xf32, #tpu.memory_space<vmem>>, %arg4: memref<1x1xf32, #tpu.memory_space<smem>>, %arg5: memref<32x32xf32, #tpu.memory_space<vmem>>, %arg6: memref<1x32xf32, #tpu.memory_space<vmem>>, %arg7: memref<1x32xf32, #tpu.memory_space<vmem>>, %arg8: memref<1x32xf32, #tpu.memory_space<vmem>>, %arg9: memref<1x32xf32, #tpu.memory_space<vmem>>, %arg10: memref<1x32xf32, #tpu.memory_space<vmem>>, %arg11: memref<32x32xf32, #tpu.memory_space<vmem>>, %arg12: memref<1x32xf32, #tpu.memory_space<vmem>>, %arg13: memref<16x32xf32, #tpu.memory_space<vmem>>) attributes {dimension_semantics = [#tpu.dimension_semantics<parallel>], iteration_bounds = array<i64: 1>, scalar_prefetch = 0 : i64, scratch_operands = 0 : i64, tpu.core_type = #tpu.core_type<tc>, window_params = [{transform_indices = @transform_0, window_bounds = array<i64: 16, 24>}, {pipeline_mode = #tpu.pipeline_mode<synchronous>, transform_indices = @transform_1, window_bounds = array<i64: 24, 32>}, {transform_indices = @transform_2, window_bounds = array<i64: 16, 32>}, {transform_indices = @transform_3, window_bounds = array<i64: 1, 1>}, {pipeline_mode = #tpu.pipeline_mode<synchronous>, transform_indices = @transform_4, window_bounds = array<i64: 32, 32>}, {pipeline_mode = #tpu.pipeline_mode<synchronous>, transform_indices = @transform_5, window_bounds = array<i64: 1, 32>}, {pipeline_mode = #tpu.pipeline_mode<synchronous>, transform_indices = @transform_6, window_bounds = array<i64: 1, 32>}, {pipeline_mode = #tpu.pipeline_mode<synchronous>, transform_indices = @transform_7, window_bounds = array<i64: 1, 32>}, {pipeline_mode = #tpu.pipeline_mode<synchronous>, transform_indices = @transform_8, window_bounds = array<i64: 1, 32>}, {pipeline_mode = #tpu.pipeline_mode<synchronous>, transform_indices = @transform_9, window_bounds = array<i64: 1, 32>}, {pipeline_mode = #tpu.pipeline_mode<synchronous>, transform_indices = @transform_10, window_bounds = array<i64: 32, 32>}, {pipeline_mode = #tpu.pipeline_mode<synchronous>, transform_indices = @transform_11, window_bounds = array<i64: 1, 32>}, {transform_indices = @transform_12, window_bounds = array<i64: 16, 32>}]} {
    %c0 = arith.constant 0 : index
    %c0_0 = arith.constant 0 : index
    %0 = vector.load %arg2[%c0, %c0_0] : memref<24x32xf32, #tpu.memory_space<vmem>>, vector<24x32xf32>
    %c0_1 = arith.constant 0 : index
    %c0_2 = arith.constant 0 : index
    %1 = vector.load %arg3[%c0_1, %c0_2] : memref<16x32xf32, #tpu.memory_space<vmem>>, vector<16x32xf32>
    %c0_3 = arith.constant 0 : index
    %c0_4 = arith.constant 0 : index
    %2 = vector.load %arg1[%c0_3, %c0_4] : memref<16x24xf32, #tpu.memory_space<vmem>>, vector<16x24xf32>
    %cst = arith.constant dense<0.000000e+00> : vector<16x32xf32>
    %3 = tpu.matmul %2, %0, %cst {dimension_numbers = #tpu.dot_dimension_numbers<[1], [0], [0], [1], [0, 0, 1, 1], [], []>} : vector<16x24xf32>, vector<24x32xf32>, vector<16x32xf32> -> vector<16x32xf32>
    %c0_5 = arith.constant 0 : index
    %c0_6 = arith.constant 0 : index
    %4 = memref.load %arg4[%c0_5, %c0_6] : memref<1x1xf32, #tpu.memory_space<smem>>
    %cst_7 = arith.constant 1.000000e+00 : f32
    %5 = arith.addf %cst_7, %4 : f32
    %6 = vector.broadcast %5 : f32 to vector<16x32xf32>
    %7 = arith.mulf %6, %1 : vector<16x32xf32>
    %8 = arith.addf %7, %3 : vector<16x32xf32>
    %c0_8 = arith.constant 0 : index
    %c0_9 = arith.constant 0 : index
    %9 = vector.load %arg7[%c0_8, %c0_9] : memref<1x32xf32, #tpu.memory_space<vmem>>, vector<1x32xf32>
    %c0_10 = arith.constant 0 : index
    %c0_11 = arith.constant 0 : index
    %10 = vector.load %arg10[%c0_10, %c0_11] : memref<1x32xf32, #tpu.memory_space<vmem>>, vector<1x32xf32>
    %cst_12 = arith.constant 9.99999974E-6 : f32
    %11 = vector.broadcast %cst_12 : f32 to vector<1x32xf32>
    %12 = arith.addf %10, %11 : vector<1x32xf32>
    %13 = math.rsqrt %12 : vector<1x32xf32>
    %14 = arith.mulf %9, %13 : vector<1x32xf32>
    %c0_13 = arith.constant 0 : index
    %c0_14 = arith.constant 0 : index
    %15 = vector.load %arg8[%c0_13, %c0_14] : memref<1x32xf32, #tpu.memory_space<vmem>>, vector<1x32xf32>
    %c0_15 = arith.constant 0 : index
    %c0_16 = arith.constant 0 : index
    %16 = vector.load %arg9[%c0_15, %c0_16] : memref<1x32xf32, #tpu.memory_space<vmem>>, vector<1x32xf32>
    %17 = arith.mulf %16, %14 : vector<1x32xf32>
    %18 = arith.subf %15, %17 : vector<1x32xf32>
    %c0_17 = arith.constant 0 : index
    %c0_18 = arith.constant 0 : index
    %19 = vector.load %arg5[%c0_17, %c0_18] : memref<32x32xf32, #tpu.memory_space<vmem>>, vector<32x32xf32>
    %cst_19 = arith.constant dense<0.000000e+00> : vector<16x32xf32>
    %20 = tpu.matmul %8, %19, %cst_19 {dimension_numbers = #tpu.dot_dimension_numbers<[1], [0], [0], [1], [0, 0, 1, 1], [], []>} : vector<16x32xf32>, vector<32x32xf32>, vector<16x32xf32> -> vector<16x32xf32>
    %c0_20 = arith.constant 0 : index
    %c0_21 = arith.constant 0 : index
    %21 = vector.load %arg6[%c0_20, %c0_21] : memref<1x32xf32, #tpu.memory_space<vmem>>, vector<1x32xf32>
    %22 = vector.broadcast %21 : vector<1x32xf32> to vector<16x32xf32>
    %23 = arith.addf %20, %22 : vector<16x32xf32>
    %24 = vector.broadcast %14 : vector<1x32xf32> to vector<16x32xf32>
    %25 = arith.mulf %23, %24 : vector<16x32xf32>
    %26 = vector.broadcast %18 : vector<1x32xf32> to vector<16x32xf32>
    %27 = arith.addf %25, %26 : vector<16x32xf32>
    %cst_22 = arith.constant 0.000000e+00 : f32
    %28 = vector.broadcast %cst_22 : f32 to vector<16x32xf32>
    %29 = arith.maximumf %27, %28 : vector<16x32xf32>
    %c0_23 = arith.constant 0 : index
    %c0_24 = arith.constant 0 : index
    %30 = vector.load %arg11[%c0_23, %c0_24] : memref<32x32xf32, #tpu.memory_space<vmem>>, vector<32x32xf32>
    %cst_25 = arith.constant dense<0.000000e+00> : vector<16x32xf32>
    %31 = tpu.matmul %29, %30, %cst_25 {dimension_numbers = #tpu.dot_dimension_numbers<[1], [0], [0], [1], [0, 0, 1, 1], [], []>} : vector<16x32xf32>, vector<32x32xf32>, vector<16x32xf32> -> vector<16x32xf32>
    %c0_26 = arith.constant 0 : index
    %c0_27 = arith.constant 0 : index
    %32 = vector.load %arg12[%c0_26, %c0_27] : memref<1x32xf32, #tpu.memory_space<vmem>>, vector<1x32xf32>
    %33 = vector.broadcast %32 : vector<1x32xf32> to vector<16x32xf32>
    %34 = arith.addf %31, %33 : vector<16x32xf32>
    %c0_28 = arith.constant 0 : index
    %c0_29 = arith.constant 0 : index
    %35 = vector.load %arg13[%c0_28, %c0_29] : memref<16x32xf32, #tpu.memory_space<vmem>>, vector<16x32xf32>
    tpu.vector_store %arg13[%c0_28, %c0_29], %34 {strides = array<i32>} : memref<16x32xf32, #tpu.memory_space<vmem>>, vector<16x32xf32>,
    return
  }
  func.func @transform_0(%arg0: i32) -> (i32, i32) {
    %c0_i32 = arith.constant 0 : i32
    %c0_i32_0 = arith.constant 0 : i32
    return %arg0, %c0_i32 : i32, i32
  }
  func.func @transform_1(%arg0: i32) -> (i32, i32) {
    %c0_i32 = arith.constant 0 : i32
    %c0_i32_0 = arith.constant 0 : i32
    %c0_i32_1 = arith.constant 0 : i32
    return %c0_i32, %c0_i32_0 : i32, i32
  }
  func.func @transform_2(%arg0: i32) -> (i32, i32) {
    %c0_i32 = arith.constant 0 : i32
    %c0_i32_0 = arith.constant 0 : i32
    return %arg0, %c0_i32 : i32, i32
  }
  func.func @transform_3(%arg0: i32) -> (i32, i32) {
    %c0_i32 = arith.constant 0 : i32
    %c0_i32_0 = arith.constant 0 : i32
    %c0_i32_1 = arith.constant 0 : i32
    return %c0_i32, %c0_i32_0 : i32, i32
  }
  func.func @transform_4(%arg0: i32) -> (i32, i32) {
    %c0_i32 = arith.constant 0 : i32
    %c0_i32_0 = arith.constant 0 : i32
    %c0_i32_1 = arith.constant 0 : i32
    return %c0_i32, %c0_i32_0 : i32, i32
  }
  func.func @transform_5(%arg0: i32) -> (i32, i32) {
    %c0_i32 = arith.constant 0 : i32
    %c0_i32_0 = arith.constant 0 : i32
    %c0_i32_1 = arith.constant 0 : i32
    return %c0_i32, %c0_i32_0 : i32, i32
  }
  func.func @transform_6(%arg0: i32) -> (i32, i32) {
    %c0_i32 = arith.constant 0 : i32
    %c0_i32_0 = arith.constant 0 : i32
    %c0_i32_1 = arith.constant 0 : i32
    return %c0_i32, %c0_i32_0 : i32, i32
  }
  func.func @transform_7(%arg0: i32) -> (i32, i32) {
    %c0_i32 = arith.constant 0 : i32
    %c0_i32_0 = arith.constant 0 : i32
    %c0_i32_1 = arith.constant 0 : i32
    return %c0_i32, %c0_i32_0 : i32, i32
  }
  func.func @transform_8(%arg0: i32) -> (i32, i32) {
    %c0_i32 = arith.constant 0 : i32
    %c0_i32_0 = arith.constant 0 : i32
    %c0_i32_1 = arith.constant 0 : i32
    return %c0_i32, %c0_i32_0 : i32, i32
  }
  func.func @transform_9(%arg0: i32) -> (i32, i32) {
    %c0_i32 = arith.constant 0 : i32
    %c0_i32_0 = arith.constant 0 : i32
    %c0_i32_1 = arith.constant 0 : i32
    return %c0_i32, %c0_i32_0 : i32, i32
  }
  func.func @transform_10(%arg0: i32) -> (i32, i32) {
    %c0_i32 = arith.constant 0 : i32
    %c0_i32_0 = arith.constant 0 : i32
    %c0_i32_1 = arith.constant 0 : i32
    return %c0_i32, %c0_i32_0 : i32, i32
  }
  func.func @transform_11(%arg0: i32) -> (i32, i32) {
    %c0_i32 = arith.constant 0 : i32
    %c0_i32_0 = arith.constant 0 : i32
    %c0_i32_1 = arith.constant 0 : i32
    return %c0_i32, %c0_i32_0 : i32, i32
  }
  func.func @transform_12(%arg0: i32) -> (i32, i32) {
    %c0_i32 = arith.constant 0 : i32
    %c0_i32_0 = arith.constant 0 : i32
    return %arg0, %c0_i32 : i32, i32
  }
}

module attributes {stable_mosaic.version = 11 : i64} {
  func.func @_return_update_kernel(%arg0: i32, %arg1: memref<24x16xf32, #tpu.memory_space<vmem>>, %arg2: memref<16x32xf32, #tpu.memory_space<vmem>>, %arg3: memref<24x16xf32, #tpu.memory_space<vmem>>, %arg4: memref<16x32xf32, #tpu.memory_space<vmem>>, %arg5: memref<24x32xf32, #tpu.memory_space<vmem>>, %arg6: memref<32x32xf32, #tpu.memory_space<vmem>>, %arg7: memref<1x32xf32, #tpu.memory_space<vmem>>, %arg8: memref<1x1xf32, #tpu.memory_space<smem>>, %arg9: memref<32x32xf32, #tpu.memory_space<vmem>>, %arg10: memref<1x32xf32, #tpu.memory_space<vmem>>, %arg11: memref<1x32xf32, #tpu.memory_space<vmem>>, %arg12: memref<1x32xf32, #tpu.memory_space<vmem>>, %arg13: memref<1x32xf32, #tpu.memory_space<vmem>>, %arg14: memref<1x32xf32, #tpu.memory_space<vmem>>, %arg15: memref<32x32xf32, #tpu.memory_space<vmem>>, %arg16: memref<1x32xf32, #tpu.memory_space<vmem>>, %arg17: memref<24x32xf32, #tpu.memory_space<vmem>>) attributes {dimension_semantics = [#tpu.dimension_semantics<parallel>], iteration_bounds = array<i64: 1>, scalar_prefetch = 0 : i64, scratch_operands = 0 : i64, tpu.core_type = #tpu.core_type<tc>, window_params = [{transform_indices = @transform_0, window_bounds = array<i64: 24, 16>}, {pipeline_mode = #tpu.pipeline_mode<synchronous>, transform_indices = @transform_1, window_bounds = array<i64: 16, 32>}, {transform_indices = @transform_2, window_bounds = array<i64: 24, 16>}, {pipeline_mode = #tpu.pipeline_mode<synchronous>, transform_indices = @transform_3, window_bounds = array<i64: 16, 32>}, {transform_indices = @transform_4, window_bounds = array<i64: 24, 32>}, {pipeline_mode = #tpu.pipeline_mode<synchronous>, transform_indices = @transform_5, window_bounds = array<i64: 32, 32>}, {pipeline_mode = #tpu.pipeline_mode<synchronous>, transform_indices = @transform_6, window_bounds = array<i64: 1, 32>}, {transform_indices = @transform_7, window_bounds = array<i64: 1, 1>}, {pipeline_mode = #tpu.pipeline_mode<synchronous>, transform_indices = @transform_8, window_bounds = array<i64: 32, 32>}, {pipeline_mode = #tpu.pipeline_mode<synchronous>, transform_indices = @transform_9, window_bounds = array<i64: 1, 32>}, {pipeline_mode = #tpu.pipeline_mode<synchronous>, transform_indices = @transform_10, window_bounds = array<i64: 1, 32>}, {pipeline_mode = #tpu.pipeline_mode<synchronous>, transform_indices = @transform_11, window_bounds = array<i64: 1, 32>}, {pipeline_mode = #tpu.pipeline_mode<synchronous>, transform_indices = @transform_12, window_bounds = array<i64: 1, 32>}, {pipeline_mode = #tpu.pipeline_mode<synchronous>, transform_indices = @transform_13, window_bounds = array<i64: 1, 32>}, {pipeline_mode = #tpu.pipeline_mode<synchronous>, transform_indices = @transform_14, window_bounds = array<i64: 32, 32>}, {pipeline_mode = #tpu.pipeline_mode<synchronous>, transform_indices = @transform_15, window_bounds = array<i64: 1, 32>}, {transform_indices = @transform_16, window_bounds = array<i64: 24, 32>}]} {
    %c0 = arith.constant 0 : index
    %c0_0 = arith.constant 0 : index
    %0 = vector.load %arg2[%c0, %c0_0] : memref<16x32xf32, #tpu.memory_space<vmem>>, vector<16x32xf32>
    %c0_1 = arith.constant 0 : index
    %c0_2 = arith.constant 0 : index
    %1 = vector.load %arg1[%c0_1, %c0_2] : memref<24x16xf32, #tpu.memory_space<vmem>>, vector<24x16xf32>
    %cst = arith.constant dense<0.000000e+00> : vector<24x32xf32>
    %2 = tpu.matmul %1, %0, %cst {dimension_numbers = #tpu.dot_dimension_numbers<[1], [0], [0], [1], [0, 0, 1, 1], [], []>} : vector<24x16xf32>, vector<16x32xf32>, vector<24x32xf32> -> vector<24x32xf32>
    %c0_3 = arith.constant 0 : index
    %c0_4 = arith.constant 0 : index
    %3 = vector.load %arg4[%c0_3, %c0_4] : memref<16x32xf32, #tpu.memory_space<vmem>>, vector<16x32xf32>
    %c0_5 = arith.constant 0 : index
    %c0_6 = arith.constant 0 : index
    %4 = vector.load %arg3[%c0_5, %c0_6] : memref<24x16xf32, #tpu.memory_space<vmem>>, vector<24x16xf32>
    %cst_7 = arith.constant dense<0.000000e+00> : vector<24x32xf32>
    %5 = tpu.matmul %4, %3, %cst_7 {dimension_numbers = #tpu.dot_dimension_numbers<[1], [0], [0], [1], [0, 0, 1, 1], [], []>} : vector<24x16xf32>, vector<16x32xf32>, vector<24x32xf32> -> vector<24x32xf32>
    %6 = arith.addf %2, %5 : vector<24x32xf32>
    %c0_8 = arith.constant 0 : index
    %c0_9 = arith.constant 0 : index
    %7 = vector.load %arg5[%c0_8, %c0_9] : memref<24x32xf32, #tpu.memory_space<vmem>>, vector<24x32xf32>
    %c0_10 = arith.constant 0 : index
    %c0_11 = arith.constant 0 : index
    %8 = vector.load %arg6[%c0_10, %c0_11] : memref<32x32xf32, #tpu.memory_space<vmem>>, vector<32x32xf32>
    %cst_12 = arith.constant dense<0.000000e+00> : vector<24x32xf32>
    %9 = tpu.matmul %7, %8, %cst_12 {dimension_numbers = #tpu.dot_dimension_numbers<[1], [0], [0], [1], [0, 0, 1, 1], [], []>} : vector<24x32xf32>, vector<32x32xf32>, vector<24x32xf32> -> vector<24x32xf32>
    %c0_13 = arith.constant 0 : index
    %c0_14 = arith.constant 0 : index
    %10 = vector.load %arg7[%c0_13, %c0_14] : memref<1x32xf32, #tpu.memory_space<vmem>>, vector<1x32xf32>
    %11 = vector.broadcast %10 : vector<1x32xf32> to vector<24x32xf32>
    %12 = arith.addf %9, %11 : vector<24x32xf32>
    %c0_15 = arith.constant 0 : index
    %c0_16 = arith.constant 0 : index
    %13 = memref.load %arg8[%c0_15, %c0_16] : memref<1x1xf32, #tpu.memory_space<smem>>
    %cst_17 = arith.constant 1.000000e+00 : f32
    %14 = arith.addf %cst_17, %13 : f32
    %15 = vector.broadcast %14 : f32 to vector<24x32xf32>
    %16 = arith.mulf %15, %12 : vector<24x32xf32>
    %17 = arith.addf %16, %6 : vector<24x32xf32>
    %c0_18 = arith.constant 0 : index
    %c0_19 = arith.constant 0 : index
    %18 = vector.load %arg11[%c0_18, %c0_19] : memref<1x32xf32, #tpu.memory_space<vmem>>, vector<1x32xf32>
    %c0_20 = arith.constant 0 : index
    %c0_21 = arith.constant 0 : index
    %19 = vector.load %arg14[%c0_20, %c0_21] : memref<1x32xf32, #tpu.memory_space<vmem>>, vector<1x32xf32>
    %cst_22 = arith.constant 9.99999974E-6 : f32
    %20 = vector.broadcast %cst_22 : f32 to vector<1x32xf32>
    %21 = arith.addf %19, %20 : vector<1x32xf32>
    %22 = math.rsqrt %21 : vector<1x32xf32>
    %23 = arith.mulf %18, %22 : vector<1x32xf32>
    %c0_23 = arith.constant 0 : index
    %c0_24 = arith.constant 0 : index
    %24 = vector.load %arg12[%c0_23, %c0_24] : memref<1x32xf32, #tpu.memory_space<vmem>>, vector<1x32xf32>
    %c0_25 = arith.constant 0 : index
    %c0_26 = arith.constant 0 : index
    %25 = vector.load %arg13[%c0_25, %c0_26] : memref<1x32xf32, #tpu.memory_space<vmem>>, vector<1x32xf32>
    %26 = arith.mulf %25, %23 : vector<1x32xf32>
    %27 = arith.subf %24, %26 : vector<1x32xf32>
    %c0_27 = arith.constant 0 : index
    %c0_28 = arith.constant 0 : index
    %28 = vector.load %arg9[%c0_27, %c0_28] : memref<32x32xf32, #tpu.memory_space<vmem>>, vector<32x32xf32>
    %cst_29 = arith.constant dense<0.000000e+00> : vector<24x32xf32>
    %29 = tpu.matmul %17, %28, %cst_29 {dimension_numbers = #tpu.dot_dimension_numbers<[1], [0], [0], [1], [0, 0, 1, 1], [], []>} : vector<24x32xf32>, vector<32x32xf32>, vector<24x32xf32> -> vector<24x32xf32>
    %c0_30 = arith.constant 0 : index
    %c0_31 = arith.constant 0 : index
    %30 = vector.load %arg10[%c0_30, %c0_31] : memref<1x32xf32, #tpu.memory_space<vmem>>, vector<1x32xf32>
    %31 = vector.broadcast %30 : vector<1x32xf32> to vector<24x32xf32>
    %32 = arith.addf %29, %31 : vector<24x32xf32>
    %33 = vector.broadcast %23 : vector<1x32xf32> to vector<24x32xf32>
    %34 = arith.mulf %32, %33 : vector<24x32xf32>
    %35 = vector.broadcast %27 : vector<1x32xf32> to vector<24x32xf32>
    %36 = arith.addf %34, %35 : vector<24x32xf32>
    %cst_32 = arith.constant 0.000000e+00 : f32
    %37 = vector.broadcast %cst_32 : f32 to vector<24x32xf32>
    %38 = arith.maximumf %36, %37 : vector<24x32xf32>
    %c0_33 = arith.constant 0 : index
    %c0_34 = arith.constant 0 : index
    %39 = vector.load %arg15[%c0_33, %c0_34] : memref<32x32xf32, #tpu.memory_space<vmem>>, vector<32x32xf32>
    %cst_35 = arith.constant dense<0.000000e+00> : vector<24x32xf32>
    %40 = tpu.matmul %38, %39, %cst_35 {dimension_numbers = #tpu.dot_dimension_numbers<[1], [0], [0], [1], [0, 0, 1, 1], [], []>} : vector<24x32xf32>, vector<32x32xf32>, vector<24x32xf32> -> vector<24x32xf32>
    %c0_36 = arith.constant 0 : index
    %c0_37 = arith.constant 0 : index
    %41 = vector.load %arg16[%c0_36, %c0_37] : memref<1x32xf32, #tpu.memory_space<vmem>>, vector<1x32xf32>
    %42 = vector.broadcast %41 : vector<1x32xf32> to vector<24x32xf32>
    %43 = arith.addf %40, %42 : vector<24x32xf32>
    %c0_38 = arith.constant 0 : index
    %c0_39 = arith.constant 0 : index
    %44 = vector.load %arg17[%c0_38, %c0_39] : memref<24x32xf32, #tpu.memory_space<vmem>>, vector<24x32xf32>
    tpu.vector_store %arg17[%c0_38, %c0_39], %43 {strides = array<i32>} : memref<24x32xf32, #tpu.memory_space<vmem>>, vector<24x32xf32>,
    return
  }
  func.func @transform_0(%arg0: i32) -> (i32, i32) {
    %c0_i32 = arith.constant 0 : i32
    %c0_i32_0 = arith.constant 0 : i32
    return %arg0, %c0_i32 : i32, i32
  }
  func.func @transform_1(%arg0: i32) -> (i32, i32) {
    %c0_i32 = arith.constant 0 : i32
    %c0_i32_0 = arith.constant 0 : i32
    %c0_i32_1 = arith.constant 0 : i32
    return %c0_i32, %c0_i32_0 : i32, i32
  }
  func.func @transform_2(%arg0: i32) -> (i32, i32) {
    %c0_i32 = arith.constant 0 : i32
    %c0_i32_0 = arith.constant 0 : i32
    return %arg0, %c0_i32 : i32, i32
  }
  func.func @transform_3(%arg0: i32) -> (i32, i32) {
    %c0_i32 = arith.constant 0 : i32
    %c0_i32_0 = arith.constant 0 : i32
    %c0_i32_1 = arith.constant 0 : i32
    return %c0_i32, %c0_i32_0 : i32, i32
  }
  func.func @transform_4(%arg0: i32) -> (i32, i32) {
    %c0_i32 = arith.constant 0 : i32
    %c0_i32_0 = arith.constant 0 : i32
    return %arg0, %c0_i32 : i32, i32
  }
  func.func @transform_5(%arg0: i32) -> (i32, i32) {
    %c0_i32 = arith.constant 0 : i32
    %c0_i32_0 = arith.constant 0 : i32
    %c0_i32_1 = arith.constant 0 : i32
    return %c0_i32, %c0_i32_0 : i32, i32
  }
  func.func @transform_6(%arg0: i32) -> (i32, i32) {
    %c0_i32 = arith.constant 0 : i32
    %c0_i32_0 = arith.constant 0 : i32
    %c0_i32_1 = arith.constant 0 : i32
    return %c0_i32, %c0_i32_0 : i32, i32
  }
  func.func @transform_7(%arg0: i32) -> (i32, i32) {
    %c0_i32 = arith.constant 0 : i32
    %c0_i32_0 = arith.constant 0 : i32
    %c0_i32_1 = arith.constant 0 : i32
    return %c0_i32, %c0_i32_0 : i32, i32
  }
  func.func @transform_8(%arg0: i32) -> (i32, i32) {
    %c0_i32 = arith.constant 0 : i32
    %c0_i32_0 = arith.constant 0 : i32
    %c0_i32_1 = arith.constant 0 : i32
    return %c0_i32, %c0_i32_0 : i32, i32
  }
  func.func @transform_9(%arg0: i32) -> (i32, i32) {
    %c0_i32 = arith.constant 0 : i32
    %c0_i32_0 = arith.constant 0 : i32
    %c0_i32_1 = arith.constant 0 : i32
    return %c0_i32, %c0_i32_0 : i32, i32
  }
  func.func @transform_10(%arg0: i32) -> (i32, i32) {
    %c0_i32 = arith.constant 0 : i32
    %c0_i32_0 = arith.constant 0 : i32
    %c0_i32_1 = arith.constant 0 : i32
    return %c0_i32, %c0_i32_0 : i32, i32
  }
  func.func @transform_11(%arg0: i32) -> (i32, i32) {
    %c0_i32 = arith.constant 0 : i32
    %c0_i32_0 = arith.constant 0 : i32
    %c0_i32_1 = arith.constant 0 : i32
    return %c0_i32, %c0_i32_0 : i32, i32
  }
  func.func @transform_12(%arg0: i32) -> (i32, i32) {
    %c0_i32 = arith.constant 0 : i32
    %c0_i32_0 = arith.constant 0 : i32
    %c0_i32_1 = arith.constant 0 : i32
    return %c0_i32, %c0_i32_0 : i32, i32
  }
  func.func @transform_13(%arg0: i32) -> (i32, i32) {
    %c0_i32 = arith.constant 0 : i32
    %c0_i32_0 = arith.constant 0 : i32
    %c0_i32_1 = arith.constant 0 : i32
    return %c0_i32, %c0_i32_0 : i32, i32
  }
  func.func @transform_14(%arg0: i32) -> (i32, i32) {
    %c0_i32 = arith.constant 0 : i32
    %c0_i32_0 = arith.constant 0 : i32
    %c0_i32_1 = arith.constant 0 : i32
    return %c0_i32, %c0_i32_0 : i32, i32
  }
  func.func @transform_15(%arg0: i32) -> (i32, i32) {
    %c0_i32 = arith.constant 0 : i32
    %c0_i32_0 = arith.constant 0 : i32
    %c0_i32_1 = arith.constant 0 : i32
    return %c0_i32, %c0_i32_0 : i32, i32
  }
  func.func @transform_16(%arg0: i32) -> (i32, i32) {
    %c0_i32 = arith.constant 0 : i32
    %c0_i32_0 = arith.constant 0 : i32
    return %arg0, %c0_i32 : i32, i32
  }
}

module attributes {stable_mosaic.version = 11 : i64} {
  func.func @_return_update_kernel(%arg0: i32, %arg1: memref<24x16xf32, #tpu.memory_space<vmem>>, %arg2: memref<16x32xf32, #tpu.memory_space<vmem>>, %arg3: memref<24x16xf32, #tpu.memory_space<vmem>>, %arg4: memref<16x32xf32, #tpu.memory_space<vmem>>, %arg5: memref<24x32xf32, #tpu.memory_space<vmem>>, %arg6: memref<32x32xf32, #tpu.memory_space<vmem>>, %arg7: memref<1x32xf32, #tpu.memory_space<vmem>>, %arg8: memref<1x1xf32, #tpu.memory_space<smem>>, %arg9: memref<32x32xf32, #tpu.memory_space<vmem>>, %arg10: memref<1x32xf32, #tpu.memory_space<vmem>>, %arg11: memref<1x32xf32, #tpu.memory_space<vmem>>, %arg12: memref<1x32xf32, #tpu.memory_space<vmem>>, %arg13: memref<1x32xf32, #tpu.memory_space<vmem>>, %arg14: memref<1x32xf32, #tpu.memory_space<vmem>>, %arg15: memref<32x32xf32, #tpu.memory_space<vmem>>, %arg16: memref<1x32xf32, #tpu.memory_space<vmem>>, %arg17: memref<24x32xf32, #tpu.memory_space<vmem>>) attributes {dimension_semantics = [#tpu.dimension_semantics<parallel>], iteration_bounds = array<i64: 1>, scalar_prefetch = 0 : i64, scratch_operands = 0 : i64, tpu.core_type = #tpu.core_type<tc>, window_params = [{transform_indices = @transform_0, window_bounds = array<i64: 24, 16>}, {pipeline_mode = #tpu.pipeline_mode<synchronous>, transform_indices = @transform_1, window_bounds = array<i64: 16, 32>}, {transform_indices = @transform_2, window_bounds = array<i64: 24, 16>}, {pipeline_mode = #tpu.pipeline_mode<synchronous>, transform_indices = @transform_3, window_bounds = array<i64: 16, 32>}, {transform_indices = @transform_4, window_bounds = array<i64: 24, 32>}, {pipeline_mode = #tpu.pipeline_mode<synchronous>, transform_indices = @transform_5, window_bounds = array<i64: 32, 32>}, {pipeline_mode = #tpu.pipeline_mode<synchronous>, transform_indices = @transform_6, window_bounds = array<i64: 1, 32>}, {transform_indices = @transform_7, window_bounds = array<i64: 1, 1>}, {pipeline_mode = #tpu.pipeline_mode<synchronous>, transform_indices = @transform_8, window_bounds = array<i64: 32, 32>}, {pipeline_mode = #tpu.pipeline_mode<synchronous>, transform_indices = @transform_9, window_bounds = array<i64: 1, 32>}, {pipeline_mode = #tpu.pipeline_mode<synchronous>, transform_indices = @transform_10, window_bounds = array<i64: 1, 32>}, {pipeline_mode = #tpu.pipeline_mode<synchronous>, transform_indices = @transform_11, window_bounds = array<i64: 1, 32>}, {pipeline_mode = #tpu.pipeline_mode<synchronous>, transform_indices = @transform_12, window_bounds = array<i64: 1, 32>}, {pipeline_mode = #tpu.pipeline_mode<synchronous>, transform_indices = @transform_13, window_bounds = array<i64: 1, 32>}, {pipeline_mode = #tpu.pipeline_mode<synchronous>, transform_indices = @transform_14, window_bounds = array<i64: 32, 32>}, {pipeline_mode = #tpu.pipeline_mode<synchronous>, transform_indices = @transform_15, window_bounds = array<i64: 1, 32>}, {transform_indices = @transform_16, window_bounds = array<i64: 24, 32>}]} {
    %c0 = arith.constant 0 : index
    %c0_0 = arith.constant 0 : index
    %0 = vector.load %arg2[%c0, %c0_0] : memref<16x32xf32, #tpu.memory_space<vmem>>, vector<16x32xf32>
    %c0_1 = arith.constant 0 : index
    %c0_2 = arith.constant 0 : index
    %1 = vector.load %arg1[%c0_1, %c0_2] : memref<24x16xf32, #tpu.memory_space<vmem>>, vector<24x16xf32>
    %cst = arith.constant dense<0.000000e+00> : vector<24x32xf32>
    %2 = tpu.matmul %1, %0, %cst {dimension_numbers = #tpu.dot_dimension_numbers<[1], [0], [0], [1], [0, 0, 1, 1], [], []>} : vector<24x16xf32>, vector<16x32xf32>, vector<24x32xf32> -> vector<24x32xf32>
    %c0_3 = arith.constant 0 : index
    %c0_4 = arith.constant 0 : index
    %3 = vector.load %arg4[%c0_3, %c0_4] : memref<16x32xf32, #tpu.memory_space<vmem>>, vector<16x32xf32>
    %c0_5 = arith.constant 0 : index
    %c0_6 = arith.constant 0 : index
    %4 = vector.load %arg3[%c0_5, %c0_6] : memref<24x16xf32, #tpu.memory_space<vmem>>, vector<24x16xf32>
    %cst_7 = arith.constant dense<0.000000e+00> : vector<24x32xf32>
    %5 = tpu.matmul %4, %3, %cst_7 {dimension_numbers = #tpu.dot_dimension_numbers<[1], [0], [0], [1], [0, 0, 1, 1], [], []>} : vector<24x16xf32>, vector<16x32xf32>, vector<24x32xf32> -> vector<24x32xf32>
    %6 = arith.addf %2, %5 : vector<24x32xf32>
    %c0_8 = arith.constant 0 : index
    %c0_9 = arith.constant 0 : index
    %7 = vector.load %arg5[%c0_8, %c0_9] : memref<24x32xf32, #tpu.memory_space<vmem>>, vector<24x32xf32>
    %cst_10 = arith.constant 0.000000e+00 : f32
    %8 = vector.broadcast %cst_10 : f32 to vector<24x32xf32>
    %9 = arith.cmpf oge, %7, %8 : vector<24x32xf32>
    %cst_11 = arith.constant 0.00999999977 : f32
    %10 = vector.broadcast %cst_11 : f32 to vector<24x32xf32>
    %11 = arith.mulf %10, %7 : vector<24x32xf32>
    %12 = arith.select %9, %7, %11 : vector<24x32xi1>, vector<24x32xf32>
    %c0_12 = arith.constant 0 : index
    %c0_13 = arith.constant 0 : index
    %13 = vector.load %arg6[%c0_12, %c0_13] : memref<32x32xf32, #tpu.memory_space<vmem>>, vector<32x32xf32>
    %cst_14 = arith.constant dense<0.000000e+00> : vector<24x32xf32>
    %14 = tpu.matmul %12, %13, %cst_14 {dimension_numbers = #tpu.dot_dimension_numbers<[1], [0], [0], [1], [0, 0, 1, 1], [], []>} : vector<24x32xf32>, vector<32x32xf32>, vector<24x32xf32> -> vector<24x32xf32>
    %c0_15 = arith.constant 0 : index
    %c0_16 = arith.constant 0 : index
    %15 = vector.load %arg7[%c0_15, %c0_16] : memref<1x32xf32, #tpu.memory_space<vmem>>, vector<1x32xf32>
    %16 = vector.broadcast %15 : vector<1x32xf32> to vector<24x32xf32>
    %17 = arith.addf %14, %16 : vector<24x32xf32>
    %c0_17 = arith.constant 0 : index
    %c0_18 = arith.constant 0 : index
    %18 = memref.load %arg8[%c0_17, %c0_18] : memref<1x1xf32, #tpu.memory_space<smem>>
    %cst_19 = arith.constant 1.000000e+00 : f32
    %19 = arith.addf %cst_19, %18 : f32
    %20 = vector.broadcast %19 : f32 to vector<24x32xf32>
    %21 = arith.mulf %20, %17 : vector<24x32xf32>
    %22 = arith.addf %21, %6 : vector<24x32xf32>
    %c0_20 = arith.constant 0 : index
    %c0_21 = arith.constant 0 : index
    %23 = vector.load %arg11[%c0_20, %c0_21] : memref<1x32xf32, #tpu.memory_space<vmem>>, vector<1x32xf32>
    %c0_22 = arith.constant 0 : index
    %c0_23 = arith.constant 0 : index
    %24 = vector.load %arg14[%c0_22, %c0_23] : memref<1x32xf32, #tpu.memory_space<vmem>>, vector<1x32xf32>
    %cst_24 = arith.constant 9.99999974E-6 : f32
    %25 = vector.broadcast %cst_24 : f32 to vector<1x32xf32>
    %26 = arith.addf %24, %25 : vector<1x32xf32>
    %27 = math.rsqrt %26 : vector<1x32xf32>
    %28 = arith.mulf %23, %27 : vector<1x32xf32>
    %c0_25 = arith.constant 0 : index
    %c0_26 = arith.constant 0 : index
    %29 = vector.load %arg12[%c0_25, %c0_26] : memref<1x32xf32, #tpu.memory_space<vmem>>, vector<1x32xf32>
    %c0_27 = arith.constant 0 : index
    %c0_28 = arith.constant 0 : index
    %30 = vector.load %arg13[%c0_27, %c0_28] : memref<1x32xf32, #tpu.memory_space<vmem>>, vector<1x32xf32>
    %31 = arith.mulf %30, %28 : vector<1x32xf32>
    %32 = arith.subf %29, %31 : vector<1x32xf32>
    %c0_29 = arith.constant 0 : index
    %c0_30 = arith.constant 0 : index
    %33 = vector.load %arg9[%c0_29, %c0_30] : memref<32x32xf32, #tpu.memory_space<vmem>>, vector<32x32xf32>
    %cst_31 = arith.constant dense<0.000000e+00> : vector<24x32xf32>
    %34 = tpu.matmul %22, %33, %cst_31 {dimension_numbers = #tpu.dot_dimension_numbers<[1], [0], [0], [1], [0, 0, 1, 1], [], []>} : vector<24x32xf32>, vector<32x32xf32>, vector<24x32xf32> -> vector<24x32xf32>
    %c0_32 = arith.constant 0 : index
    %c0_33 = arith.constant 0 : index
    %35 = vector.load %arg10[%c0_32, %c0_33] : memref<1x32xf32, #tpu.memory_space<vmem>>, vector<1x32xf32>
    %36 = vector.broadcast %35 : vector<1x32xf32> to vector<24x32xf32>
    %37 = arith.addf %34, %36 : vector<24x32xf32>
    %38 = vector.broadcast %28 : vector<1x32xf32> to vector<24x32xf32>
    %39 = arith.mulf %37, %38 : vector<24x32xf32>
    %40 = vector.broadcast %32 : vector<1x32xf32> to vector<24x32xf32>
    %41 = arith.addf %39, %40 : vector<24x32xf32>
    %cst_34 = arith.constant 0.000000e+00 : f32
    %42 = vector.broadcast %cst_34 : f32 to vector<24x32xf32>
    %43 = arith.maximumf %41, %42 : vector<24x32xf32>
    %c0_35 = arith.constant 0 : index
    %c0_36 = arith.constant 0 : index
    %44 = vector.load %arg15[%c0_35, %c0_36] : memref<32x32xf32, #tpu.memory_space<vmem>>, vector<32x32xf32>
    %cst_37 = arith.constant dense<0.000000e+00> : vector<24x32xf32>
    %45 = tpu.matmul %43, %44, %cst_37 {dimension_numbers = #tpu.dot_dimension_numbers<[1], [0], [0], [1], [0, 0, 1, 1], [], []>} : vector<24x32xf32>, vector<32x32xf32>, vector<24x32xf32> -> vector<24x32xf32>
    %c0_38 = arith.constant 0 : index
    %c0_39 = arith.constant 0 : index
    %46 = vector.load %arg16[%c0_38, %c0_39] : memref<1x32xf32, #tpu.memory_space<vmem>>, vector<1x32xf32>
    %47 = vector.broadcast %46 : vector<1x32xf32> to vector<24x32xf32>
    %48 = arith.addf %45, %47 : vector<24x32xf32>
    %c0_40 = arith.constant 0 : index
    %c0_41 = arith.constant 0 : index
    %49 = vector.load %arg17[%c0_40, %c0_41] : memref<24x32xf32, #tpu.memory_space<vmem>>, vector<24x32xf32>
    tpu.vector_store %arg17[%c0_40, %c0_41], %48 {strides = array<i32>} : memref<24x32xf32, #tpu.memory_space<vmem>>, vector<24x32xf32>,
    return
  }
  func.func @transform_0(%arg0: i32) -> (i32, i32) {
    %c0_i32 = arith.constant 0 : i32
    %c0_i32_0 = arith.constant 0 : i32
    return %arg0, %c0_i32 : i32, i32
  }
  func.func @transform_1(%arg0: i32) -> (i32, i32) {
    %c0_i32 = arith.constant 0 : i32
    %c0_i32_0 = arith.constant 0 : i32
    %c0_i32_1 = arith.constant 0 : i32
    return %c0_i32, %c0_i32_0 : i32, i32
  }
  func.func @transform_2(%arg0: i32) -> (i32, i32) {
    %c0_i32 = arith.constant 0 : i32
    %c0_i32_0 = arith.constant 0 : i32
    return %arg0, %c0_i32 : i32, i32
  }
  func.func @transform_3(%arg0: i32) -> (i32, i32) {
    %c0_i32 = arith.constant 0 : i32
    %c0_i32_0 = arith.constant 0 : i32
    %c0_i32_1 = arith.constant 0 : i32
    return %c0_i32, %c0_i32_0 : i32, i32
  }
  func.func @transform_4(%arg0: i32) -> (i32, i32) {
    %c0_i32 = arith.constant 0 : i32
    %c0_i32_0 = arith.constant 0 : i32
    return %arg0, %c0_i32 : i32, i32
  }
  func.func @transform_5(%arg0: i32) -> (i32, i32) {
    %c0_i32 = arith.constant 0 : i32
    %c0_i32_0 = arith.constant 0 : i32
    %c0_i32_1 = arith.constant 0 : i32
    return %c0_i32, %c0_i32_0 : i32, i32
  }
  func.func @transform_6(%arg0: i32) -> (i32, i32) {
    %c0_i32 = arith.constant 0 : i32
    %c0_i32_0 = arith.constant 0 : i32
    %c0_i32_1 = arith.constant 0 : i32
    return %c0_i32, %c0_i32_0 : i32, i32
  }
  func.func @transform_7(%arg0: i32) -> (i32, i32) {
    %c0_i32 = arith.constant 0 : i32
    %c0_i32_0 = arith.constant 0 : i32
    %c0_i32_1 = arith.constant 0 : i32
    return %c0_i32, %c0_i32_0 : i32, i32
  }
  func.func @transform_8(%arg0: i32) -> (i32, i32) {
    %c0_i32 = arith.constant 0 : i32
    %c0_i32_0 = arith.constant 0 : i32
    %c0_i32_1 = arith.constant 0 : i32
    return %c0_i32, %c0_i32_0 : i32, i32
  }
  func.func @transform_9(%arg0: i32) -> (i32, i32) {
    %c0_i32 = arith.constant 0 : i32
    %c0_i32_0 = arith.constant 0 : i32
    %c0_i32_1 = arith.constant 0 : i32
    return %c0_i32, %c0_i32_0 : i32, i32
  }
  func.func @transform_10(%arg0: i32) -> (i32, i32) {
    %c0_i32 = arith.constant 0 : i32
    %c0_i32_0 = arith.constant 0 : i32
    %c0_i32_1 = arith.constant 0 : i32
    return %c0_i32, %c0_i32_0 : i32, i32
  }
  func.func @transform_11(%arg0: i32) -> (i32, i32) {
    %c0_i32 = arith.constant 0 : i32
    %c0_i32_0 = arith.constant 0 : i32
    %c0_i32_1 = arith.constant 0 : i32
    return %c0_i32, %c0_i32_0 : i32, i32
  }
  func.func @transform_12(%arg0: i32) -> (i32, i32) {
    %c0_i32 = arith.constant 0 : i32
    %c0_i32_0 = arith.constant 0 : i32
    %c0_i32_1 = arith.constant 0 : i32
    return %c0_i32, %c0_i32_0 : i32, i32
  }
  func.func @transform_13(%arg0: i32) -> (i32, i32) {
    %c0_i32 = arith.constant 0 : i32
    %c0_i32_0 = arith.constant 0 : i32
    %c0_i32_1 = arith.constant 0 : i32
    return %c0_i32, %c0_i32_0 : i32, i32
  }
  func.func @transform_14(%arg0: i32) -> (i32, i32) {
    %c0_i32 = arith.constant 0 : i32
    %c0_i32_0 = arith.constant 0 : i32
    %c0_i32_1 = arith.constant 0 : i32
    return %c0_i32, %c0_i32_0 : i32, i32
  }
  func.func @transform_15(%arg0: i32) -> (i32, i32) {
    %c0_i32 = arith.constant 0 : i32
    %c0_i32_0 = arith.constant 0 : i32
    %c0_i32_1 = arith.constant 0 : i32
    return %c0_i32, %c0_i32_0 : i32, i32
  }
  func.func @transform_16(%arg0: i32) -> (i32, i32) {
    %c0_i32 = arith.constant 0 : i32
    %c0_i32_0 = arith.constant 0 : i32
    return %arg0, %c0_i32 : i32, i32
  }
}

module attributes {stable_mosaic.version = 11 : i64} {
  func.func @_go_update_kernel(%arg0: i32, %arg1: memref<16x24xf32, #tpu.memory_space<vmem>>, %arg2: memref<24x32xf32, #tpu.memory_space<vmem>>, %arg3: memref<16x32xf32, #tpu.memory_space<vmem>>, %arg4: memref<1x1xf32, #tpu.memory_space<smem>>, %arg5: memref<32x32xf32, #tpu.memory_space<vmem>>, %arg6: memref<1x32xf32, #tpu.memory_space<vmem>>, %arg7: memref<1x32xf32, #tpu.memory_space<vmem>>, %arg8: memref<1x32xf32, #tpu.memory_space<vmem>>, %arg9: memref<1x32xf32, #tpu.memory_space<vmem>>, %arg10: memref<1x32xf32, #tpu.memory_space<vmem>>, %arg11: memref<32x32xf32, #tpu.memory_space<vmem>>, %arg12: memref<1x32xf32, #tpu.memory_space<vmem>>, %arg13: memref<16x32xf32, #tpu.memory_space<vmem>>) attributes {dimension_semantics = [#tpu.dimension_semantics<parallel>], iteration_bounds = array<i64: 1>, scalar_prefetch = 0 : i64, scratch_operands = 0 : i64, tpu.core_type = #tpu.core_type<tc>, window_params = [{transform_indices = @transform_0, window_bounds = array<i64: 16, 24>}, {pipeline_mode = #tpu.pipeline_mode<synchronous>, transform_indices = @transform_1, window_bounds = array<i64: 24, 32>}, {transform_indices = @transform_2, window_bounds = array<i64: 16, 32>}, {transform_indices = @transform_3, window_bounds = array<i64: 1, 1>}, {pipeline_mode = #tpu.pipeline_mode<synchronous>, transform_indices = @transform_4, window_bounds = array<i64: 32, 32>}, {pipeline_mode = #tpu.pipeline_mode<synchronous>, transform_indices = @transform_5, window_bounds = array<i64: 1, 32>}, {pipeline_mode = #tpu.pipeline_mode<synchronous>, transform_indices = @transform_6, window_bounds = array<i64: 1, 32>}, {pipeline_mode = #tpu.pipeline_mode<synchronous>, transform_indices = @transform_7, window_bounds = array<i64: 1, 32>}, {pipeline_mode = #tpu.pipeline_mode<synchronous>, transform_indices = @transform_8, window_bounds = array<i64: 1, 32>}, {pipeline_mode = #tpu.pipeline_mode<synchronous>, transform_indices = @transform_9, window_bounds = array<i64: 1, 32>}, {pipeline_mode = #tpu.pipeline_mode<synchronous>, transform_indices = @transform_10, window_bounds = array<i64: 32, 32>}, {pipeline_mode = #tpu.pipeline_mode<synchronous>, transform_indices = @transform_11, window_bounds = array<i64: 1, 32>}, {transform_indices = @transform_12, window_bounds = array<i64: 16, 32>}]} {
    %c0 = arith.constant 0 : index
    %c0_0 = arith.constant 0 : index
    %0 = vector.load %arg2[%c0, %c0_0] : memref<24x32xf32, #tpu.memory_space<vmem>>, vector<24x32xf32>
    %cst = arith.constant 0.000000e+00 : f32
    %1 = vector.broadcast %cst : f32 to vector<24x32xf32>
    %2 = arith.cmpf oge, %0, %1 : vector<24x32xf32>
    %cst_1 = arith.constant 0.00999999977 : f32
    %3 = vector.broadcast %cst_1 : f32 to vector<24x32xf32>
    %4 = arith.mulf %3, %0 : vector<24x32xf32>
    %5 = arith.select %2, %0, %4 : vector<24x32xi1>, vector<24x32xf32>
    %c0_2 = arith.constant 0 : index
    %c0_3 = arith.constant 0 : index
    %6 = vector.load %arg3[%c0_2, %c0_3] : memref<16x32xf32, #tpu.memory_space<vmem>>, vector<16x32xf32>
    %cst_4 = arith.constant 0.000000e+00 : f32
    %7 = vector.broadcast %cst_4 : f32 to vector<16x32xf32>
    %8 = arith.cmpf oge, %6, %7 : vector<16x32xf32>
    %cst_5 = arith.constant 0.00999999977 : f32
    %9 = vector.broadcast %cst_5 : f32 to vector<16x32xf32>
    %10 = arith.mulf %9, %6 : vector<16x32xf32>
    %11 = arith.select %8, %6, %10 : vector<16x32xi1>, vector<16x32xf32>
    %c0_6 = arith.constant 0 : index
    %c0_7 = arith.constant 0 : index
    %12 = vector.load %arg1[%c0_6, %c0_7] : memref<16x24xf32, #tpu.memory_space<vmem>>, vector<16x24xf32>
    %cst_8 = arith.constant dense<0.000000e+00> : vector<16x32xf32>
    %13 = tpu.matmul %12, %5, %cst_8 {dimension_numbers = #tpu.dot_dimension_numbers<[1], [0], [0], [1], [0, 0, 1, 1], [], []>} : vector<16x24xf32>, vector<24x32xf32>, vector<16x32xf32> -> vector<16x32xf32>
    %c0_9 = arith.constant 0 : index
    %c0_10 = arith.constant 0 : index
    %14 = memref.load %arg4[%c0_9, %c0_10] : memref<1x1xf32, #tpu.memory_space<smem>>
    %cst_11 = arith.constant 1.000000e+00 : f32
    %15 = arith.addf %cst_11, %14 : f32
    %16 = vector.broadcast %15 : f32 to vector<16x32xf32>
    %17 = arith.mulf %16, %11 : vector<16x32xf32>
    %18 = arith.addf %17, %13 : vector<16x32xf32>
    %c0_12 = arith.constant 0 : index
    %c0_13 = arith.constant 0 : index
    %19 = vector.load %arg7[%c0_12, %c0_13] : memref<1x32xf32, #tpu.memory_space<vmem>>, vector<1x32xf32>
    %c0_14 = arith.constant 0 : index
    %c0_15 = arith.constant 0 : index
    %20 = vector.load %arg10[%c0_14, %c0_15] : memref<1x32xf32, #tpu.memory_space<vmem>>, vector<1x32xf32>
    %cst_16 = arith.constant 9.99999974E-6 : f32
    %21 = vector.broadcast %cst_16 : f32 to vector<1x32xf32>
    %22 = arith.addf %20, %21 : vector<1x32xf32>
    %23 = math.rsqrt %22 : vector<1x32xf32>
    %24 = arith.mulf %19, %23 : vector<1x32xf32>
    %c0_17 = arith.constant 0 : index
    %c0_18 = arith.constant 0 : index
    %25 = vector.load %arg8[%c0_17, %c0_18] : memref<1x32xf32, #tpu.memory_space<vmem>>, vector<1x32xf32>
    %c0_19 = arith.constant 0 : index
    %c0_20 = arith.constant 0 : index
    %26 = vector.load %arg9[%c0_19, %c0_20] : memref<1x32xf32, #tpu.memory_space<vmem>>, vector<1x32xf32>
    %27 = arith.mulf %26, %24 : vector<1x32xf32>
    %28 = arith.subf %25, %27 : vector<1x32xf32>
    %c0_21 = arith.constant 0 : index
    %c0_22 = arith.constant 0 : index
    %29 = vector.load %arg5[%c0_21, %c0_22] : memref<32x32xf32, #tpu.memory_space<vmem>>, vector<32x32xf32>
    %cst_23 = arith.constant dense<0.000000e+00> : vector<16x32xf32>
    %30 = tpu.matmul %18, %29, %cst_23 {dimension_numbers = #tpu.dot_dimension_numbers<[1], [0], [0], [1], [0, 0, 1, 1], [], []>} : vector<16x32xf32>, vector<32x32xf32>, vector<16x32xf32> -> vector<16x32xf32>
    %c0_24 = arith.constant 0 : index
    %c0_25 = arith.constant 0 : index
    %31 = vector.load %arg6[%c0_24, %c0_25] : memref<1x32xf32, #tpu.memory_space<vmem>>, vector<1x32xf32>
    %32 = vector.broadcast %31 : vector<1x32xf32> to vector<16x32xf32>
    %33 = arith.addf %30, %32 : vector<16x32xf32>
    %34 = vector.broadcast %24 : vector<1x32xf32> to vector<16x32xf32>
    %35 = arith.mulf %33, %34 : vector<16x32xf32>
    %36 = vector.broadcast %28 : vector<1x32xf32> to vector<16x32xf32>
    %37 = arith.addf %35, %36 : vector<16x32xf32>
    %cst_26 = arith.constant 0.000000e+00 : f32
    %38 = vector.broadcast %cst_26 : f32 to vector<16x32xf32>
    %39 = arith.maximumf %37, %38 : vector<16x32xf32>
    %c0_27 = arith.constant 0 : index
    %c0_28 = arith.constant 0 : index
    %40 = vector.load %arg11[%c0_27, %c0_28] : memref<32x32xf32, #tpu.memory_space<vmem>>, vector<32x32xf32>
    %cst_29 = arith.constant dense<0.000000e+00> : vector<16x32xf32>
    %41 = tpu.matmul %39, %40, %cst_29 {dimension_numbers = #tpu.dot_dimension_numbers<[1], [0], [0], [1], [0, 0, 1, 1], [], []>} : vector<16x32xf32>, vector<32x32xf32>, vector<16x32xf32> -> vector<16x32xf32>
    %c0_30 = arith.constant 0 : index
    %c0_31 = arith.constant 0 : index
    %42 = vector.load %arg12[%c0_30, %c0_31] : memref<1x32xf32, #tpu.memory_space<vmem>>, vector<1x32xf32>
    %43 = vector.broadcast %42 : vector<1x32xf32> to vector<16x32xf32>
    %44 = arith.addf %41, %43 : vector<16x32xf32>
    %c0_32 = arith.constant 0 : index
    %c0_33 = arith.constant 0 : index
    %45 = vector.load %arg13[%c0_32, %c0_33] : memref<16x32xf32, #tpu.memory_space<vmem>>, vector<16x32xf32>
    tpu.vector_store %arg13[%c0_32, %c0_33], %44 {strides = array<i32>} : memref<16x32xf32, #tpu.memory_space<vmem>>, vector<16x32xf32>,
    return
  }
  func.func @transform_0(%arg0: i32) -> (i32, i32) {
    %c0_i32 = arith.constant 0 : i32
    %c0_i32_0 = arith.constant 0 : i32
    return %arg0, %c0_i32 : i32, i32
  }
  func.func @transform_1(%arg0: i32) -> (i32, i32) {
    %c0_i32 = arith.constant 0 : i32
    %c0_i32_0 = arith.constant 0 : i32
    %c0_i32_1 = arith.constant 0 : i32
    return %c0_i32, %c0_i32_0 : i32, i32
  }
  func.func @transform_2(%arg0: i32) -> (i32, i32) {
    %c0_i32 = arith.constant 0 : i32
    %c0_i32_0 = arith.constant 0 : i32
    return %arg0, %c0_i32 : i32, i32
  }
  func.func @transform_3(%arg0: i32) -> (i32, i32) {
    %c0_i32 = arith.constant 0 : i32
    %c0_i32_0 = arith.constant 0 : i32
    %c0_i32_1 = arith.constant 0 : i32
    return %c0_i32, %c0_i32_0 : i32, i32
  }
  func.func @transform_4(%arg0: i32) -> (i32, i32) {
    %c0_i32 = arith.constant 0 : i32
    %c0_i32_0 = arith.constant 0 : i32
    %c0_i32_1 = arith.constant 0 : i32
    return %c0_i32, %c0_i32_0 : i32, i32
  }
  func.func @transform_5(%arg0: i32) -> (i32, i32) {
    %c0_i32 = arith.constant 0 : i32
    %c0_i32_0 = arith.constant 0 : i32
    %c0_i32_1 = arith.constant 0 : i32
    return %c0_i32, %c0_i32_0 : i32, i32
  }
  func.func @transform_6(%arg0: i32) -> (i32, i32) {
    %c0_i32 = arith.constant 0 : i32
    %c0_i32_0 = arith.constant 0 : i32
    %c0_i32_1 = arith.constant 0 : i32
    return %c0_i32, %c0_i32_0 : i32, i32
  }
  func.func @transform_7(%arg0: i32) -> (i32, i32) {
    %c0_i32 = arith.constant 0 : i32
    %c0_i32_0 = arith.constant 0 : i32
    %c0_i32_1 = arith.constant 0 : i32
    return %c0_i32, %c0_i32_0 : i32, i32
  }
  func.func @transform_8(%arg0: i32) -> (i32, i32) {
    %c0_i32 = arith.constant 0 : i32
    %c0_i32_0 = arith.constant 0 : i32
    %c0_i32_1 = arith.constant 0 : i32
    return %c0_i32, %c0_i32_0 : i32, i32
  }
  func.func @transform_9(%arg0: i32) -> (i32, i32) {
    %c0_i32 = arith.constant 0 : i32
    %c0_i32_0 = arith.constant 0 : i32
    %c0_i32_1 = arith.constant 0 : i32
    return %c0_i32, %c0_i32_0 : i32, i32
  }
  func.func @transform_10(%arg0: i32) -> (i32, i32) {
    %c0_i32 = arith.constant 0 : i32
    %c0_i32_0 = arith.constant 0 : i32
    %c0_i32_1 = arith.constant 0 : i32
    return %c0_i32, %c0_i32_0 : i32, i32
  }
  func.func @transform_11(%arg0: i32) -> (i32, i32) {
    %c0_i32 = arith.constant 0 : i32
    %c0_i32_0 = arith.constant 0 : i32
    %c0_i32_1 = arith.constant 0 : i32
    return %c0_i32, %c0_i32_0 : i32, i32
  }
  func.func @transform_12(%arg0: i32) -> (i32, i32) {
    %c0_i32 = arith.constant 0 : i32
    %c0_i32_0 = arith.constant 0 : i32
    return %arg0, %c0_i32 : i32, i32
  }
}

module attributes {stable_mosaic.version = 11 : i64} {
  func.func @_linear_kernel(%arg0: i32, %arg1: memref<24x32xf32, #tpu.memory_space<vmem>>, %arg2: memref<32x8xf32, #tpu.memory_space<vmem>>, %arg3: memref<1x8xf32, #tpu.memory_space<vmem>>, %arg4: memref<24x8xf32, #tpu.memory_space<vmem>>) attributes {dimension_semantics = [#tpu.dimension_semantics<parallel>], iteration_bounds = array<i64: 1>, scalar_prefetch = 0 : i64, scratch_operands = 0 : i64, tpu.core_type = #tpu.core_type<tc>, window_params = [{transform_indices = @transform_0, window_bounds = array<i64: 24, 32>}, {pipeline_mode = #tpu.pipeline_mode<synchronous>, transform_indices = @transform_1, window_bounds = array<i64: 32, 8>}, {pipeline_mode = #tpu.pipeline_mode<synchronous>, transform_indices = @transform_2, window_bounds = array<i64: 1, 8>}, {transform_indices = @transform_3, window_bounds = array<i64: 24, 8>}]} {
    %c0 = arith.constant 0 : index
    %c0_0 = arith.constant 0 : index
    %0 = vector.load %arg1[%c0, %c0_0] : memref<24x32xf32, #tpu.memory_space<vmem>>, vector<24x32xf32>
    %cst = arith.constant 0.000000e+00 : f32
    %1 = vector.broadcast %cst : f32 to vector<24x32xf32>
    %2 = arith.cmpf oge, %0, %1 : vector<24x32xf32>
    %cst_1 = arith.constant 0.00999999977 : f32
    %3 = vector.broadcast %cst_1 : f32 to vector<24x32xf32>
    %4 = arith.mulf %3, %0 : vector<24x32xf32>
    %5 = arith.select %2, %0, %4 : vector<24x32xi1>, vector<24x32xf32>
    %c0_2 = arith.constant 0 : index
    %c0_3 = arith.constant 0 : index
    %6 = vector.load %arg2[%c0_2, %c0_3] : memref<32x8xf32, #tpu.memory_space<vmem>>, vector<32x8xf32>
    %cst_4 = arith.constant dense<0.000000e+00> : vector<24x8xf32>
    %7 = tpu.matmul %5, %6, %cst_4 {dimension_numbers = #tpu.dot_dimension_numbers<[1], [0], [0], [1], [0, 0, 1, 1], [], []>} : vector<24x32xf32>, vector<32x8xf32>, vector<24x8xf32> -> vector<24x8xf32>
    %c0_5 = arith.constant 0 : index
    %c0_6 = arith.constant 0 : index
    %8 = vector.load %arg3[%c0_5, %c0_6] : memref<1x8xf32, #tpu.memory_space<vmem>>, vector<1x8xf32>
    %9 = vector.broadcast %8 : vector<1x8xf32> to vector<24x8xf32>
    %10 = arith.addf %7, %9 : vector<24x8xf32>
    %c0_7 = arith.constant 0 : index
    %c0_8 = arith.constant 0 : index
    %11 = vector.load %arg4[%c0_7, %c0_8] : memref<24x8xf32, #tpu.memory_space<vmem>>, vector<24x8xf32>
    tpu.vector_store %arg4[%c0_7, %c0_8], %10 {strides = array<i32>} : memref<24x8xf32, #tpu.memory_space<vmem>>, vector<24x8xf32>,
    return
  }
  func.func @transform_0(%arg0: i32) -> (i32, i32) {
    %c0_i32 = arith.constant 0 : i32
    %c0_i32_0 = arith.constant 0 : i32
    return %arg0, %c0_i32 : i32, i32
  }
  func.func @transform_1(%arg0: i32) -> (i32, i32) {
    %c0_i32 = arith.constant 0 : i32
    %c0_i32_0 = arith.constant 0 : i32
    %c0_i32_1 = arith.constant 0 : i32
    return %c0_i32, %c0_i32_0 : i32, i32
  }
  func.func @transform_2(%arg0: i32) -> (i32, i32) {
    %c0_i32 = arith.constant 0 : i32
    %c0_i32_0 = arith.constant 0 : i32
    %c0_i32_1 = arith.constant 0 : i32
    return %c0_i32, %c0_i32_0 : i32, i32
  }
  func.func @transform_3(%arg0: i32) -> (i32, i32) {
    %c0_i32 = arith.constant 0 : i32
    %c0_i32_0 = arith.constant 0 : i32
    return %arg0, %c0_i32 : i32, i32
  }
}

</mosaic_0001>

<llo_original>
// kernel: hgin_forward.9
$region0: #{hgin_forward.9}
  #allocation0 [shape = 'u32[]', space=smem, size = 0x4, offset = 0x4, fixed_abs, tag = 'smem constant byte address 0x4 - core index']
  #allocation1 [shape = 'u32[144,128]{1,0:T(1,128)}', space=vmem, size = 0x12000, scoped, tag = 'internal scratch']
  #allocation2 [shape = 'f32[1,1]{1,0:T(1,128)S(6)}', space=smem, size = 0x200, scoped, tag = 'scoped memory for hgin_forward.9']
  %s0 = inlined_call_operand.hbm [shape: f32[24,16], index: 0, kind: input, shape index: {}]
  %s1 = inlined_call_operand.hbm [shape: f32[16,32], index: 1, kind: input, shape index: {}]
  %s2 = inlined_call_operand.hbm [shape: f32[24,16], index: 2, kind: input, shape index: {}]
  %s3 = inlined_call_operand.hbm [shape: f32[16,32], index: 3, kind: input, shape index: {}]
  %s4 = inlined_call_operand.hbm [shape: f32[24,32], index: 4, kind: input, shape index: {}]
  %s5 = inlined_call_operand.hbm [shape: f32[32,32], index: 5, kind: input, shape index: {}]
  %s6 = inlined_call_operand.hbm [shape: f32[1,32], index: 6, kind: input, shape index: {}]
  %s7 = inlined_call_operand.<no memory space> [shape: f32[1,1], index: 7, kind: input, shape index: {}]
  %s8 = inlined_call_operand.hbm [shape: f32[32,32], index: 8, kind: input, shape index: {}]
  %s9 = inlined_call_operand.hbm [shape: f32[1,32], index: 9, kind: input, shape index: {}]
  %s10 = inlined_call_operand.hbm [shape: f32[1,32], index: 10, kind: input, shape index: {}]
  %s11 = inlined_call_operand.hbm [shape: f32[1,32], index: 11, kind: input, shape index: {}]
  %s12 = inlined_call_operand.hbm [shape: f32[1,32], index: 12, kind: input, shape index: {}]
  %s13 = inlined_call_operand.hbm [shape: f32[1,32], index: 13, kind: input, shape index: {}]
  %s14 = inlined_call_operand.hbm [shape: f32[32,32], index: 14, kind: input, shape index: {}]
  %s15 = inlined_call_operand.hbm [shape: f32[1,32], index: 15, kind: input, shape index: {}]
  %s16 = inlined_call_operand.hbm [shape: f32[24,32], index: 16, kind: output, shape index: {}]
  %s17 = sld [smem:[#allocation0]]
  $region134: #{hgin_forward.9} parent=0
    _
  %s19 = ssub.s32 1, %s17
  %s20 = scalar_select 0, %s19, %s17
  %21 = sst [smem:[#allocation2]] %s7
  $region1: #{hgin_forward.9} parent=0
    #allocation3 [shape = 'u8[12288]{0}', space=vmem, size = 0x3000, scoped, tag = 'input window, operand 0, single buffered']
    #allocation4 [shape = 's32[1]{0}', space=sflag, size = 0x4, scoped, tag = 'scoped memory for hgin_forward.9']
    #allocation5 [shape = 's32[1]{0}', space=sflag, size = 0x4, scoped, tag = 'scoped memory for hgin_forward.9']
    #allocation6 [shape = 'u8[8192]{0}', space=vmem, size = 0x2000, scoped, tag = 'input window, operand 1, single buffered']
    #allocation7 [shape = 's32[1]{0}', space=sflag, size = 0x4, scoped, tag = 'scoped memory for hgin_forward.9']
    #allocation8 [shape = 'u8[12288]{0}', space=vmem, size = 0x3000, scoped, tag = 'input window, operand 2, single buffered']
    #allocation9 [shape = 'u8[8192]{0}', space=vmem, size = 0x2000, scoped, tag = 'input window, operand 3, single buffered']
    #allocation10 [shape = 's32[1]{0}', space=sflag, size = 0x4, scoped, tag = 'scoped memory for hgin_forward.9']
    #allocation11 [shape = 'u8[12288]{0}', space=vmem, size = 0x3000, scoped, tag = 'input window, operand 4, single buffered']
    #allocation12 [shape = 'u8[16384]{0}', space=vmem, size = 0x4000, scoped, tag = 'input window, operand 5, single buffered']
    #allocation13 [shape = 's32[1]{0}', space=sflag, size = 0x4, scoped, tag = 'scoped memory for hgin_forward.9']
    #allocation14 [shape = 'u8[512]{0}', space=vmem, size = 0x400, scoped, tag = 'input window, operand 6, single buffered']
    #allocation15 [shape = 'u8[16384]{0}', space=vmem, size = 0x4000, scoped, tag = 'input window, operand 8, single buffered']
    #allocation16 [shape = 's32[1]{0}', space=sflag, size = 0x4, scoped, tag = 'scoped memory for hgin_forward.9']
    #allocation17 [shape = 'u8[512]{0}', space=vmem, size = 0x400, scoped, tag = 'input window, operand 9, single buffered']
    #allocation18 [shape = 'u8[512]{0}', space=vmem, size = 0x400, scoped, tag = 'input window, operand 10, single buffered']
    #allocation19 [shape = 's32[1]{0}', space=sflag, size = 0x4, scoped, tag = 'scoped memory for hgin_forward.9']
    #allocation20 [shape = 'u8[512]{0}', space=vmem, size = 0x400, scoped, tag = 'input window, operand 11, single buffered']
    #allocation21 [shape = 'u8[512]{0}', space=vmem, size = 0x400, scoped, tag = 'input window, operand 12, single buffered']
    #allocation22 [shape = 's32[1]{0}', space=sflag, size = 0x4, scoped, tag = 'scoped memory for hgin_forward.9']
    #allocation23 [shape = 'u8[512]{0}', space=vmem, size = 0x400, scoped, tag = 'input window, operand 13, single buffered']
    #allocation24 [shape = 'u8[16384]{0}', space=vmem, size = 0x4000, scoped, tag = 'input window, operand 14, single buffered']
    #allocation25 [shape = 's32[1]{0}', space=sflag, size = 0x4, scoped, tag = 'scoped memory for hgin_forward.9']
    #allocation26 [shape = 'u8[512]{0}', space=vmem, size = 0x400, scoped, tag = 'input window, operand 15, single buffered']
    #allocation27 [shape = 'u8[12288]{0}', space=vmem, size = 0x3000, scoped, tag = 'output window, operand 0, single buffered']
    %22 = vsyncpa [#allocation4], 0
    %23 = vsyncpa [#allocation7], 0
    %24 = vsyncpa [#allocation10], 0
    %25 = vsyncpa [#allocation13], 0
    %26 = vsyncpa [#allocation16], 0
    %27 = vsyncpa [#allocation19], 0
    %28 = vsyncpa [#allocation22], 0
    %29 = vsyncpa [#allocation25], 0
    %30 = vsyncpa [#allocation5], 0
    // Predicated region
    $region2: #{hgin_forward.9} parent=1 // pred_check
      _
    $region3: #{hgin_forward.9} parent=1 // pred_check_branch
      %32 = sbr.rel (0) target = $region5
    $region4: #{hgin_forward.9} parent=1 // pred_region
      %s34 = ssub.s32 384, 384
      %35 = vsyncadd [#allocation4], %s34
      %s36 = sshll.u32 [#allocation3], 4
      %s37 = int_to_ptr.vmem [resolvable:$true] %s36
      %42 = dma.hbm_to_vmem [thread:$0]  %s0, 384, %s37, [#allocation4], 128, 128, 8
    $region5: #{hgin_forward.9} parent=1 // pred_fallthru
      _
    // Predicated region
    $region6: #{hgin_forward.9} parent=1 // pred_check
      _
    $region7: #{hgin_forward.9} parent=1 // pred_check_branch
      %44 = sbr.rel (0) target = $region9
    $region8: #{hgin_forward.9} parent=1 // pred_region
      %s46 = ssub.s32 256, 256
      %47 = vsyncadd [#allocation7], %s46
      %s48 = sshll.u32 [#allocation6], 4
      %s49 = int_to_ptr.vmem [resolvable:$true] %s48
      %54 = dma.hbm_to_vmem [thread:$0]  %s1, 256, %s49, [#allocation7], 128, 128, 8
    $region9: #{hgin_forward.9} parent=1 // pred_fallthru
      _
    // Predicated region
    $region10: #{hgin_forward.9} parent=1 // pred_check
      _
    $region11: #{hgin_forward.9} parent=1 // pred_check_branch
      %56 = sbr.rel (0) target = $region13
    $region12: #{hgin_forward.9} parent=1 // pred_region
      %s58 = ssub.s32 384, 384
      %59 = vsyncadd [#allocation7], %s58
      %s60 = sshll.u32 [#allocation8], 4
      %s61 = int_to_ptr.vmem [resolvable:$true] %s60
      %66 = dma.hbm_to_vmem [thread:$0]  %s2, 384, %s61, [#allocation7], 128, 128, 8
    $region13: #{hgin_forward.9} parent=1 // pred_fallthru
      _
    // Predicated region
    $region14: #{hgin_forward.9} parent=1 // pred_check
      _
    $region15: #{hgin_forward.9} parent=1 // pred_check_branch
      %68 = sbr.rel (0) target = $region17
    $region16: #{hgin_forward.9} parent=1 // pred_region
      %s70 = ssub.s32 256, 256
      %71 = vsyncadd [#allocation10], %s70
      %s72 = sshll.u32 [#allocation9], 4
      %s73 = int_to_ptr.vmem [resolvable:$true] %s72
      %78 = dma.hbm_to_vmem [thread:$0]  %s3, 256, %s73, [#allocation10], 128, 128, 8
    $region17: #{hgin_forward.9} parent=1 // pred_fallthru
      _
    // Predicated region
    $region18: #{hgin_forward.9} parent=1 // pred_check
      _
    $region19: #{hgin_forward.9} parent=1 // pred_check_branch
      %80 = sbr.rel (0) target = $region21
    $region20: #{hgin_forward.9} parent=1 // pred_region
      %s82 = ssub.s32 384, 384
      %83 = vsyncadd [#allocation10], %s82
      %s84 = sshll.u32 [#allocation11], 4
      %s85 = int_to_ptr.vmem [resolvable:$true] %s84
      %90 = dma.hbm_to_vmem [thread:$0]  %s4, 384, %s85, [#allocation10], 128, 128, 8
    $region21: #{hgin_forward.9} parent=1 // pred_fallthru
      _
    // Predicated region
    $region22: #{hgin_forward.9} parent=1 // pred_check
      _
    $region23: #{hgin_forward.9} parent=1 // pred_check_branch
      %92 = sbr.rel (0) target = $region25
    $region24: #{hgin_forward.9} parent=1 // pred_region
      %s94 = ssub.s32 512, 512
      %95 = vsyncadd [#allocation13], %s94
      %s96 = sshll.u32 [#allocation12], 4
      %s97 = int_to_ptr.vmem [resolvable:$true] %s96
      %102 = dma.hbm_to_vmem [thread:$0]  %s5, 512, %s97, [#allocation13], 128, 128, 8
    $region25: #{hgin_forward.9} parent=1 // pred_fallthru
      _
    // Predicated region
    $region26: #{hgin_forward.9} parent=1 // pred_check
      _
    $region27: #{hgin_forward.9} parent=1 // pred_check_branch
      %104 = sbr.rel (0) target = $region29
    $region28: #{hgin_forward.9} parent=1 // pred_region
      %s106 = ssub.s32 16, 16
      %107 = vsyncadd [#allocation13], %s106
      %s109 = sshll.u32 [#allocation14], 4
      %s110 = int_to_ptr.vmem [resolvable:$true] %s109
      %112 = dma.hbm_to_vmem [thread:$0]  %s6, 16, %s110, [#allocation13]
    $region29: #{hgin_forward.9} parent=1 // pred_fallthru
      _
    // Predicated region
    $region30: #{hgin_forward.9} parent=1 // pred_check
      _
    $region31: #{hgin_forward.9} parent=1 // pred_check_branch
      %114 = sbr.rel (0) target = $region33
    $region32: #{hgin_forward.9} parent=1 // pred_region
      _
    $region33: #{hgin_forward.9} parent=1 // pred_fallthru
      _
    // Predicated region
    $region34: #{hgin_forward.9} parent=1 // pred_check
      _
    $region35: #{hgin_forward.9} parent=1 // pred_check_branch
      %116 = sbr.rel (0) target = $region37
    $region36: #{hgin_forward.9} parent=1 // pred_region
      %s118 = ssub.s32 512, 512
      %119 = vsyncadd [#allocation16], %s118
      %s120 = sshll.u32 [#allocation15], 4
      %s121 = int_to_ptr.vmem [resolvable:$true] %s120
      %126 = dma.hbm_to_vmem [thread:$0]  %s8, 512, %s121, [#allocation16], 128, 128, 8
    $region37: #{hgin_forward.9} parent=1 // pred_fallthru
      _
    // Predicated region
    $region38: #{hgin_forward.9} parent=1 // pred_check
      _
    $region39: #{hgin_forward.9} parent=1 // pred_check_branch
      %128 = sbr.rel (0) target = $region41
    $region40: #{hgin_forward.9} parent=1 // pred_region
      %s130 = ssub.s32 16, 16
      %131 = vsyncadd [#allocation16], %s130
      %s133 = sshll.u32 [#allocation17], 4
      %s134 = int_to_ptr.vmem [resolvable:$true] %s133
      %136 = dma.hbm_to_vmem [thread:$0]  %s9, 16, %s134, [#allocation16]
    $region41: #{hgin_forward.9} parent=1 // pred_fallthru
      _
    // Predicated region
    $region42: #{hgin_forward.9} parent=1 // pred_check
      _
    $region43: #{hgin_forward.9} parent=1 // pred_check_branch
      %138 = sbr.rel (0) target = $region45
    $region44: #{hgin_forward.9} parent=1 // pred_region
      %s140 = ssub.s32 16, 16
      %141 = vsyncadd [#allocation19], %s140
      %s143 = sshll.u32 [#allocation18], 4
      %s144 = int_to_ptr.vmem [resolvable:$true] %s143
      %146 = dma.hbm_to_vmem [thread:$0]  %s10, 16, %s144, [#allocation19]
    $region45: #{hgin_forward.9} parent=1 // pred_fallthru
      _
    // Predicated region
    $region46: #{hgin_forward.9} parent=1 // pred_check
      _
    $region47: #{hgin_forward.9} parent=1 // pred_check_branch
      %148 = sbr.rel (0) target = $region49
    $region48: #{hgin_forward.9} parent=1 // pred_region
      %s150 = ssub.s32 16, 16
      %151 = vsyncadd [#allocation19], %s150
      %s153 = sshll.u32 [#allocation20], 4
      %s154 = int_to_ptr.vmem [resolvable:$true] %s153
      %156 = dma.hbm_to_vmem [thread:$0]  %s11, 16, %s154, [#allocation19]
    $region49: #{hgin_forward.9} parent=1 // pred_fallthru
      _
    // Predicated region
    $region50: #{hgin_forward.9} parent=1 // pred_check
      _
    $region51: #{hgin_forward.9} parent=1 // pred_check_branch
      %158 = sbr.rel (0) target = $region53
    $region52: #{hgin_forward.9} parent=1 // pred_region
      %s160 = ssub.s32 16, 16
      %161 = vsyncadd [#allocation22], %s160
      %s163 = sshll.u32 [#allocation21], 4
      %s164 = int_to_ptr.vmem [resolvable:$true] %s163
      %166 = dma.hbm_to_vmem [thread:$0]  %s12, 16, %s164, [#allocation22]
    $region53: #{hgin_forward.9} parent=1 // pred_fallthru
      _
    // Predicated region
    $region54: #{hgin_forward.9} parent=1 // pred_check
      _
    $region55: #{hgin_forward.9} parent=1 // pred_check_branch
      %168 = sbr.rel (0) target = $region57
    $region56: #{hgin_forward.9} parent=1 // pred_region
      %s170 = ssub.s32 16, 16
      %171 = vsyncadd [#allocation22], %s170
      %s173 = sshll.u32 [#allocation23], 4
      %s174 = int_to_ptr.vmem [resolvable:$true] %s173
      %176 = dma.hbm_to_vmem [thread:$0]  %s13, 16, %s174, [#allocation22]
    $region57: #{hgin_forward.9} parent=1 // pred_fallthru
      _
    // Predicated region
    $region58: #{hgin_forward.9} parent=1 // pred_check
      _
    $region59: #{hgin_forward.9} parent=1 // pred_check_branch
      %178 = sbr.rel (0) target = $region61
    $region60: #{hgin_forward.9} parent=1 // pred_region
      %s180 = ssub.s32 512, 512
      %181 = vsyncadd [#allocation25], %s180
      %s182 = sshll.u32 [#allocation24], 4
      %s183 = int_to_ptr.vmem [resolvable:$true] %s182
      %188 = dma.hbm_to_vmem [thread:$0]  %s14, 512, %s183, [#allocation25], 128, 128, 8
    $region61: #{hgin_forward.9} parent=1 // pred_fallthru
      _
    // Predicated region
    $region62: #{hgin_forward.9} parent=1 // pred_check
      _
    $region63: #{hgin_forward.9} parent=1 // pred_check_branch
      %190 = sbr.rel (0) target = $region65
    $region64: #{hgin_forward.9} parent=1 // pred_region
      %s192 = ssub.s32 16, 16
      %193 = vsyncadd [#allocation25], %s192
      %s195 = sshll.u32 [#allocation26], 4
      %s196 = int_to_ptr.vmem [resolvable:$true] %s195
      %198 = dma.hbm_to_vmem [thread:$0]  %s15, 16, %s196, [#allocation25]
    $region65: #{hgin_forward.9} parent=1 // pred_fallthru
      _
    // Predicated region
    $region66: #{hgin_forward.9} parent=1 // pred_check
      _
    $region67: #{hgin_forward.9} parent=1 // pred_check_branch
      %200 = sbr.rel (0) target = $region69
    $region68: #{hgin_forward.9} parent=1 // pred_region
      %201 = dma.done [#allocation4], 384
    $region69: #{hgin_forward.9} parent=1 // pred_fallthru
      _
    // Predicated region
    $region70: #{hgin_forward.9} parent=1 // pred_check
      _
    $region71: #{hgin_forward.9} parent=1 // pred_check_branch
      %203 = sbr.rel (0) target = $region73
    $region72: #{hgin_forward.9} parent=1 // pred_region
      %204 = dma.done [#allocation7], 256
    $region73: #{hgin_forward.9} parent=1 // pred_fallthru
      _
    // Predicated region
    $region74: #{hgin_forward.9} parent=1 // pred_check
      _
    $region75: #{hgin_forward.9} parent=1 // pred_check_branch
      %206 = sbr.rel (0) target = $region77
    $region76: #{hgin_forward.9} parent=1 // pred_region
      %207 = dma.done [#allocation7], 384
    $region77: #{hgin_forward.9} parent=1 // pred_fallthru
      _
    // Predicated region
    $region78: #{hgin_forward.9} parent=1 // pred_check
      _
    $region79: #{hgin_forward.9} parent=1 // pred_check_branch
      %209 = sbr.rel (0) target = $region81
    $region80: #{hgin_forward.9} parent=1 // pred_region
      %210 = dma.done [#allocation10], 256
    $region81: #{hgin_forward.9} parent=1 // pred_fallthru
      _
    // Predicated region
    $region82: #{hgin_forward.9} parent=1 // pred_check
      _
    $region83: #{hgin_forward.9} parent=1 // pred_check_branch
      %212 = sbr.rel (0) target = $region85
    $region84: #{hgin_forward.9} parent=1 // pred_region
      %213 = dma.done [#allocation10], 384
    $region85: #{hgin_forward.9} parent=1 // pred_fallthru
      _
    // Predicated region
    $region86: #{hgin_forward.9} parent=1 // pred_check
      _
    $region87: #{hgin_forward.9} parent=1 // pred_check_branch
      %215 = sbr.rel (0) target = $region89
    $region88: #{hgin_forward.9} parent=1 // pred_region
      %216 = dma.done [#allocation13], 512
    $region89: #{hgin_forward.9} parent=1 // pred_fallthru
      _
    // Predicated region
    $region90: #{hgin_forward.9} parent=1 // pred_check
      _
    $region91: #{hgin_forward.9} parent=1 // pred_check_branch
      %218 = sbr.rel (0) target = $region93
    $region92: #{hgin_forward.9} parent=1 // pred_region
      %219 = dma.done [#allocation13], 16
    $region93: #{hgin_forward.9} parent=1 // pred_fallthru
      _
    // Predicated region
    $region94: #{hgin_forward.9} parent=1 // pred_check
      _
    $region95: #{hgin_forward.9} parent=1 // pred_check_branch
      %221 = sbr.rel (0) target = $region97
    $region96: #{hgin_forward.9} parent=1 // pred_region
      %222 = dma.done [#allocation16], 512
    $region97: #{hgin_forward.9} parent=1 // pred_fallthru
      _
    // Predicated region
    $region98: #{hgin_forward.9} parent=1 // pred_check
      _
    $region99: #{hgin_forward.9} parent=1 // pred_check_branch
      %224 = sbr.rel (0) target = $region101
    $region100: #{hgin_forward.9} parent=1 // pred_region
      %225 = dma.done [#allocation16], 16
    $region101: #{hgin_forward.9} parent=1 // pred_fallthru
      _
    // Predicated region
    $region102: #{hgin_forward.9} parent=1 // pred_check
      _
    $region103: #{hgin_forward.9} parent=1 // pred_check_branch
      %227 = sbr.rel (0) target = $region105
    $region104: #{hgin_forward.9} parent=1 // pred_region
      %228 = dma.done [#allocation19], 16
    $region105: #{hgin_forward.9} parent=1 // pred_fallthru
      _
    // Predicated region
    $region106: #{hgin_forward.9} parent=1 // pred_check
      _
    $region107: #{hgin_forward.9} parent=1 // pred_check_branch
      %230 = sbr.rel (0) target = $region109
    $region108: #{hgin_forward.9} parent=1 // pred_region
      %231 = dma.done [#allocation19], 16
    $region109: #{hgin_forward.9} parent=1 // pred_fallthru
      _
    // Predicated region
    $region110: #{hgin_forward.9} parent=1 // pred_check
      _
    $region111: #{hgin_forward.9} parent=1 // pred_check_branch
      %233 = sbr.rel (0) target = $region113
    $region112: #{hgin_forward.9} parent=1 // pred_region
      %234 = dma.done [#allocation22], 16
    $region113: #{hgin_forward.9} parent=1 // pred_fallthru
      _
    // Predicated region
    $region114: #{hgin_forward.9} parent=1 // pred_check
      _
    $region115: #{hgin_forward.9} parent=1 // pred_check_branch
      %236 = sbr.rel (0) target = $region117
    $region116: #{hgin_forward.9} parent=1 // pred_region
      %237 = dma.done [#allocation22], 16
    $region117: #{hgin_forward.9} parent=1 // pred_fallthru
      _
    // Predicated region
    $region118: #{hgin_forward.9} parent=1 // pred_check
      _
    $region119: #{hgin_forward.9} parent=1 // pred_check_branch
      %239 = sbr.rel (0) target = $region121
    $region120: #{hgin_forward.9} parent=1 // pred_region
      %240 = dma.done [#allocation25], 512
    $region121: #{hgin_forward.9} parent=1 // pred_fallthru
      _
    // Predicated region
    $region122: #{hgin_forward.9} parent=1 // pred_check
      _
    $region123: #{hgin_forward.9} parent=1 // pred_check_branch
      %242 = sbr.rel (0) target = $region125
    $region124: #{hgin_forward.9} parent=1 // pred_region
      %243 = dma.done [#allocation25], 16
    $region125: #{hgin_forward.9} parent=1 // pred_fallthru
      _
    %v244 = vld [vmem:[#allocation6] sm:$0xff]
    %v245 = vld [vmem:[#allocation6 + $0x8] sm:$0xff]
    %v246 = vld [vmem:[#allocation3] sm:$0xff]
    %v247 = vld [vmem:[#allocation3 + $0x8] sm:$0xff]
    %v248 = vld [vmem:[#allocation3 + $0x10] sm:$0xff]
    %v249 = vld [vmem:[#allocation9] sm:$0xff]
    %v250 = vld [vmem:[#allocation9 + $0x8] sm:$0xff]
    %v251 = vld [vmem:[#allocation8] sm:$0xff]
    %v252 = vld [vmem:[#allocation8 + $0x8] sm:$0xff]
    %v253 = vld [vmem:[#allocation8 + $0x10] sm:$0xff]
    %vm254 = vcmask 130048
    %v256 = vsel %vm254, %v251, 0
    %v259 = vsel %vm254, %v252, 0
    %v262 = vsel %vm254, %v253, 0
    %264 = vmatprep.subr.mxu0 0.0
    %265 = vmatpush1.msra.mxu0 %v249
    %266 = vmatprep.subr.mxu0 0.0
    %267 = vmatpush1.msra.mxu0 %v250
    %268 = vmatprep.subr.mxu0 0.0
    %269 = vmatpush1.msra.mxu0 0.0
    %270 = vmatprep.subr.mxu0 0.0
    %271 = vmatpush1.msra.mxu0 0.0
    %272 = vmatprep.subr.mxu0 0.0
    %273 = vmatpush1.msra.mxu0 0.0
    %274 = vmatprep.subr.mxu0 0.0
    %275 = vmatpush1.msra.mxu0 0.0
    %276 = vmatprep.subr.mxu0 0.0
    %277 = vmatpush1.msra.mxu0 0.0
    %278 = vmatprep.subr.mxu0 0.0
    %279 = vmatpush1.msra.mxu0 0.0
    %280 = vmatprep.subr.mxu0 0.0
    %281 = vmatpush1.msra.mxu0 0.0
    %282 = vmatprep.subr.mxu0 0.0
    %283 = vmatpush1.msra.mxu0 0.0
    %284 = vmatprep.subr.mxu0 0.0
    %285 = vmatpush1.msra.mxu0 0.0
    %286 = vmatprep.subr.mxu0 0.0
    %287 = vmatpush1.msra.mxu0 0.0
    %288 = vmatprep.subr.mxu0 0.0
    %289 = vmatpush1.msra.mxu0 0.0
    %290 = vmatprep.subr.mxu0 0.0
    %291 = vmatpush1.msra.mxu0 0.0
    %292 = vmatprep.subr.mxu0 0.0
    %293 = vmatpush1.msra.mxu0 0.0
    %294 = vmatprep.subr.mxu0 0.0
    %295 = vmatpush1.msra.mxu0 0.0
    %296 = vmatprep.subr.mxu0 0.0
    %297 = vmatpush1.msra.mxu0 0.0
    %298 = vmatprep.subr.mxu0 0.0
    %299 = vmatpush1.msra.mxu0 0.0
    %300 = vmatprep.subr.mxu0 0.0
    %301 = vmatpush1.msra.mxu0 0.0
    %302 = vmatprep.subr.mxu0 0.0
    %303 = vmatpush1.msra.mxu0 0.0
    %304 = vmatprep.subr.mxu0 0.0
    %305 = vmatpush1.msra.mxu0 0.0
    %306 = vmatprep.subr.mxu0 0.0
    %307 = vmatpush1.msra.mxu0 0.0
    %308 = vmatprep.subr.mxu0 0.0
    %309 = vmatpush1.msra.mxu0 0.0
    %310 = vmatprep.subr.mxu0 0.0
    %311 = vmatpush1.msra.mxu0 0.0
    %312 = vmatprep.subr.mxu0 0.0
    %313 = vmatpush1.msra.mxu0 0.0
    %314 = vmatprep.subr.mxu0 0.0
    %315 = vmatpush1.msra.mxu0 0.0
    %316 = vmatprep.subr.mxu0 0.0
    %317 = vmatpush1.msra.mxu0 0.0
    %318 = vmatprep.subr.mxu0 0.0
    %319 = vmatpush1.msra.mxu0 0.0
    %320 = vmatprep.subr.mxu0 0.0
    %321 = vmatpush1.msra.mxu0 0.0
    %322 = vmatprep.subr.mxu0 0.0
    %323 = vmatpush1.msra.mxu0 0.0
    %324 = vmatprep.subr.mxu0 0.0
    %325 = vmatpush1.msra.mxu0 0.0
    %326 = vmatprep.subr.mxu0 0.0
    %327 = vmatpush1.msra.mxu0 0.0
    %328 = vmatprep.mubr.f32.mxu0 0.0
    %329 = vmatmul.mubr.f32.gmra.mrb[0].mxu0 %v256
    %v330 = vpop.f32.mrb[0].mxu0
    %v331 = vadd.f32 0.0, %v330
    %v332 = vpop.f32.mrb[0].mxu0
    %333 = vmatprep.mubr.f32.mxu0 0.0
    %334 = vmatmul.mubr.f32.gmra.mrb[0].mxu0 %v259
    %v335 = vpop.f32.mrb[0].mxu0
    %v336 = vadd.f32 0.0, %v335
    %v337 = vpop.f32.mrb[0].mxu0
    %338 = vmatprep.mubr.f32.mxu0 0.0
    %339 = vmatmul.mubr.f32.gmra.mrb[0].mxu0 %v262
    %v340 = vpop.f32.mrb[0].mxu0
    %v341 = vadd.f32 0.0, %v340
    %v342 = vpop.f32.mrb[0].mxu0
    %343 = vdwg.mxu0
    %v345 = vsel %vm254, %v246, 0
    %v348 = vsel %vm254, %v247, 0
    %v351 = vsel %vm254, %v248, 0
    %353 = vmatprep.subr.mxu0 0.0
    %354 = vmatpush1.msra.mxu0 %v244
    %355 = vmatprep.subr.mxu0 0.0
    %356 = vmatpush1.msra.mxu0 %v245
    %357 = vmatprep.subr.mxu0 0.0
    %358 = vmatpush1.msra.mxu0 0.0
    %359 = vmatprep.subr.mxu0 0.0
    %360 = vmatpush1.msra.mxu0 0.0
    %361 = vmatprep.subr.mxu0 0.0
    %362 = vmatpush1.msra.mxu0 0.0
    %363 = vmatprep.subr.mxu0 0.0
    %364 = vmatpush1.msra.mxu0 0.0
    %365 = vmatprep.subr.mxu0 0.0
    %366 = vmatpush1.msra.mxu0 0.0
    %367 = vmatprep.subr.mxu0 0.0
    %368 = vmatpush1.msra.mxu0 0.0
    %369 = vmatprep.subr.mxu0 0.0
    %370 = vmatpush1.msra.mxu0 0.0
    %371 = vmatprep.subr.mxu0 0.0
    %372 = vmatpush1.msra.mxu0 0.0
    %373 = vmatprep.subr.mxu0 0.0
    %374 = vmatpush1.msra.mxu0 0.0
    %375 = vmatprep.subr.mxu0 0.0
    %376 = vmatpush1.msra.mxu0 0.0
    %377 = vmatprep.subr.mxu0 0.0
    %378 = vmatpush1.msra.mxu0 0.0
    %379 = vmatprep.subr.mxu0 0.0
    %380 = vmatpush1.msra.mxu0 0.0
    %381 = vmatprep.subr.mxu0 0.0
    %382 = vmatpush1.msra.mxu0 0.0
    %383 = vmatprep.subr.mxu0 0.0
    %384 = vmatpush1.msra.mxu0 0.0
    %385 = vmatprep.subr.mxu0 0.0
    %386 = vmatpush1.msra.mxu0 0.0
    %387 = vmatprep.subr.mxu0 0.0
    %388 = vmatpush1.msra.mxu0 0.0
    %389 = vmatprep.subr.mxu0 0.0
    %390 = vmatpush1.msra.mxu0 0.0
    %391 = vmatprep.subr.mxu0 0.0
    %392 = vmatpush1.msra.mxu0 0.0
    %393 = vmatprep.subr.mxu0 0.0
    %394 = vmatpush1.msra.mxu0 0.0
    %395 = vmatprep.subr.mxu0 0.0
    %396 = vmatpush1.msra.mxu0 0.0
    %397 = vmatprep.subr.mxu0 0.0
    %398 = vmatpush1.msra.mxu0 0.0
    %399 = vmatprep.subr.mxu0 0.0
    %400 = vmatpush1.msra.mxu0 0.0
    %401 = vmatprep.subr.mxu0 0.0
    %402 = vmatpush1.msra.mxu0 0.0
    %403 = vmatprep.subr.mxu0 0.0
    %404 = vmatpush1.msra.mxu0 0.0
    %405 = vmatprep.subr.mxu0 0.0
    %406 = vmatpush1.msra.mxu0 0.0
    %407 = vmatprep.subr.mxu0 0.0
    %408 = vmatpush1.msra.mxu0 0.0
    %409 = vmatprep.subr.mxu0 0.0
    %410 = vmatpush1.msra.mxu0 0.0
    %411 = vmatprep.subr.mxu0 0.0
    %412 = vmatpush1.msra.mxu0 0.0
    %413 = vmatprep.subr.mxu0 0.0
    %414 = vmatpush1.msra.mxu0 0.0
    %415 = vmatprep.subr.mxu0 0.0
    %416 = vmatpush1.msra.mxu0 0.0
    %417 = vmatprep.mubr.f32.mxu0 0.0
    %418 = vmatmul.mubr.f32.gmra.mrb[0].mxu0 %v345
    %v419 = vpop.f32.mrb[0].mxu0
    %v420 = vadd.f32 %v331, %v419
    %v421 = vpop.f32.mrb[0].mxu0
    %422 = vmatprep.mubr.f32.mxu0 0.0
    %423 = vmatmul.mubr.f32.gmra.mrb[0].mxu0 %v348
    %v424 = vpop.f32.mrb[0].mxu0
    %v425 = vadd.f32 %v336, %v424
    %v426 = vpop.f32.mrb[0].mxu0
    %427 = vmatprep.mubr.f32.mxu0 0.0
    %428 = vmatmul.mubr.f32.gmra.mrb[0].mxu0 %v351
    %v429 = vpop.f32.mrb[0].mxu0
    %v430 = vadd.f32 %v341, %v429
    %v431 = vpop.f32.mrb[0].mxu0
    %432 = vdwg.mxu0
    %v433 = vld [vmem:[#allocation11] sm:$0xff]
    %v434 = vld [vmem:[#allocation11 + $0x8] sm:$0xff]
    %v435 = vld [vmem:[#allocation11 + $0x10] sm:$0xff]
    %v436 = vld [vmem:[#allocation12] sm:$0xff]
    %v437 = vld [vmem:[#allocation12 + $0x8] sm:$0xff]
    %v438 = vld [vmem:[#allocation12 + $0x10] sm:$0xff]
    %v439 = vld [vmem:[#allocation12 + $0x18] sm:$0xff]
    %v440 = vld [vmem:[#allocation14] sm:$0x1]
    %v442 = vlaneseq
    %v443 = vshrl.u32 %v442, 7
    %v444 = vsub.s32 0, %v443
    %v445 = vrot.slane %v440, %v444
    %vm447 = vcmask 261120
    %v449 = vsel %vm447, %v433, 0
    %v452 = vsel %vm447, %v434, 0
    %v455 = vsel %vm447, %v435, 0
    %457 = vmatprep.subr.mxu0 0.0
    %458 = vmatpush1.msra.mxu0 %v436
    %459 = vmatprep.subr.mxu0 0.0
    %460 = vmatpush1.msra.mxu0 %v437
    %461 = vmatprep.subr.mxu0 0.0
    %462 = vmatpush1.msra.mxu0 %v438
    %463 = vmatprep.subr.mxu0 0.0
    %464 = vmatpush1.msra.mxu0 %v439
    %465 = vmatprep.subr.mxu0 0.0
    %466 = vmatpush1.msra.mxu0 0.0
    %467 = vmatprep.subr.mxu0 0.0
    %468 = vmatpush1.msra.mxu0 0.0
    %469 = vmatprep.subr.mxu0 0.0
    %470 = vmatpush1.msra.mxu0 0.0
    %471 = vmatprep.subr.mxu0 0.0
    %472 = vmatpush1.msra.mxu0 0.0
    %473 = vmatprep.subr.mxu0 0.0
    %474 = vmatpush1.msra.mxu0 0.0
    %475 = vmatprep.subr.mxu0 0.0
    %476 = vmatpush1.msra.mxu0 0.0
    %477 = vmatprep.subr.mxu0 0.0
    %478 = vmatpush1.msra.mxu0 0.0
    %479 = vmatprep.subr.mxu0 0.0
    %480 = vmatpush1.msra.mxu0 0.0
    %481 = vmatprep.subr.mxu0 0.0
    %482 = vmatpush1.msra.mxu0 0.0
    %483 = vmatprep.subr.mxu0 0.0
    %484 = vmatpush1.msra.mxu0 0.0
    %485 = vmatprep.subr.mxu0 0.0
    %486 = vmatpush1.msra.mxu0 0.0
    %487 = vmatprep.subr.mxu0 0.0
    %488 = vmatpush1.msra.mxu0 0.0
    %489 = vmatprep.subr.mxu0 0.0
    %490 = vmatpush1.msra.mxu0 0.0
    %491 = vmatprep.subr.mxu0 0.0
    %492 = vmatpush1.msra.mxu0 0.0
    %493 = vmatprep.subr.mxu0 0.0
    %494 = vmatpush1.msra.mxu0 0.0
    %495 = vmatprep.subr.mxu0 0.0
    %496 = vmatpush1.msra.mxu0 0.0
    %497 = vmatprep.subr.mxu0 0.0
    %498 = vmatpush1.msra.mxu0 0.0
    %499 = vmatprep.subr.mxu0 0.0
    %500 = vmatpush1.msra.mxu0 0.0
    %501 = vmatprep.subr.mxu0 0.0
    %502 = vmatpush1.msra.mxu0 0.0
    %503 = vmatprep.subr.mxu0 0.0
    %504 = vmatpush1.msra.mxu0 0.0
    %505 = vmatprep.subr.mxu0 0.0
    %506 = vmatpush1.msra.mxu0 0.0
    %507 = vmatprep.subr.mxu0 0.0
    %508 = vmatpush1.msra.mxu0 0.0
    %509 = vmatprep.subr.mxu0 0.0
    %510 = vmatpush1.msra.mxu0 0.0
    %511 = vmatprep.subr.mxu0 0.0
    %512 = vmatpush1.msra.mxu0 0.0
    %513 = vmatprep.subr.mxu0 0.0
    %514 = vmatpush1.msra.mxu0 0.0
    %515 = vmatprep.subr.mxu0 0.0
    %516 = vmatpush1.msra.mxu0 0.0
    %517 = vmatprep.subr.mxu0 0.0
    %518 = vmatpush1.msra.mxu0 0.0
    %519 = vmatprep.subr.mxu0 0.0
    %520 = vmatpush1.msra.mxu0 0.0
    %521 = vmatprep.mubr.f32.mxu0 0.0
    %522 = vmatmul.mubr.f32.gmra.mrb[0].mxu0 %v449
    %v523 = vpop.f32.mrb[0].mxu0
    %v524 = vadd.f32 %v445, %v523
    %v525 = vpop.f32.mrb[0].mxu0
    %526 = vmatprep.mubr.f32.mxu0 0.0
    %527 = vmatmul.mubr.f32.gmra.mrb[0].mxu0 %v452
    %v528 = vpop.f32.mrb[0].mxu0
    %v529 = vadd.f32 %v445, %v528
    %v530 = vpop.f32.mrb[0].mxu0
    %531 = vmatprep.mubr.f32.mxu0 0.0
    %532 = vmatmul.mubr.f32.gmra.mrb[0].mxu0 %v455
    %v533 = vpop.f32.mrb[0].mxu0
    %v534 = vadd.f32 %v445, %v533
    %v535 = vpop.f32.mrb[0].mxu0
    %536 = vdwg.mxu0
    %s537 = sld [smem:[#allocation2]]
    %s538 = sadd.f32 %s537, 1.0
    %v539 = vstv %s538
    %v540 = vmul.f32 %v539, %v524
    %v541 = vmul.f32 %v539, %v529
    %v542 = vmul.f32 %v539, %v534
    %v543 = vadd.f32 %v540, %v420
    %v544 = vadd.f32 %v541, %v425
    %v545 = vadd.f32 %v542, %v430
    %v546 = vld [vmem:[#allocation18] sm:$0x1]
    %v547 = vld [vmem:[#allocation23] sm:$0x1]
    %v548 = vadd.f32 %v547, 1e-05
    %v549 = vrsqrt.pop %v548
    %v550 = vmul.f32 %v546, %v549
    %v551 = vld [vmem:[#allocation20] sm:$0x1]
    %v552 = vld [vmem:[#allocation21] sm:$0x1]
    %v553 = vmul.f32 %v552, %v550
    %v554 = vsub.f32 %v551, %v553
    %v555 = vld [vmem:[#allocation15] sm:$0xff]
    %v556 = vld [vmem:[#allocation15 + $0x8] sm:$0xff]
    %v557 = vld [vmem:[#allocation15 + $0x10] sm:$0xff]
    %v558 = vld [vmem:[#allocation15 + $0x18] sm:$0xff]
    %v559 = vld [vmem:[#allocation17] sm:$0x1]
    %v561 = vlaneseq
    %v562 = vshrl.u32 %v561, 7
    %v563 = vsub.s32 0, %v562
    %v564 = vrot.slane %v559, %v563
    %v567 = vsel %vm447, %v543, 0
    %v570 = vsel %vm447, %v544, 0
    %v573 = vsel %vm447, %v545, 0
    %575 = vmatprep.subr.mxu0 0.0
    %576 = vmatpush1.msra.mxu0 %v555
    %577 = vmatprep.subr.mxu0 0.0
    %578 = vmatpush1.msra.mxu0 %v556
    %579 = vmatprep.subr.mxu0 0.0
    %580 = vmatpush1.msra.mxu0 %v557
    %581 = vmatprep.subr.mxu0 0.0
    %582 = vmatpush1.msra.mxu0 %v558
    %583 = vmatprep.subr.mxu0 0.0
    %584 = vmatpush1.msra.mxu0 0.0
    %585 = vmatprep.subr.mxu0 0.0
    %586 = vmatpush1.msra.mxu0 0.0
    %587 = vmatprep.subr.mxu0 0.0
    %588 = vmatpush1.msra.mxu0 0.0
    %589 = vmatprep.subr.mxu0 0.0
    %590 = vmatpush1.msra.mxu0 0.0
    %591 = vmatprep.subr.mxu0 0.0
    %592 = vmatpush1.msra.mxu0 0.0
    %593 = vmatprep.subr.mxu0 0.0
    %594 = vmatpush1.msra.mxu0 0.0
    %595 = vmatprep.subr.mxu0 0.0
    %596 = vmatpush1.msra.mxu0 0.0
    %597 = vmatprep.subr.mxu0 0.0
    %598 = vmatpush1.msra.mxu0 0.0
    %599 = vmatprep.subr.mxu0 0.0
    %600 = vmatpush1.msra.mxu0 0.0
    %601 = vmatprep.subr.mxu0 0.0
    %602 = vmatpush1.msra.mxu0 0.0
    %603 = vmatprep.subr.mxu0 0.0
    %604 = vmatpush1.msra.mxu0 0.0
    %605 = vmatprep.subr.mxu0 0.0
    %606 = vmatpush1.msra.mxu0 0.0
    %607 = vmatprep.subr.mxu0 0.0
    %608 = vmatpush1.msra.mxu0 0.0
    %609 = vmatprep.subr.mxu0 0.0
    %610 = vmatpush1.msra.mxu0 0.0
    %611 = vmatprep.subr.mxu0 0.0
    %612 = vmatpush1.msra.mxu0 0.0
    %613 = vmatprep.subr.mxu0 0.0
    %614 = vmatpush1.msra.mxu0 0.0
    %615 = vmatprep.subr.mxu0 0.0
    %616 = vmatpush1.msra.mxu0 0.0
    %617 = vmatprep.subr.mxu0 0.0
    %618 = vmatpush1.msra.mxu0 0.0
    %619 = vmatprep.subr.mxu0 0.0
    %620 = vmatpush1.msra.mxu0 0.0
    %621 = vmatprep.subr.mxu0 0.0
    %622 = vmatpush1.msra.mxu0 0.0
    %623 = vmatprep.subr.mxu0 0.0
    %624 = vmatpush1.msra.mxu0 0.0
    %625 = vmatprep.subr.mxu0 0.0
    %626 = vmatpush1.msra.mxu0 0.0
    %627 = vmatprep.subr.mxu0 0.0
    %628 = vmatpush1.msra.mxu0 0.0
    %629 = vmatprep.subr.mxu0 0.0
    %630 = vmatpush1.msra.mxu0 0.0
    %631 = vmatprep.subr.mxu0 0.0
    %632 = vmatpush1.msra.mxu0 0.0
    %633 = vmatprep.subr.mxu0 0.0
    %634 = vmatpush1.msra.mxu0 0.0
    %635 = vmatprep.subr.mxu0 0.0
    %636 = vmatpush1.msra.mxu0 0.0
    %637 = vmatprep.subr.mxu0 0.0
    %638 = vmatpush1.msra.mxu0 0.0
    %639 = vmatprep.mubr.f32.mxu0 0.0
    %640 = vmatmul.mubr.f32.gmra.mrb[0].mxu0 %v567
    %v641 = vpop.f32.mrb[0].mxu0
    %v642 = vadd.f32 %v564, %v641
    %v643 = vpop.f32.mrb[0].mxu0
    %644 = vmatprep.mubr.f32.mxu0 0.0
    %645 = vmatmul.mubr.f32.gmra.mrb[0].mxu0 %v570
    %v646 = vpop.f32.mrb[0].mxu0
    %v647 = vadd.f32 %v564, %v646
    %v648 = vpop.f32.mrb[0].mxu0
    %649 = vmatprep.mubr.f32.mxu0 0.0
    %650 = vmatmul.mubr.f32.gmra.mrb[0].mxu0 %v573
    %v651 = vpop.f32.mrb[0].mxu0
    %v652 = vadd.f32 %v564, %v651
    %v653 = vpop.f32.mrb[0].mxu0
    %654 = vdwg.mxu0
    %v656 = vlaneseq
    %v657 = vshrl.u32 %v656, 7
    %v658 = vsub.s32 0, %v657
    %v659 = vrot.slane %v550, %v658
    %v661 = vmul.f32 %v642, %v659
    %v662 = vmul.f32 %v647, %v659
    %v663 = vmul.f32 %v652, %v659
    %v665 = vlaneseq
    %v666 = vshrl.u32 %v665, 7
    %v667 = vsub.s32 0, %v666
    %v668 = vrot.slane %v554, %v667
    %v670 = vadd.f32 %v661, %v668
    %v671 = vadd.f32 %v662, %v668
    %v672 = vadd.f32 %v663, %v668
    %v673 = vmax.f32 %v670, 0.0
    %v674 = vmax.f32 %v671, 0.0
    %v675 = vmax.f32 %v672, 0.0
    %v676 = vld [vmem:[#allocation24] sm:$0xff]
    %v677 = vld [vmem:[#allocation24 + $0x8] sm:$0xff]
    %v678 = vld [vmem:[#allocation24 + $0x10] sm:$0xff]
    %v679 = vld [vmem:[#allocation24 + $0x18] sm:$0xff]
    %v680 = vld [vmem:[#allocation26] sm:$0x1]
    %v682 = vlaneseq
    %v683 = vshrl.u32 %v682, 7
    %v684 = vsub.s32 0, %v683
    %v685 = vrot.slane %v680, %v684
    %v688 = vsel %vm447, %v673, 0
    %v691 = vsel %vm447, %v674, 0
    %v694 = vsel %vm447, %v675, 0
    %696 = vmatprep.subr.mxu0 0.0
    %697 = vmatpush1.msra.mxu0 %v676
    %698 = vmatprep.subr.mxu0 0.0
    %699 = vmatpush1.msra.mxu0 %v677
    %700 = vmatprep.subr.mxu0 0.0
    %701 = vmatpush1.msra.mxu0 %v678
    %702 = vmatprep.subr.mxu0 0.0
    %703 = vmatpush1.msra.mxu0 %v679
    %704 = vmatprep.subr.mxu0 0.0
    %705 = vmatpush1.msra.mxu0 0.0
    %706 = vmatprep.subr.mxu0 0.0
    %707 = vmatpush1.msra.mxu0 0.0
    %708 = vmatprep.subr.mxu0 0.0
    %709 = vmatpush1.msra.mxu0 0.0
    %710 = vmatprep.subr.mxu0 0.0
    %711 = vmatpush1.msra.mxu0 0.0
    %712 = vmatprep.subr.mxu0 0.0
    %713 = vmatpush1.msra.mxu0 0.0
    %714 = vmatprep.subr.mxu0 0.0
    %715 = vmatpush1.msra.mxu0 0.0
    %716 = vmatprep.subr.mxu0 0.0
    %717 = vmatpush1.msra.mxu0 0.0
    %718 = vmatprep.subr.mxu0 0.0
    %719 = vmatpush1.msra.mxu0 0.0
    %720 = vmatprep.subr.mxu0 0.0
    %721 = vmatpush1.msra.mxu0 0.0
    %722 = vmatprep.subr.mxu0 0.0
    %723 = vmatpush1.msra.mxu0 0.0
    %724 = vmatprep.subr.mxu0 0.0
    %725 = vmatpush1.msra.mxu0 0.0
    %726 = vmatprep.subr.mxu0 0.0
    %727 = vmatpush1.msra.mxu0 0.0
    %728 = vmatprep.subr.mxu0 0.0
    %729 = vmatpush1.msra.mxu0 0.0
    %730 = vmatprep.subr.mxu0 0.0
    %731 = vmatpush1.msra.mxu0 0.0
    %732 = vmatprep.subr.mxu0 0.0
    %733 = vmatpush1.msra.mxu0 0.0
    %734 = vmatprep.subr.mxu0 0.0
    %735 = vmatpush1.msra.mxu0 0.0
    %736 = vmatprep.subr.mxu0 0.0
    %737 = vmatpush1.msra.mxu0 0.0
    %738 = vmatprep.subr.mxu0 0.0
    %739 = vmatpush1.msra.mxu0 0.0
    %740 = vmatprep.subr.mxu0 0.0
    %741 = vmatpush1.msra.mxu0 0.0
    %742 = vmatprep.subr.mxu0 0.0
    %743 = vmatpush1.msra.mxu0 0.0
    %744 = vmatprep.subr.mxu0 0.0
    %745 = vmatpush1.msra.mxu0 0.0
    %746 = vmatprep.subr.mxu0 0.0
    %747 = vmatpush1.msra.mxu0 0.0
    %748 = vmatprep.subr.mxu0 0.0
    %749 = vmatpush1.msra.mxu0 0.0
    %750 = vmatprep.subr.mxu0 0.0
    %751 = vmatpush1.msra.mxu0 0.0
    %752 = vmatprep.subr.mxu0 0.0
    %753 = vmatpush1.msra.mxu0 0.0
    %754 = vmatprep.subr.mxu0 0.0
    %755 = vmatpush1.msra.mxu0 0.0
    %756 = vmatprep.subr.mxu0 0.0
    %757 = vmatpush1.msra.mxu0 0.0
    %758 = vmatprep.subr.mxu0 0.0
    %759 = vmatpush1.msra.mxu0 0.0
    %760 = vmatprep.mubr.f32.mxu0 0.0
    %761 = vmatmul.mubr.f32.gmra.mrb[0].mxu0 %v688
    %v762 = vpop.f32.mrb[0].mxu0
    %v763 = vadd.f32 %v685, %v762
    %v764 = vpop.f32.mrb[0].mxu0
    %765 = vmatprep.mubr.f32.mxu0 0.0
    %766 = vmatmul.mubr.f32.gmra.mrb[0].mxu0 %v691
    %v767 = vpop.f32.mrb[0].mxu0
    %v768 = vadd.f32 %v685, %v767
    %v769 = vpop.f32.mrb[0].mxu0
    %770 = vmatprep.mubr.f32.mxu0 0.0
    %771 = vmatmul.mubr.f32.gmra.mrb[0].mxu0 %v694
    %v772 = vpop.f32.mrb[0].mxu0
    %v773 = vadd.f32 %v685, %v772
    %v774 = vpop.f32.mrb[0].mxu0
    %775 = vdwg.mxu0
    %776 = vst.msk [vmem:[#allocation27] sm:$0xff] %vm447, %v763
    %777 = vst.msk [vmem:[#allocation27 + $0x8] sm:$0xff] %vm447, %v768
    %778 = vst.msk [vmem:[#allocation27 + $0x10] sm:$0xff] %vm447, %v773
    // Predicated region
    $region126: #{hgin_forward.9} parent=1 // pred_check
      _
    $region127: #{hgin_forward.9} parent=1 // pred_check_branch
      %780 = sbr.rel (0) target = $region129
    $region128: #{hgin_forward.9} parent=1 // pred_region
      %s782 = ssub.s32 384, 384
      %783 = vsyncadd [#allocation5], %s782
      %s784 = sshll.u32 [#allocation27], 4
      %s785 = int_to_ptr.vmem [resolvable:$true] %s784
      %790 = dma.vmem_to_hbm [thread:$0]  %s785, 384, %s16, [#allocation5], 128, 128, 8
    $region129: #{hgin_forward.9} parent=1 // pred_fallthru
      _
    // Predicated region
    $region130: #{hgin_forward.9} parent=1 // pred_check
      _
    $region131: #{hgin_forward.9} parent=1 // pred_check_branch
      %792 = sbr.rel (0) target = $region133
    $region132: #{hgin_forward.9} parent=1 // pred_region
      %793 = dma.done [#allocation5], 384
    $region133: #{hgin_forward.9} parent=1 // pred_fallthru
      _
    %794 = vsyncpa [#allocation4], 1
    %795 = vsyncpa [#allocation7], 1
    %796 = vsyncpa [#allocation10], 1
    %797 = vsyncpa [#allocation13], 1
    %798 = vsyncpa [#allocation16], 1
    %799 = vsyncpa [#allocation19], 1
    %800 = vsyncpa [#allocation22], 1
    %801 = vsyncpa [#allocation25], 1
    %802 = vsyncpa [#allocation5], 1

// kernel: hgin_forward.7
$region0: #{hgin_forward.7}
  #allocation0 [shape = 'u32[]', space=smem, size = 0x4, offset = 0x4, fixed_abs, tag = 'smem constant byte address 0x4 - core index']
  #allocation1 [shape = 'u32[144,128]{1,0:T(1,128)}', space=vmem, size = 0x12000, scoped, tag = 'internal scratch']
  #allocation2 [shape = 'f32[1,1]{1,0:T(1,128)S(6)}', space=smem, size = 0x200, scoped, tag = 'scoped memory for hgin_forward.7']
  %s0 = inlined_call_operand.hbm [shape: f32[16,24], index: 0, kind: input, shape index: {}]
  %s1 = inlined_call_operand.hbm [shape: f32[24,32], index: 1, kind: input, shape index: {}]
  %s2 = inlined_call_operand.hbm [shape: f32[16,32], index: 2, kind: input, shape index: {}]
  %s3 = inlined_call_operand.<no memory space> [shape: f32[1,1], index: 3, kind: input, shape index: {}]
  %s4 = inlined_call_operand.hbm [shape: f32[32,32], index: 4, kind: input, shape index: {}]
  %s5 = inlined_call_operand.hbm [shape: f32[1,32], index: 5, kind: input, shape index: {}]
  %s6 = inlined_call_operand.hbm [shape: f32[1,32], index: 6, kind: input, shape index: {}]
  %s7 = inlined_call_operand.hbm [shape: f32[1,32], index: 7, kind: input, shape index: {}]
  %s8 = inlined_call_operand.hbm [shape: f32[1,32], index: 8, kind: input, shape index: {}]
  %s9 = inlined_call_operand.hbm [shape: f32[1,32], index: 9, kind: input, shape index: {}]
  %s10 = inlined_call_operand.hbm [shape: f32[32,32], index: 10, kind: input, shape index: {}]
  %s11 = inlined_call_operand.hbm [shape: f32[1,32], index: 11, kind: input, shape index: {}]
  %s12 = inlined_call_operand.hbm [shape: f32[16,32], index: 12, kind: output, shape index: {}]
  %s13 = sld [smem:[#allocation0]]
  $region102: #{hgin_forward.7} parent=0
    _
  %s15 = ssub.s32 1, %s13
  %s16 = scalar_select 0, %s15, %s13
  %17 = sst [smem:[#allocation2]] %s3
  $region1: #{hgin_forward.7} parent=0
    #allocation3 [shape = 'u8[8192]{0}', space=vmem, size = 0x2000, scoped, tag = 'input window, operand 0, single buffered']
    #allocation4 [shape = 's32[1]{0}', space=sflag, size = 0x4, scoped, tag = 'scoped memory for hgin_forward.7']
    #allocation5 [shape = 's32[1]{0}', space=sflag, size = 0x4, scoped, tag = 'scoped memory for hgin_forward.7']
    #allocation6 [shape = 'u8[12288]{0}', space=vmem, size = 0x3000, scoped, tag = 'input window, operand 1, single buffered']
    #allocation7 [shape = 's32[1]{0}', space=sflag, size = 0x4, scoped, tag = 'scoped memory for hgin_forward.7']
    #allocation8 [shape = 'u8[8192]{0}', space=vmem, size = 0x2000, scoped, tag = 'input window, operand 2, single buffered']
    #allocation9 [shape = 'u8[16384]{0}', space=vmem, size = 0x4000, scoped, tag = 'input window, operand 4, single buffered']
    #allocation10 [shape = 's32[1]{0}', space=sflag, size = 0x4, scoped, tag = 'scoped memory for hgin_forward.7']
    #allocation11 [shape = 'u8[512]{0}', space=vmem, size = 0x400, scoped, tag = 'input window, operand 5, single buffered']
    #allocation12 [shape = 'u8[512]{0}', space=vmem, size = 0x400, scoped, tag = 'input window, operand 6, single buffered']
    #allocation13 [shape = 's32[1]{0}', space=sflag, size = 0x4, scoped, tag = 'scoped memory for hgin_forward.7']
    #allocation14 [shape = 'u8[512]{0}', space=vmem, size = 0x400, scoped, tag = 'input window, operand 7, single buffered']
    #allocation15 [shape = 'u8[512]{0}', space=vmem, size = 0x400, scoped, tag = 'input window, operand 8, single buffered']
    #allocation16 [shape = 's32[1]{0}', space=sflag, size = 0x4, scoped, tag = 'scoped memory for hgin_forward.7']
    #allocation17 [shape = 'u8[512]{0}', space=vmem, size = 0x400, scoped, tag = 'input window, operand 9, single buffered']
    #allocation18 [shape = 'u8[16384]{0}', space=vmem, size = 0x4000, scoped, tag = 'input window, operand 10, single buffered']
    #allocation19 [shape = 's32[1]{0}', space=sflag, size = 0x4, scoped, tag = 'scoped memory for hgin_forward.7']
    #allocation20 [shape = 'u8[512]{0}', space=vmem, size = 0x400, scoped, tag = 'input window, operand 11, single buffered']
    #allocation21 [shape = 'u8[8192]{0}', space=vmem, size = 0x2000, scoped, tag = 'output window, operand 0, single buffered']
    %18 = vsyncpa [#allocation4], 0
    %19 = vsyncpa [#allocation7], 0
    %20 = vsyncpa [#allocation10], 0
    %21 = vsyncpa [#allocation13], 0
    %22 = vsyncpa [#allocation16], 0
    %23 = vsyncpa [#allocation19], 0
    %24 = vsyncpa [#allocation5], 0
    // Predicated region
    $region2: #{hgin_forward.7} parent=1 // pred_check
      _
    $region3: #{hgin_forward.7} parent=1 // pred_check_branch
      %26 = sbr.rel (0) target = $region5
    $region4: #{hgin_forward.7} parent=1 // pred_region
      %s28 = ssub.s32 256, 256
      %29 = vsyncadd [#allocation4], %s28
      %s30 = sshll.u32 [#allocation3], 4
      %s31 = int_to_ptr.vmem [resolvable:$true] %s30
      %36 = dma.hbm_to_vmem [thread:$0]  %s0, 256, %s31, [#allocation4], 128, 128, 8
    $region5: #{hgin_forward.7} parent=1 // pred_fallthru
      _
    // Predicated region
    $region6: #{hgin_forward.7} parent=1 // pred_check
      _
    $region7: #{hgin_forward.7} parent=1 // pred_check_branch
      %38 = sbr.rel (0) target = $region9
    $region8: #{hgin_forward.7} parent=1 // pred_region
      %s40 = ssub.s32 384, 384
      %41 = vsyncadd [#allocation7], %s40
      %s42 = sshll.u32 [#allocation6], 4
      %s43 = int_to_ptr.vmem [resolvable:$true] %s42
      %48 = dma.hbm_to_vmem [thread:$0]  %s1, 384, %s43, [#allocation7], 128, 128, 8
    $region9: #{hgin_forward.7} parent=1 // pred_fallthru
      _
    // Predicated region
    $region10: #{hgin_forward.7} parent=1 // pred_check
      _
    $region11: #{hgin_forward.7} parent=1 // pred_check_branch
      %50 = sbr.rel (0) target = $region13
    $region12: #{hgin_forward.7} parent=1 // pred_region
      %s52 = ssub.s32 256, 256
      %53 = vsyncadd [#allocation7], %s52
      %s54 = sshll.u32 [#allocation8], 4
      %s55 = int_to_ptr.vmem [resolvable:$true] %s54
      %60 = dma.hbm_to_vmem [thread:$0]  %s2, 256, %s55, [#allocation7], 128, 128, 8
    $region13: #{hgin_forward.7} parent=1 // pred_fallthru
      _
    // Predicated region
    $region14: #{hgin_forward.7} parent=1 // pred_check
      _
    $region15: #{hgin_forward.7} parent=1 // pred_check_branch
      %62 = sbr.rel (0) target = $region17
    $region16: #{hgin_forward.7} parent=1 // pred_region
      _
    $region17: #{hgin_forward.7} parent=1 // pred_fallthru
      _
    // Predicated region
    $region18: #{hgin_forward.7} parent=1 // pred_check
      _
    $region19: #{hgin_forward.7} parent=1 // pred_check_branch
      %64 = sbr.rel (0) target = $region21
    $region20: #{hgin_forward.7} parent=1 // pred_region
      %s66 = ssub.s32 512, 512
      %67 = vsyncadd [#allocation10], %s66
      %s68 = sshll.u32 [#allocation9], 4
      %s69 = int_to_ptr.vmem [resolvable:$true] %s68
      %74 = dma.hbm_to_vmem [thread:$0]  %s4, 512, %s69, [#allocation10], 128, 128, 8
    $region21: #{hgin_forward.7} parent=1 // pred_fallthru
      _
    // Predicated region
    $region22: #{hgin_forward.7} parent=1 // pred_check
      _
    $region23: #{hgin_forward.7} parent=1 // pred_check_branch
      %76 = sbr.rel (0) target = $region25
    $region24: #{hgin_forward.7} parent=1 // pred_region
      %s78 = ssub.s32 16, 16
      %79 = vsyncadd [#allocation10], %s78
      %s81 = sshll.u32 [#allocation11], 4
      %s82 = int_to_ptr.vmem [resolvable:$true] %s81
      %84 = dma.hbm_to_vmem [thread:$0]  %s5, 16, %s82, [#allocation10]
    $region25: #{hgin_forward.7} parent=1 // pred_fallthru
      _
    // Predicated region
    $region26: #{hgin_forward.7} parent=1 // pred_check
      _
    $region27: #{hgin_forward.7} parent=1 // pred_check_branch
      %86 = sbr.rel (0) target = $region29
    $region28: #{hgin_forward.7} parent=1 // pred_region
      %s88 = ssub.s32 16, 16
      %89 = vsyncadd [#allocation13], %s88
      %s91 = sshll.u32 [#allocation12], 4
      %s92 = int_to_ptr.vmem [resolvable:$true] %s91
      %94 = dma.hbm_to_vmem [thread:$0]  %s6, 16, %s92, [#allocation13]
    $region29: #{hgin_forward.7} parent=1 // pred_fallthru
      _
    // Predicated region
    $region30: #{hgin_forward.7} parent=1 // pred_check
      _
    $region31: #{hgin_forward.7} parent=1 // pred_check_branch
      %96 = sbr.rel (0) target = $region33
    $region32: #{hgin_forward.7} parent=1 // pred_region
      %s98 = ssub.s32 16, 16
      %99 = vsyncadd [#allocation13], %s98
      %s101 = sshll.u32 [#allocation14], 4
      %s102 = int_to_ptr.vmem [resolvable:$true] %s101
      %104 = dma.hbm_to_vmem [thread:$0]  %s7, 16, %s102, [#allocation13]
    $region33: #{hgin_forward.7} parent=1 // pred_fallthru
      _
    // Predicated region
    $region34: #{hgin_forward.7} parent=1 // pred_check
      _
    $region35: #{hgin_forward.7} parent=1 // pred_check_branch
      %106 = sbr.rel (0) target = $region37
    $region36: #{hgin_forward.7} parent=1 // pred_region
      %s108 = ssub.s32 16, 16
      %109 = vsyncadd [#allocation16], %s108
      %s111 = sshll.u32 [#allocation15], 4
      %s112 = int_to_ptr.vmem [resolvable:$true] %s111
      %114 = dma.hbm_to_vmem [thread:$0]  %s8, 16, %s112, [#allocation16]
    $region37: #{hgin_forward.7} parent=1 // pred_fallthru
      _
    // Predicated region
    $region38: #{hgin_forward.7} parent=1 // pred_check
      _
    $region39: #{hgin_forward.7} parent=1 // pred_check_branch
      %116 = sbr.rel (0) target = $region41
    $region40: #{hgin_forward.7} parent=1 // pred_region
      %s118 = ssub.s32 16, 16
      %119 = vsyncadd [#allocation16], %s118
      %s121 = sshll.u32 [#allocation17], 4
      %s122 = int_to_ptr.vmem [resolvable:$true] %s121
      %124 = dma.hbm_to_vmem [thread:$0]  %s9, 16, %s122, [#allocation16]
    $region41: #{hgin_forward.7} parent=1 // pred_fallthru
      _
    // Predicated region
    $region42: #{hgin_forward.7} parent=1 // pred_check
      _
    $region43: #{hgin_forward.7} parent=1 // pred_check_branch
      %126 = sbr.rel (0) target = $region45
    $region44: #{hgin_forward.7} parent=1 // pred_region
      %s128 = ssub.s32 512, 512
      %129 = vsyncadd [#allocation19], %s128
      %s130 = sshll.u32 [#allocation18], 4
      %s131 = int_to_ptr.vmem [resolvable:$true] %s130
      %136 = dma.hbm_to_vmem [thread:$0]  %s10, 512, %s131, [#allocation19], 128, 128, 8
    $region45: #{hgin_forward.7} parent=1 // pred_fallthru
      _
    // Predicated region
    $region46: #{hgin_forward.7} parent=1 // pred_check
      _
    $region47: #{hgin_forward.7} parent=1 // pred_check_branch
      %138 = sbr.rel (0) target = $region49
    $region48: #{hgin_forward.7} parent=1 // pred_region
      %s140 = ssub.s32 16, 16
      %141 = vsyncadd [#allocation19], %s140
      %s143 = sshll.u32 [#allocation20], 4
      %s144 = int_to_ptr.vmem [resolvable:$true] %s143
      %146 = dma.hbm_to_vmem [thread:$0]  %s11, 16, %s144, [#allocation19]
    $region49: #{hgin_forward.7} parent=1 // pred_fallthru
      _
    // Predicated region
    $region50: #{hgin_forward.7} parent=1 // pred_check
      _
    $region51: #{hgin_forward.7} parent=1 // pred_check_branch
      %148 = sbr.rel (0) target = $region53
    $region52: #{hgin_forward.7} parent=1 // pred_region
      %149 = dma.done [#allocation4], 256
    $region53: #{hgin_forward.7} parent=1 // pred_fallthru
      _
    // Predicated region
    $region54: #{hgin_forward.7} parent=1 // pred_check
      _
    $region55: #{hgin_forward.7} parent=1 // pred_check_branch
      %151 = sbr.rel (0) target = $region57
    $region56: #{hgin_forward.7} parent=1 // pred_region
      %152 = dma.done [#allocation7], 384
    $region57: #{hgin_forward.7} parent=1 // pred_fallthru
      _
    // Predicated region
    $region58: #{hgin_forward.7} parent=1 // pred_check
      _
    $region59: #{hgin_forward.7} parent=1 // pred_check_branch
      %154 = sbr.rel (0) target = $region61
    $region60: #{hgin_forward.7} parent=1 // pred_region
      %155 = dma.done [#allocation7], 256
    $region61: #{hgin_forward.7} parent=1 // pred_fallthru
      _
    // Predicated region
    $region62: #{hgin_forward.7} parent=1 // pred_check
      _
    $region63: #{hgin_forward.7} parent=1 // pred_check_branch
      %157 = sbr.rel (0) target = $region65
    $region64: #{hgin_forward.7} parent=1 // pred_region
      %158 = dma.done [#allocation10], 512
    $region65: #{hgin_forward.7} parent=1 // pred_fallthru
      _
    // Predicated region
    $region66: #{hgin_forward.7} parent=1 // pred_check
      _
    $region67: #{hgin_forward.7} parent=1 // pred_check_branch
      %160 = sbr.rel (0) target = $region69
    $region68: #{hgin_forward.7} parent=1 // pred_region
      %161 = dma.done [#allocation10], 16
    $region69: #{hgin_forward.7} parent=1 // pred_fallthru
      _
    // Predicated region
    $region70: #{hgin_forward.7} parent=1 // pred_check
      _
    $region71: #{hgin_forward.7} parent=1 // pred_check_branch
      %163 = sbr.rel (0) target = $region73
    $region72: #{hgin_forward.7} parent=1 // pred_region
      %164 = dma.done [#allocation13], 16
    $region73: #{hgin_forward.7} parent=1 // pred_fallthru
      _
    // Predicated region
    $region74: #{hgin_forward.7} parent=1 // pred_check
      _
    $region75: #{hgin_forward.7} parent=1 // pred_check_branch
      %166 = sbr.rel (0) target = $region77
    $region76: #{hgin_forward.7} parent=1 // pred_region
      %167 = dma.done [#allocation13], 16
    $region77: #{hgin_forward.7} parent=1 // pred_fallthru
      _
    // Predicated region
    $region78: #{hgin_forward.7} parent=1 // pred_check
      _
    $region79: #{hgin_forward.7} parent=1 // pred_check_branch
      %169 = sbr.rel (0) target = $region81
    $region80: #{hgin_forward.7} parent=1 // pred_region
      %170 = dma.done [#allocation16], 16
    $region81: #{hgin_forward.7} parent=1 // pred_fallthru
      _
    // Predicated region
    $region82: #{hgin_forward.7} parent=1 // pred_check
      _
    $region83: #{hgin_forward.7} parent=1 // pred_check_branch
      %172 = sbr.rel (0) target = $region85
    $region84: #{hgin_forward.7} parent=1 // pred_region
      %173 = dma.done [#allocation16], 16
    $region85: #{hgin_forward.7} parent=1 // pred_fallthru
      _
    // Predicated region
    $region86: #{hgin_forward.7} parent=1 // pred_check
      _
    $region87: #{hgin_forward.7} parent=1 // pred_check_branch
      %175 = sbr.rel (0) target = $region89
    $region88: #{hgin_forward.7} parent=1 // pred_region
      %176 = dma.done [#allocation19], 512
    $region89: #{hgin_forward.7} parent=1 // pred_fallthru
      _
    // Predicated region
    $region90: #{hgin_forward.7} parent=1 // pred_check
      _
    $region91: #{hgin_forward.7} parent=1 // pred_check_branch
      %178 = sbr.rel (0) target = $region93
    $region92: #{hgin_forward.7} parent=1 // pred_region
      %179 = dma.done [#allocation19], 16
    $region93: #{hgin_forward.7} parent=1 // pred_fallthru
      _
    %v180 = vld [vmem:[#allocation6] sm:$0xff]
    %v181 = vld [vmem:[#allocation6 + $0x8] sm:$0xff]
    %v182 = vld [vmem:[#allocation6 + $0x10] sm:$0xff]
    %v183 = vld [vmem:[#allocation8] sm:$0xff]
    %v184 = vld [vmem:[#allocation8 + $0x8] sm:$0xff]
    %v185 = vld [vmem:[#allocation3] sm:$0xff]
    %v186 = vld [vmem:[#allocation3 + $0x8] sm:$0xff]
    %vm187 = vcmask 195584
    %v189 = vsel %vm187, %v185, 0
    %v192 = vsel %vm187, %v186, 0
    %194 = vmatprep.subr.mxu0 0.0
    %195 = vmatpush1.msra.mxu0 %v180
    %196 = vmatprep.subr.mxu0 0.0
    %197 = vmatpush1.msra.mxu0 %v181
    %198 = vmatprep.subr.mxu0 0.0
    %199 = vmatpush1.msra.mxu0 %v182
    %200 = vmatprep.subr.mxu0 0.0
    %201 = vmatpush1.msra.mxu0 0.0
    %202 = vmatprep.subr.mxu0 0.0
    %203 = vmatpush1.msra.mxu0 0.0
    %204 = vmatprep.subr.mxu0 0.0
    %205 = vmatpush1.msra.mxu0 0.0
    %206 = vmatprep.subr.mxu0 0.0
    %207 = vmatpush1.msra.mxu0 0.0
    %208 = vmatprep.subr.mxu0 0.0
    %209 = vmatpush1.msra.mxu0 0.0
    %210 = vmatprep.subr.mxu0 0.0
    %211 = vmatpush1.msra.mxu0 0.0
    %212 = vmatprep.subr.mxu0 0.0
    %213 = vmatpush1.msra.mxu0 0.0
    %214 = vmatprep.subr.mxu0 0.0
    %215 = vmatpush1.msra.mxu0 0.0
    %216 = vmatprep.subr.mxu0 0.0
    %217 = vmatpush1.msra.mxu0 0.0
    %218 = vmatprep.subr.mxu0 0.0
    %219 = vmatpush1.msra.mxu0 0.0
    %220 = vmatprep.subr.mxu0 0.0
    %221 = vmatpush1.msra.mxu0 0.0
    %222 = vmatprep.subr.mxu0 0.0
    %223 = vmatpush1.msra.mxu0 0.0
    %224 = vmatprep.subr.mxu0 0.0
    %225 = vmatpush1.msra.mxu0 0.0
    %226 = vmatprep.subr.mxu0 0.0
    %227 = vmatpush1.msra.mxu0 0.0
    %228 = vmatprep.subr.mxu0 0.0
    %229 = vmatpush1.msra.mxu0 0.0
    %230 = vmatprep.subr.mxu0 0.0
    %231 = vmatpush1.msra.mxu0 0.0
    %232 = vmatprep.subr.mxu0 0.0
    %233 = vmatpush1.msra.mxu0 0.0
    %234 = vmatprep.subr.mxu0 0.0
    %235 = vmatpush1.msra.mxu0 0.0
    %236 = vmatprep.subr.mxu0 0.0
    %237 = vmatpush1.msra.mxu0 0.0
    %238 = vmatprep.subr.mxu0 0.0
    %239 = vmatpush1.msra.mxu0 0.0
    %240 = vmatprep.subr.mxu0 0.0
    %241 = vmatpush1.msra.mxu0 0.0
    %242 = vmatprep.subr.mxu0 0.0
    %243 = vmatpush1.msra.mxu0 0.0
    %244 = vmatprep.subr.mxu0 0.0
    %245 = vmatpush1.msra.mxu0 0.0
    %246 = vmatprep.subr.mxu0 0.0
    %247 = vmatpush1.msra.mxu0 0.0
    %248 = vmatprep.subr.mxu0 0.0
    %249 = vmatpush1.msra.mxu0 0.0
    %250 = vmatprep.subr.mxu0 0.0
    %251 = vmatpush1.msra.mxu0 0.0
    %252 = vmatprep.subr.mxu0 0.0
    %253 = vmatpush1.msra.mxu0 0.0
    %254 = vmatprep.subr.mxu0 0.0
    %255 = vmatpush1.msra.mxu0 0.0
    %256 = vmatprep.subr.mxu0 0.0
    %257 = vmatpush1.msra.mxu0 0.0
    %258 = vmatprep.mubr.f32.mxu0 0.0
    %259 = vmatmul.mubr.f32.gmra.mrb[0].mxu0 %v189
    %v260 = vpop.f32.mrb[0].mxu0
    %v261 = vadd.f32 0.0, %v260
    %v262 = vpop.f32.mrb[0].mxu0
    %263 = vmatprep.mubr.f32.mxu0 0.0
    %264 = vmatmul.mubr.f32.gmra.mrb[0].mxu0 %v192
    %v265 = vpop.f32.mrb[0].mxu0
    %v266 = vadd.f32 0.0, %v265
    %v267 = vpop.f32.mrb[0].mxu0
    %268 = vdwg.mxu0
    %s269 = sld [smem:[#allocation2]]
    %s270 = sadd.f32 %s269, 1.0
    %v271 = vstv %s270
    %v272 = vmul.f32 %v271, %v183
    %v273 = vmul.f32 %v271, %v184
    %v274 = vadd.f32 %v272, %v261
    %v275 = vadd.f32 %v273, %v266
    %v276 = vld [vmem:[#allocation12] sm:$0x1]
    %v277 = vld [vmem:[#allocation17] sm:$0x1]
    %v278 = vadd.f32 %v277, 1e-05
    %v279 = vrsqrt.pop %v278
    %v280 = vmul.f32 %v276, %v279
    %v281 = vld [vmem:[#allocation14] sm:$0x1]
    %v282 = vld [vmem:[#allocation15] sm:$0x1]
    %v283 = vmul.f32 %v282, %v280
    %v284 = vsub.f32 %v281, %v283
    %v285 = vld [vmem:[#allocation9] sm:$0xff]
    %v286 = vld [vmem:[#allocation9 + $0x8] sm:$0xff]
    %v287 = vld [vmem:[#allocation9 + $0x10] sm:$0xff]
    %v288 = vld [vmem:[#allocation9 + $0x18] sm:$0xff]
    %v289 = vld [vmem:[#allocation11] sm:$0x1]
    %v291 = vlaneseq
    %v292 = vshrl.u32 %v291, 7
    %v293 = vsub.s32 0, %v292
    %v294 = vrot.slane %v289, %v293
    %vm296 = vcmask 261120
    %v298 = vsel %vm296, %v274, 0
    %v301 = vsel %vm296, %v275, 0
    %303 = vmatprep.subr.mxu0 0.0
    %304 = vmatpush1.msra.mxu0 %v285
    %305 = vmatprep.subr.mxu0 0.0
    %306 = vmatpush1.msra.mxu0 %v286
    %307 = vmatprep.subr.mxu0 0.0
    %308 = vmatpush1.msra.mxu0 %v287
    %309 = vmatprep.subr.mxu0 0.0
    %310 = vmatpush1.msra.mxu0 %v288
    %311 = vmatprep.subr.mxu0 0.0
    %312 = vmatpush1.msra.mxu0 0.0
    %313 = vmatprep.subr.mxu0 0.0
    %314 = vmatpush1.msra.mxu0 0.0
    %315 = vmatprep.subr.mxu0 0.0
    %316 = vmatpush1.msra.mxu0 0.0
    %317 = vmatprep.subr.mxu0 0.0
    %318 = vmatpush1.msra.mxu0 0.0
    %319 = vmatprep.subr.mxu0 0.0
    %320 = vmatpush1.msra.mxu0 0.0
    %321 = vmatprep.subr.mxu0 0.0
    %322 = vmatpush1.msra.mxu0 0.0
    %323 = vmatprep.subr.mxu0 0.0
    %324 = vmatpush1.msra.mxu0 0.0
    %325 = vmatprep.subr.mxu0 0.0
    %326 = vmatpush1.msra.mxu0 0.0
    %327 = vmatprep.subr.mxu0 0.0
    %328 = vmatpush1.msra.mxu0 0.0
    %329 = vmatprep.subr.mxu0 0.0
    %330 = vmatpush1.msra.mxu0 0.0
    %331 = vmatprep.subr.mxu0 0.0
    %332 = vmatpush1.msra.mxu0 0.0
    %333 = vmatprep.subr.mxu0 0.0
    %334 = vmatpush1.msra.mxu0 0.0
    %335 = vmatprep.subr.mxu0 0.0
    %336 = vmatpush1.msra.mxu0 0.0
    %337 = vmatprep.subr.mxu0 0.0
    %338 = vmatpush1.msra.mxu0 0.0
    %339 = vmatprep.subr.mxu0 0.0
    %340 = vmatpush1.msra.mxu0 0.0
    %341 = vmatprep.subr.mxu0 0.0
    %342 = vmatpush1.msra.mxu0 0.0
    %343 = vmatprep.subr.mxu0 0.0
    %344 = vmatpush1.msra.mxu0 0.0
    %345 = vmatprep.subr.mxu0 0.0
    %346 = vmatpush1.msra.mxu0 0.0
    %347 = vmatprep.subr.mxu0 0.0
    %348 = vmatpush1.msra.mxu0 0.0
    %349 = vmatprep.subr.mxu0 0.0
    %350 = vmatpush1.msra.mxu0 0.0
    %351 = vmatprep.subr.mxu0 0.0
    %352 = vmatpush1.msra.mxu0 0.0
    %353 = vmatprep.subr.mxu0 0.0
    %354 = vmatpush1.msra.mxu0 0.0
    %355 = vmatprep.subr.mxu0 0.0
    %356 = vmatpush1.msra.mxu0 0.0
    %357 = vmatprep.subr.mxu0 0.0
    %358 = vmatpush1.msra.mxu0 0.0
    %359 = vmatprep.subr.mxu0 0.0
    %360 = vmatpush1.msra.mxu0 0.0
    %361 = vmatprep.subr.mxu0 0.0
    %362 = vmatpush1.msra.mxu0 0.0
    %363 = vmatprep.subr.mxu0 0.0
    %364 = vmatpush1.msra.mxu0 0.0
    %365 = vmatprep.subr.mxu0 0.0
    %366 = vmatpush1.msra.mxu0 0.0
    %367 = vmatprep.mubr.f32.mxu0 0.0
    %368 = vmatmul.mubr.f32.gmra.mrb[0].mxu0 %v298
    %v369 = vpop.f32.mrb[0].mxu0
    %v370 = vadd.f32 %v294, %v369
    %v371 = vpop.f32.mrb[0].mxu0
    %372 = vmatprep.mubr.f32.mxu0 0.0
    %373 = vmatmul.mubr.f32.gmra.mrb[0].mxu0 %v301
    %v374 = vpop.f32.mrb[0].mxu0
    %v375 = vadd.f32 %v294, %v374
    %v376 = vpop.f32.mrb[0].mxu0
    %377 = vdwg.mxu0
    %v379 = vlaneseq
    %v380 = vshrl.u32 %v379, 7
    %v381 = vsub.s32 0, %v380
    %v382 = vrot.slane %v280, %v381
    %v384 = vmul.f32 %v370, %v382
    %v385 = vmul.f32 %v375, %v382
    %v387 = vlaneseq
    %v388 = vshrl.u32 %v387, 7
    %v389 = vsub.s32 0, %v388
    %v390 = vrot.slane %v284, %v389
    %v392 = vadd.f32 %v384, %v390
    %v393 = vadd.f32 %v385, %v390
    %v394 = vmax.f32 %v392, 0.0
    %v395 = vmax.f32 %v393, 0.0
    %v396 = vld [vmem:[#allocation18] sm:$0xff]
    %v397 = vld [vmem:[#allocation18 + $0x8] sm:$0xff]
    %v398 = vld [vmem:[#allocation18 + $0x10] sm:$0xff]
    %v399 = vld [vmem:[#allocation18 + $0x18] sm:$0xff]
    %v400 = vld [vmem:[#allocation20] sm:$0x1]
    %v402 = vlaneseq
    %v403 = vshrl.u32 %v402, 7
    %v404 = vsub.s32 0, %v403
    %v405 = vrot.slane %v400, %v404
    %v408 = vsel %vm296, %v394, 0
    %v411 = vsel %vm296, %v395, 0
    %413 = vmatprep.subr.mxu0 0.0
    %414 = vmatpush1.msra.mxu0 %v396
    %415 = vmatprep.subr.mxu0 0.0
    %416 = vmatpush1.msra.mxu0 %v397
    %417 = vmatprep.subr.mxu0 0.0
    %418 = vmatpush1.msra.mxu0 %v398
    %419 = vmatprep.subr.mxu0 0.0
    %420 = vmatpush1.msra.mxu0 %v399
    %421 = vmatprep.subr.mxu0 0.0
    %422 = vmatpush1.msra.mxu0 0.0
    %423 = vmatprep.subr.mxu0 0.0
    %424 = vmatpush1.msra.mxu0 0.0
    %425 = vmatprep.subr.mxu0 0.0
    %426 = vmatpush1.msra.mxu0 0.0
    %427 = vmatprep.subr.mxu0 0.0
    %428 = vmatpush1.msra.mxu0 0.0
    %429 = vmatprep.subr.mxu0 0.0
    %430 = vmatpush1.msra.mxu0 0.0
    %431 = vmatprep.subr.mxu0 0.0
    %432 = vmatpush1.msra.mxu0 0.0
    %433 = vmatprep.subr.mxu0 0.0
    %434 = vmatpush1.msra.mxu0 0.0
    %435 = vmatprep.subr.mxu0 0.0
    %436 = vmatpush1.msra.mxu0 0.0
    %437 = vmatprep.subr.mxu0 0.0
    %438 = vmatpush1.msra.mxu0 0.0
    %439 = vmatprep.subr.mxu0 0.0
    %440 = vmatpush1.msra.mxu0 0.0
    %441 = vmatprep.subr.mxu0 0.0
    %442 = vmatpush1.msra.mxu0 0.0
    %443 = vmatprep.subr.mxu0 0.0
    %444 = vmatpush1.msra.mxu0 0.0
    %445 = vmatprep.subr.mxu0 0.0
    %446 = vmatpush1.msra.mxu0 0.0
    %447 = vmatprep.subr.mxu0 0.0
    %448 = vmatpush1.msra.mxu0 0.0
    %449 = vmatprep.subr.mxu0 0.0
    %450 = vmatpush1.msra.mxu0 0.0
    %451 = vmatprep.subr.mxu0 0.0
    %452 = vmatpush1.msra.mxu0 0.0
    %453 = vmatprep.subr.mxu0 0.0
    %454 = vmatpush1.msra.mxu0 0.0
    %455 = vmatprep.subr.mxu0 0.0
    %456 = vmatpush1.msra.mxu0 0.0
    %457 = vmatprep.subr.mxu0 0.0
    %458 = vmatpush1.msra.mxu0 0.0
    %459 = vmatprep.subr.mxu0 0.0
    %460 = vmatpush1.msra.mxu0 0.0
    %461 = vmatprep.subr.mxu0 0.0
    %462 = vmatpush1.msra.mxu0 0.0
    %463 = vmatprep.subr.mxu0 0.0
    %464 = vmatpush1.msra.mxu0 0.0
    %465 = vmatprep.subr.mxu0 0.0
    %466 = vmatpush1.msra.mxu0 0.0
    %467 = vmatprep.subr.mxu0 0.0
    %468 = vmatpush1.msra.mxu0 0.0
    %469 = vmatprep.subr.mxu0 0.0
    %470 = vmatpush1.msra.mxu0 0.0
    %471 = vmatprep.subr.mxu0 0.0
    %472 = vmatpush1.msra.mxu0 0.0
    %473 = vmatprep.subr.mxu0 0.0
    %474 = vmatpush1.msra.mxu0 0.0
    %475 = vmatprep.subr.mxu0 0.0
    %476 = vmatpush1.msra.mxu0 0.0
    %477 = vmatprep.mubr.f32.mxu0 0.0
    %478 = vmatmul.mubr.f32.gmra.mrb[0].mxu0 %v408
    %v479 = vpop.f32.mrb[0].mxu0
    %v480 = vadd.f32 %v405, %v479
    %v481 = vpop.f32.mrb[0].mxu0
    %482 = vmatprep.mubr.f32.mxu0 0.0
    %483 = vmatmul.mubr.f32.gmra.mrb[0].mxu0 %v411
    %v484 = vpop.f32.mrb[0].mxu0
    %v485 = vadd.f32 %v405, %v484
    %v486 = vpop.f32.mrb[0].mxu0
    %487 = vdwg.mxu0
    %488 = vst.msk [vmem:[#allocation21] sm:$0xff] %vm296, %v480
    %489 = vst.msk [vmem:[#allocation21 + $0x8] sm:$0xff] %vm296, %v485
    // Predicated region
    $region94: #{hgin_forward.7} parent=1 // pred_check
      _
    $region95: #{hgin_forward.7} parent=1 // pred_check_branch
      %491 = sbr.rel (0) target = $region97
    $region96: #{hgin_forward.7} parent=1 // pred_region
      %s493 = ssub.s32 256, 256
      %494 = vsyncadd [#allocation5], %s493
      %s495 = sshll.u32 [#allocation21], 4
      %s496 = int_to_ptr.vmem [resolvable:$true] %s495
      %501 = dma.vmem_to_hbm [thread:$0]  %s496, 256, %s12, [#allocation5], 128, 128, 8
    $region97: #{hgin_forward.7} parent=1 // pred_fallthru
      _
    // Predicated region
    $region98: #{hgin_forward.7} parent=1 // pred_check
      _
    $region99: #{hgin_forward.7} parent=1 // pred_check_branch
      %503 = sbr.rel (0) target = $region101
    $region100: #{hgin_forward.7} parent=1 // pred_region
      %504 = dma.done [#allocation5], 256
    $region101: #{hgin_forward.7} parent=1 // pred_fallthru
      _
    %505 = vsyncpa [#allocation4], 1
    %506 = vsyncpa [#allocation7], 1
    %507 = vsyncpa [#allocation10], 1
    %508 = vsyncpa [#allocation13], 1
    %509 = vsyncpa [#allocation16], 1
    %510 = vsyncpa [#allocation19], 1
    %511 = vsyncpa [#allocation5], 1

// kernel: hgin_forward.11
$region0: #{hgin_forward.11}
  #allocation0 [shape = 'u32[]', space=smem, size = 0x4, offset = 0x4, fixed_abs, tag = 'smem constant byte address 0x4 - core index']
  #allocation1 [shape = 'u32[144,128]{1,0:T(1,128)}', space=vmem, size = 0x12000, scoped, tag = 'internal scratch']
  #allocation2 [shape = 'f32[1,1]{1,0:T(1,128)S(6)}', space=smem, size = 0x200, scoped, tag = 'scoped memory for hgin_forward.11']
  %s0 = inlined_call_operand.hbm [shape: f32[16,24], index: 0, kind: input, shape index: {}]
  %s1 = inlined_call_operand.hbm [shape: f32[24,32], index: 1, kind: input, shape index: {}]
  %s2 = inlined_call_operand.hbm [shape: f32[16,32], index: 2, kind: input, shape index: {}]
  %s3 = inlined_call_operand.<no memory space> [shape: f32[1,1], index: 3, kind: input, shape index: {}]
  %s4 = inlined_call_operand.hbm [shape: f32[32,32], index: 4, kind: input, shape index: {}]
  %s5 = inlined_call_operand.hbm [shape: f32[1,32], index: 5, kind: input, shape index: {}]
  %s6 = inlined_call_operand.hbm [shape: f32[1,32], index: 6, kind: input, shape index: {}]
  %s7 = inlined_call_operand.hbm [shape: f32[1,32], index: 7, kind: input, shape index: {}]
  %s8 = inlined_call_operand.hbm [shape: f32[1,32], index: 8, kind: input, shape index: {}]
  %s9 = inlined_call_operand.hbm [shape: f32[1,32], index: 9, kind: input, shape index: {}]
  %s10 = inlined_call_operand.hbm [shape: f32[32,32], index: 10, kind: input, shape index: {}]
  %s11 = inlined_call_operand.hbm [shape: f32[1,32], index: 11, kind: input, shape index: {}]
  %s12 = inlined_call_operand.hbm [shape: f32[16,32], index: 12, kind: output, shape index: {}]
  %s13 = sld [smem:[#allocation0]]
  $region102: #{hgin_forward.11} parent=0
    _
  %s15 = ssub.s32 1, %s13
  %s16 = scalar_select 0, %s15, %s13
  %17 = sst [smem:[#allocation2]] %s3
  $region1: #{hgin_forward.11} parent=0
    #allocation3 [shape = 'u8[8192]{0}', space=vmem, size = 0x2000, scoped, tag = 'input window, operand 0, single buffered']
    #allocation4 [shape = 's32[1]{0}', space=sflag, size = 0x4, scoped, tag = 'scoped memory for hgin_forward.11']
    #allocation5 [shape = 's32[1]{0}', space=sflag, size = 0x4, scoped, tag = 'scoped memory for hgin_forward.11']
    #allocation6 [shape = 'u8[12288]{0}', space=vmem, size = 0x3000, scoped, tag = 'input window, operand 1, single buffered']
    #allocation7 [shape = 's32[1]{0}', space=sflag, size = 0x4, scoped, tag = 'scoped memory for hgin_forward.11']
    #allocation8 [shape = 'u8[8192]{0}', space=vmem, size = 0x2000, scoped, tag = 'input window, operand 2, single buffered']
    #allocation9 [shape = 'u8[16384]{0}', space=vmem, size = 0x4000, scoped, tag = 'input window, operand 4, single buffered']
    #allocation10 [shape = 's32[1]{0}', space=sflag, size = 0x4, scoped, tag = 'scoped memory for hgin_forward.11']
    #allocation11 [shape = 'u8[512]{0}', space=vmem, size = 0x400, scoped, tag = 'input window, operand 5, single buffered']
    #allocation12 [shape = 'u8[512]{0}', space=vmem, size = 0x400, scoped, tag = 'input window, operand 6, single buffered']
    #allocation13 [shape = 's32[1]{0}', space=sflag, size = 0x4, scoped, tag = 'scoped memory for hgin_forward.11']
    #allocation14 [shape = 'u8[512]{0}', space=vmem, size = 0x400, scoped, tag = 'input window, operand 7, single buffered']
    #allocation15 [shape = 'u8[512]{0}', space=vmem, size = 0x400, scoped, tag = 'input window, operand 8, single buffered']
    #allocation16 [shape = 's32[1]{0}', space=sflag, size = 0x4, scoped, tag = 'scoped memory for hgin_forward.11']
    #allocation17 [shape = 'u8[512]{0}', space=vmem, size = 0x400, scoped, tag = 'input window, operand 9, single buffered']
    #allocation18 [shape = 'u8[16384]{0}', space=vmem, size = 0x4000, scoped, tag = 'input window, operand 10, single buffered']
    #allocation19 [shape = 's32[1]{0}', space=sflag, size = 0x4, scoped, tag = 'scoped memory for hgin_forward.11']
    #allocation20 [shape = 'u8[512]{0}', space=vmem, size = 0x400, scoped, tag = 'input window, operand 11, single buffered']
    #allocation21 [shape = 'u8[8192]{0}', space=vmem, size = 0x2000, scoped, tag = 'output window, operand 0, single buffered']
    %18 = vsyncpa [#allocation4], 0
    %19 = vsyncpa [#allocation7], 0
    %20 = vsyncpa [#allocation10], 0
    %21 = vsyncpa [#allocation13], 0
    %22 = vsyncpa [#allocation16], 0
    %23 = vsyncpa [#allocation19], 0
    %24 = vsyncpa [#allocation5], 0
    // Predicated region
    $region2: #{hgin_forward.11} parent=1 // pred_check
      _
    $region3: #{hgin_forward.11} parent=1 // pred_check_branch
      %26 = sbr.rel (0) target = $region5
    $region4: #{hgin_forward.11} parent=1 // pred_region
      %s28 = ssub.s32 256, 256
      %29 = vsyncadd [#allocation4], %s28
      %s30 = sshll.u32 [#allocation3], 4
      %s31 = int_to_ptr.vmem [resolvable:$true] %s30
      %36 = dma.hbm_to_vmem [thread:$0]  %s0, 256, %s31, [#allocation4], 128, 128, 8
    $region5: #{hgin_forward.11} parent=1 // pred_fallthru
      _
    // Predicated region
    $region6: #{hgin_forward.11} parent=1 // pred_check
      _
    $region7: #{hgin_forward.11} parent=1 // pred_check_branch
      %38 = sbr.rel (0) target = $region9
    $region8: #{hgin_forward.11} parent=1 // pred_region
      %s40 = ssub.s32 384, 384
      %41 = vsyncadd [#allocation7], %s40
      %s42 = sshll.u32 [#allocation6], 4
      %s43 = int_to_ptr.vmem [resolvable:$true] %s42
      %48 = dma.hbm_to_vmem [thread:$0]  %s1, 384, %s43, [#allocation7], 128, 128, 8
    $region9: #{hgin_forward.11} parent=1 // pred_fallthru
      _
    // Predicated region
    $region10: #{hgin_forward.11} parent=1 // pred_check
      _
    $region11: #{hgin_forward.11} parent=1 // pred_check_branch
      %50 = sbr.rel (0) target = $region13
    $region12: #{hgin_forward.11} parent=1 // pred_region
      %s52 = ssub.s32 256, 256
      %53 = vsyncadd [#allocation7], %s52
      %s54 = sshll.u32 [#allocation8], 4
      %s55 = int_to_ptr.vmem [resolvable:$true] %s54
      %60 = dma.hbm_to_vmem [thread:$0]  %s2, 256, %s55, [#allocation7], 128, 128, 8
    $region13: #{hgin_forward.11} parent=1 // pred_fallthru
      _
    // Predicated region
    $region14: #{hgin_forward.11} parent=1 // pred_check
      _
    $region15: #{hgin_forward.11} parent=1 // pred_check_branch
      %62 = sbr.rel (0) target = $region17
    $region16: #{hgin_forward.11} parent=1 // pred_region
      _
    $region17: #{hgin_forward.11} parent=1 // pred_fallthru
      _
    // Predicated region
    $region18: #{hgin_forward.11} parent=1 // pred_check
      _
    $region19: #{hgin_forward.11} parent=1 // pred_check_branch
      %64 = sbr.rel (0) target = $region21
    $region20: #{hgin_forward.11} parent=1 // pred_region
      %s66 = ssub.s32 512, 512
      %67 = vsyncadd [#allocation10], %s66
      %s68 = sshll.u32 [#allocation9], 4
      %s69 = int_to_ptr.vmem [resolvable:$true] %s68
      %74 = dma.hbm_to_vmem [thread:$0]  %s4, 512, %s69, [#allocation10], 128, 128, 8
    $region21: #{hgin_forward.11} parent=1 // pred_fallthru
      _
    // Predicated region
    $region22: #{hgin_forward.11} parent=1 // pred_check
      _
    $region23: #{hgin_forward.11} parent=1 // pred_check_branch
      %76 = sbr.rel (0) target = $region25
    $region24: #{hgin_forward.11} parent=1 // pred_region
      %s78 = ssub.s32 16, 16
      %79 = vsyncadd [#allocation10], %s78
      %s81 = sshll.u32 [#allocation11], 4
      %s82 = int_to_ptr.vmem [resolvable:$true] %s81
      %84 = dma.hbm_to_vmem [thread:$0]  %s5, 16, %s82, [#allocation10]
    $region25: #{hgin_forward.11} parent=1 // pred_fallthru
      _
    // Predicated region
    $region26: #{hgin_forward.11} parent=1 // pred_check
      _
    $region27: #{hgin_forward.11} parent=1 // pred_check_branch
      %86 = sbr.rel (0) target = $region29
    $region28: #{hgin_forward.11} parent=1 // pred_region
      %s88 = ssub.s32 16, 16
      %89 = vsyncadd [#allocation13], %s88
      %s91 = sshll.u32 [#allocation12], 4
      %s92 = int_to_ptr.vmem [resolvable:$true] %s91
      %94 = dma.hbm_to_vmem [thread:$0]  %s6, 16, %s92, [#allocation13]
    $region29: #{hgin_forward.11} parent=1 // pred_fallthru
      _
    // Predicated region
    $region30: #{hgin_forward.11} parent=1 // pred_check
      _
    $region31: #{hgin_forward.11} parent=1 // pred_check_branch
      %96 = sbr.rel (0) target = $region33
    $region32: #{hgin_forward.11} parent=1 // pred_region
      %s98 = ssub.s32 16, 16
      %99 = vsyncadd [#allocation13], %s98
      %s101 = sshll.u32 [#allocation14], 4
      %s102 = int_to_ptr.vmem [resolvable:$true] %s101
      %104 = dma.hbm_to_vmem [thread:$0]  %s7, 16, %s102, [#allocation13]
    $region33: #{hgin_forward.11} parent=1 // pred_fallthru
      _
    // Predicated region
    $region34: #{hgin_forward.11} parent=1 // pred_check
      _
    $region35: #{hgin_forward.11} parent=1 // pred_check_branch
      %106 = sbr.rel (0) target = $region37
    $region36: #{hgin_forward.11} parent=1 // pred_region
      %s108 = ssub.s32 16, 16
      %109 = vsyncadd [#allocation16], %s108
      %s111 = sshll.u32 [#allocation15], 4
      %s112 = int_to_ptr.vmem [resolvable:$true] %s111
      %114 = dma.hbm_to_vmem [thread:$0]  %s8, 16, %s112, [#allocation16]
    $region37: #{hgin_forward.11} parent=1 // pred_fallthru
      _
    // Predicated region
    $region38: #{hgin_forward.11} parent=1 // pred_check
      _
    $region39: #{hgin_forward.11} parent=1 // pred_check_branch
      %116 = sbr.rel (0) target = $region41
    $region40: #{hgin_forward.11} parent=1 // pred_region
      %s118 = ssub.s32 16, 16
      %119 = vsyncadd [#allocation16], %s118
      %s121 = sshll.u32 [#allocation17], 4
      %s122 = int_to_ptr.vmem [resolvable:$true] %s121
      %124 = dma.hbm_to_vmem [thread:$0]  %s9, 16, %s122, [#allocation16]
    $region41: #{hgin_forward.11} parent=1 // pred_fallthru
      _
    // Predicated region
    $region42: #{hgin_forward.11} parent=1 // pred_check
      _
    $region43: #{hgin_forward.11} parent=1 // pred_check_branch
      %126 = sbr.rel (0) target = $region45
    $region44: #{hgin_forward.11} parent=1 // pred_region
      %s128 = ssub.s32 512, 512
      %129 = vsyncadd [#allocation19], %s128
      %s130 = sshll.u32 [#allocation18], 4
      %s131 = int_to_ptr.vmem [resolvable:$true] %s130
      %136 = dma.hbm_to_vmem [thread:$0]  %s10, 512, %s131, [#allocation19], 128, 128, 8
    $region45: #{hgin_forward.11} parent=1 // pred_fallthru
      _
    // Predicated region
    $region46: #{hgin_forward.11} parent=1 // pred_check
      _
    $region47: #{hgin_forward.11} parent=1 // pred_check_branch
      %138 = sbr.rel (0) target = $region49
    $region48: #{hgin_forward.11} parent=1 // pred_region
      %s140 = ssub.s32 16, 16
      %141 = vsyncadd [#allocation19], %s140
      %s143 = sshll.u32 [#allocation20], 4
      %s144 = int_to_ptr.vmem [resolvable:$true] %s143
      %146 = dma.hbm_to_vmem [thread:$0]  %s11, 16, %s144, [#allocation19]
    $region49: #{hgin_forward.11} parent=1 // pred_fallthru
      _
    // Predicated region
    $region50: #{hgin_forward.11} parent=1 // pred_check
      _
    $region51: #{hgin_forward.11} parent=1 // pred_check_branch
      %148 = sbr.rel (0) target = $region53
    $region52: #{hgin_forward.11} parent=1 // pred_region
      %149 = dma.done [#allocation4], 256
    $region53: #{hgin_forward.11} parent=1 // pred_fallthru
      _
    // Predicated region
    $region54: #{hgin_forward.11} parent=1 // pred_check
      _
    $region55: #{hgin_forward.11} parent=1 // pred_check_branch
      %151 = sbr.rel (0) target = $region57
    $region56: #{hgin_forward.11} parent=1 // pred_region
      %152 = dma.done [#allocation7], 384
    $region57: #{hgin_forward.11} parent=1 // pred_fallthru
      _
    // Predicated region
    $region58: #{hgin_forward.11} parent=1 // pred_check
      _
    $region59: #{hgin_forward.11} parent=1 // pred_check_branch
      %154 = sbr.rel (0) target = $region61
    $region60: #{hgin_forward.11} parent=1 // pred_region
      %155 = dma.done [#allocation7], 256
    $region61: #{hgin_forward.11} parent=1 // pred_fallthru
      _
    // Predicated region
    $region62: #{hgin_forward.11} parent=1 // pred_check
      _
    $region63: #{hgin_forward.11} parent=1 // pred_check_branch
      %157 = sbr.rel (0) target = $region65
    $region64: #{hgin_forward.11} parent=1 // pred_region
      %158 = dma.done [#allocation10], 512
    $region65: #{hgin_forward.11} parent=1 // pred_fallthru
      _
    // Predicated region
    $region66: #{hgin_forward.11} parent=1 // pred_check
      _
    $region67: #{hgin_forward.11} parent=1 // pred_check_branch
      %160 = sbr.rel (0) target = $region69
    $region68: #{hgin_forward.11} parent=1 // pred_region
      %161 = dma.done [#allocation10], 16
    $region69: #{hgin_forward.11} parent=1 // pred_fallthru
      _
    // Predicated region
    $region70: #{hgin_forward.11} parent=1 // pred_check
      _
    $region71: #{hgin_forward.11} parent=1 // pred_check_branch
      %163 = sbr.rel (0) target = $region73
    $region72: #{hgin_forward.11} parent=1 // pred_region
      %164 = dma.done [#allocation13], 16
    $region73: #{hgin_forward.11} parent=1 // pred_fallthru
      _
    // Predicated region
    $region74: #{hgin_forward.11} parent=1 // pred_check
      _
    $region75: #{hgin_forward.11} parent=1 // pred_check_branch
      %166 = sbr.rel (0) target = $region77
    $region76: #{hgin_forward.11} parent=1 // pred_region
      %167 = dma.done [#allocation13], 16
    $region77: #{hgin_forward.11} parent=1 // pred_fallthru
      _
    // Predicated region
    $region78: #{hgin_forward.11} parent=1 // pred_check
      _
    $region79: #{hgin_forward.11} parent=1 // pred_check_branch
      %169 = sbr.rel (0) target = $region81
    $region80: #{hgin_forward.11} parent=1 // pred_region
      %170 = dma.done [#allocation16], 16
    $region81: #{hgin_forward.11} parent=1 // pred_fallthru
      _
    // Predicated region
    $region82: #{hgin_forward.11} parent=1 // pred_check
      _
    $region83: #{hgin_forward.11} parent=1 // pred_check_branch
      %172 = sbr.rel (0) target = $region85
    $region84: #{hgin_forward.11} parent=1 // pred_region
      %173 = dma.done [#allocation16], 16
    $region85: #{hgin_forward.11} parent=1 // pred_fallthru
      _
    // Predicated region
    $region86: #{hgin_forward.11} parent=1 // pred_check
      _
    $region87: #{hgin_forward.11} parent=1 // pred_check_branch
      %175 = sbr.rel (0) target = $region89
    $region88: #{hgin_forward.11} parent=1 // pred_region
      %176 = dma.done [#allocation19], 512
    $region89: #{hgin_forward.11} parent=1 // pred_fallthru
      _
    // Predicated region
    $region90: #{hgin_forward.11} parent=1 // pred_check
      _
    $region91: #{hgin_forward.11} parent=1 // pred_check_branch
      %178 = sbr.rel (0) target = $region93
    $region92: #{hgin_forward.11} parent=1 // pred_region
      %179 = dma.done [#allocation19], 16
    $region93: #{hgin_forward.11} parent=1 // pred_fallthru
      _
    %v180 = vld [vmem:[#allocation6] sm:$0xff]
    %v181 = vld [vmem:[#allocation6 + $0x8] sm:$0xff]
    %v182 = vld [vmem:[#allocation6 + $0x10] sm:$0xff]
    %vm183 = vcmp.ge.f32.partialorder %v180, 0.0
    %vm184 = vcmp.ge.f32.partialorder %v181, 0.0
    %vm185 = vcmp.ge.f32.partialorder %v182, 0.0
    %v186 = vmul.f32 %v180, 0.01
    %v187 = vmul.f32 %v181, 0.01
    %v188 = vmul.f32 %v182, 0.01
    %v189 = vsel %vm183, %v180, %v186
    %v190 = vsel %vm184, %v181, %v187
    %v191 = vsel %vm185, %v182, %v188
    %v192 = vld [vmem:[#allocation8] sm:$0xff]
    %v193 = vld [vmem:[#allocation8 + $0x8] sm:$0xff]
    %vm194 = vcmp.ge.f32.partialorder %v192, 0.0
    %vm195 = vcmp.ge.f32.partialorder %v193, 0.0
    %v196 = vmul.f32 %v192, 0.01
    %v197 = vmul.f32 %v193, 0.01
    %v198 = vsel %vm194, %v192, %v196
    %v199 = vsel %vm195, %v193, %v197
    %v200 = vld [vmem:[#allocation3] sm:$0xff]
    %v201 = vld [vmem:[#allocation3 + $0x8] sm:$0xff]
    %vm202 = vcmask 195584
    %v204 = vsel %vm202, %v200, 0
    %v207 = vsel %vm202, %v201, 0
    %209 = vmatprep.subr.mxu0 0.0
    %210 = vmatpush1.msra.mxu0 %v189
    %211 = vmatprep.subr.mxu0 0.0
    %212 = vmatpush1.msra.mxu0 %v190
    %213 = vmatprep.subr.mxu0 0.0
    %214 = vmatpush1.msra.mxu0 %v191
    %215 = vmatprep.subr.mxu0 0.0
    %216 = vmatpush1.msra.mxu0 0.0
    %217 = vmatprep.subr.mxu0 0.0
    %218 = vmatpush1.msra.mxu0 0.0
    %219 = vmatprep.subr.mxu0 0.0
    %220 = vmatpush1.msra.mxu0 0.0
    %221 = vmatprep.subr.mxu0 0.0
    %222 = vmatpush1.msra.mxu0 0.0
    %223 = vmatprep.subr.mxu0 0.0
    %224 = vmatpush1.msra.mxu0 0.0
    %225 = vmatprep.subr.mxu0 0.0
    %226 = vmatpush1.msra.mxu0 0.0
    %227 = vmatprep.subr.mxu0 0.0
    %228 = vmatpush1.msra.mxu0 0.0
    %229 = vmatprep.subr.mxu0 0.0
    %230 = vmatpush1.msra.mxu0 0.0
    %231 = vmatprep.subr.mxu0 0.0
    %232 = vmatpush1.msra.mxu0 0.0
    %233 = vmatprep.subr.mxu0 0.0
    %234 = vmatpush1.msra.mxu0 0.0
    %235 = vmatprep.subr.mxu0 0.0
    %236 = vmatpush1.msra.mxu0 0.0
    %237 = vmatprep.subr.mxu0 0.0
    %238 = vmatpush1.msra.mxu0 0.0
    %239 = vmatprep.subr.mxu0 0.0
    %240 = vmatpush1.msra.mxu0 0.0
    %241 = vmatprep.subr.mxu0 0.0
    %242 = vmatpush1.msra.mxu0 0.0
    %243 = vmatprep.subr.mxu0 0.0
    %244 = vmatpush1.msra.mxu0 0.0
    %245 = vmatprep.subr.mxu0 0.0
    %246 = vmatpush1.msra.mxu0 0.0
    %247 = vmatprep.subr.mxu0 0.0
    %248 = vmatpush1.msra.mxu0 0.0
    %249 = vmatprep.subr.mxu0 0.0
    %250 = vmatpush1.msra.mxu0 0.0
    %251 = vmatprep.subr.mxu0 0.0
    %252 = vmatpush1.msra.mxu0 0.0
    %253 = vmatprep.subr.mxu0 0.0
    %254 = vmatpush1.msra.mxu0 0.0
    %255 = vmatprep.subr.mxu0 0.0
    %256 = vmatpush1.msra.mxu0 0.0
    %257 = vmatprep.subr.mxu0 0.0
    %258 = vmatpush1.msra.mxu0 0.0
    %259 = vmatprep.subr.mxu0 0.0
    %260 = vmatpush1.msra.mxu0 0.0
    %261 = vmatprep.subr.mxu0 0.0
    %262 = vmatpush1.msra.mxu0 0.0
    %263 = vmatprep.subr.mxu0 0.0
    %264 = vmatpush1.msra.mxu0 0.0
    %265 = vmatprep.subr.mxu0 0.0
    %266 = vmatpush1.msra.mxu0 0.0
    %267 = vmatprep.subr.mxu0 0.0
    %268 = vmatpush1.msra.mxu0 0.0
    %269 = vmatprep.subr.mxu0 0.0
    %270 = vmatpush1.msra.mxu0 0.0
    %271 = vmatprep.subr.mxu0 0.0
    %272 = vmatpush1.msra.mxu0 0.0
    %273 = vmatprep.mubr.f32.mxu0 0.0
    %274 = vmatmul.mubr.f32.gmra.mrb[0].mxu0 %v204
    %v275 = vpop.f32.mrb[0].mxu0
    %v276 = vadd.f32 0.0, %v275
    %v277 = vpop.f32.mrb[0].mxu0
    %278 = vmatprep.mubr.f32.mxu0 0.0
    %279 = vmatmul.mubr.f32.gmra.mrb[0].mxu0 %v207
    %v280 = vpop.f32.mrb[0].mxu0
    %v281 = vadd.f32 0.0, %v280
    %v282 = vpop.f32.mrb[0].mxu0
    %283 = vdwg.mxu0
    %s284 = sld [smem:[#allocation2]]
    %s285 = sadd.f32 %s284, 1.0
    %v286 = vstv %s285
    %v287 = vmul.f32 %v286, %v198
    %v288 = vmul.f32 %v286, %v199
    %v289 = vadd.f32 %v287, %v276
    %v290 = vadd.f32 %v288, %v281
    %v291 = vld [vmem:[#allocation12] sm:$0x1]
    %v292 = vld [vmem:[#allocation17] sm:$0x1]
    %v293 = vadd.f32 %v292, 1e-05
    %v294 = vrsqrt.pop %v293
    %v295 = vmul.f32 %v291, %v294
    %v296 = vld [vmem:[#allocation14] sm:$0x1]
    %v297 = vld [vmem:[#allocation15] sm:$0x1]
    %v298 = vmul.f32 %v297, %v295
    %v299 = vsub.f32 %v296, %v298
    %v300 = vld [vmem:[#allocation9] sm:$0xff]
    %v301 = vld [vmem:[#allocation9 + $0x8] sm:$0xff]
    %v302 = vld [vmem:[#allocation9 + $0x10] sm:$0xff]
    %v303 = vld [vmem:[#allocation9 + $0x18] sm:$0xff]
    %v304 = vld [vmem:[#allocation11] sm:$0x1]
    %v306 = vlaneseq
    %v307 = vshrl.u32 %v306, 7
    %v308 = vsub.s32 0, %v307
    %v309 = vrot.slane %v304, %v308
    %vm311 = vcmask 261120
    %v313 = vsel %vm311, %v289, 0
    %v316 = vsel %vm311, %v290, 0
    %318 = vmatprep.subr.mxu0 0.0
    %319 = vmatpush1.msra.mxu0 %v300
    %320 = vmatprep.subr.mxu0 0.0
    %321 = vmatpush1.msra.mxu0 %v301
    %322 = vmatprep.subr.mxu0 0.0
    %323 = vmatpush1.msra.mxu0 %v302
    %324 = vmatprep.subr.mxu0 0.0
    %325 = vmatpush1.msra.mxu0 %v303
    %326 = vmatprep.subr.mxu0 0.0
    %327 = vmatpush1.msra.mxu0 0.0
    %328 = vmatprep.subr.mxu0 0.0
    %329 = vmatpush1.msra.mxu0 0.0
    %330 = vmatprep.subr.mxu0 0.0
    %331 = vmatpush1.msra.mxu0 0.0
    %332 = vmatprep.subr.mxu0 0.0
    %333 = vmatpush1.msra.mxu0 0.0
    %334 = vmatprep.subr.mxu0 0.0
    %335 = vmatpush1.msra.mxu0 0.0
    %336 = vmatprep.subr.mxu0 0.0
    %337 = vmatpush1.msra.mxu0 0.0
    %338 = vmatprep.subr.mxu0 0.0
    %339 = vmatpush1.msra.mxu0 0.0
    %340 = vmatprep.subr.mxu0 0.0
    %341 = vmatpush1.msra.mxu0 0.0
    %342 = vmatprep.subr.mxu0 0.0
    %343 = vmatpush1.msra.mxu0 0.0
    %344 = vmatprep.subr.mxu0 0.0
    %345 = vmatpush1.msra.mxu0 0.0
    %346 = vmatprep.subr.mxu0 0.0
    %347 = vmatpush1.msra.mxu0 0.0
    %348 = vmatprep.subr.mxu0 0.0
    %349 = vmatpush1.msra.mxu0 0.0
    %350 = vmatprep.subr.mxu0 0.0
    %351 = vmatpush1.msra.mxu0 0.0
    %352 = vmatprep.subr.mxu0 0.0
    %353 = vmatpush1.msra.mxu0 0.0
    %354 = vmatprep.subr.mxu0 0.0
    %355 = vmatpush1.msra.mxu0 0.0
    %356 = vmatprep.subr.mxu0 0.0
    %357 = vmatpush1.msra.mxu0 0.0
    %358 = vmatprep.subr.mxu0 0.0
    %359 = vmatpush1.msra.mxu0 0.0
    %360 = vmatprep.subr.mxu0 0.0
    %361 = vmatpush1.msra.mxu0 0.0
    %362 = vmatprep.subr.mxu0 0.0
    %363 = vmatpush1.msra.mxu0 0.0
    %364 = vmatprep.subr.mxu0 0.0
    %365 = vmatpush1.msra.mxu0 0.0
    %366 = vmatprep.subr.mxu0 0.0
    %367 = vmatpush1.msra.mxu0 0.0
    %368 = vmatprep.subr.mxu0 0.0
    %369 = vmatpush1.msra.mxu0 0.0
    %370 = vmatprep.subr.mxu0 0.0
    %371 = vmatpush1.msra.mxu0 0.0
    %372 = vmatprep.subr.mxu0 0.0
    %373 = vmatpush1.msra.mxu0 0.0
    %374 = vmatprep.subr.mxu0 0.0
    %375 = vmatpush1.msra.mxu0 0.0
    %376 = vmatprep.subr.mxu0 0.0
    %377 = vmatpush1.msra.mxu0 0.0
    %378 = vmatprep.subr.mxu0 0.0
    %379 = vmatpush1.msra.mxu0 0.0
    %380 = vmatprep.subr.mxu0 0.0
    %381 = vmatpush1.msra.mxu0 0.0
    %382 = vmatprep.mubr.f32.mxu0 0.0
    %383 = vmatmul.mubr.f32.gmra.mrb[0].mxu0 %v313
    %v384 = vpop.f32.mrb[0].mxu0
    %v385 = vadd.f32 %v309, %v384
    %v386 = vpop.f32.mrb[0].mxu0
    %387 = vmatprep.mubr.f32.mxu0 0.0
    %388 = vmatmul.mubr.f32.gmra.mrb[0].mxu0 %v316
    %v389 = vpop.f32.mrb[0].mxu0
    %v390 = vadd.f32 %v309, %v389
    %v391 = vpop.f32.mrb[0].mxu0
    %392 = vdwg.mxu0
    %v394 = vlaneseq
    %v395 = vshrl.u32 %v394, 7
    %v396 = vsub.s32 0, %v395
    %v397 = vrot.slane %v295, %v396
    %v399 = vmul.f32 %v385, %v397
    %v400 = vmul.f32 %v390, %v397
    %v402 = vlaneseq
    %v403 = vshrl.u32 %v402, 7
    %v404 = vsub.s32 0, %v403
    %v405 = vrot.slane %v299, %v404
    %v407 = vadd.f32 %v399, %v405
    %v408 = vadd.f32 %v400, %v405
    %v409 = vmax.f32 %v407, 0.0
    %v410 = vmax.f32 %v408, 0.0
    %v411 = vld [vmem:[#allocation18] sm:$0xff]
    %v412 = vld [vmem:[#allocation18 + $0x8] sm:$0xff]
    %v413 = vld [vmem:[#allocation18 + $0x10] sm:$0xff]
    %v414 = vld [vmem:[#allocation18 + $0x18] sm:$0xff]
    %v415 = vld [vmem:[#allocation20] sm:$0x1]
    %v417 = vlaneseq
    %v418 = vshrl.u32 %v417, 7
    %v419 = vsub.s32 0, %v418
    %v420 = vrot.slane %v415, %v419
    %v423 = vsel %vm311, %v409, 0
    %v426 = vsel %vm311, %v410, 0
    %428 = vmatprep.subr.mxu0 0.0
    %429 = vmatpush1.msra.mxu0 %v411
    %430 = vmatprep.subr.mxu0 0.0
    %431 = vmatpush1.msra.mxu0 %v412
    %432 = vmatprep.subr.mxu0 0.0
    %433 = vmatpush1.msra.mxu0 %v413
    %434 = vmatprep.subr.mxu0 0.0
    %435 = vmatpush1.msra.mxu0 %v414
    %436 = vmatprep.subr.mxu0 0.0
    %437 = vmatpush1.msra.mxu0 0.0
    %438 = vmatprep.subr.mxu0 0.0
    %439 = vmatpush1.msra.mxu0 0.0
    %440 = vmatprep.subr.mxu0 0.0
    %441 = vmatpush1.msra.mxu0 0.0
    %442 = vmatprep.subr.mxu0 0.0
    %443 = vmatpush1.msra.mxu0 0.0
    %444 = vmatprep.subr.mxu0 0.0
    %445 = vmatpush1.msra.mxu0 0.0
    %446 = vmatprep.subr.mxu0 0.0
    %447 = vmatpush1.msra.mxu0 0.0
    %448 = vmatprep.subr.mxu0 0.0
    %449 = vmatpush1.msra.mxu0 0.0
    %450 = vmatprep.subr.mxu0 0.0
    %451 = vmatpush1.msra.mxu0 0.0
    %452 = vmatprep.subr.mxu0 0.0
    %453 = vmatpush1.msra.mxu0 0.0
    %454 = vmatprep.subr.mxu0 0.0
    %455 = vmatpush1.msra.mxu0 0.0
    %456 = vmatprep.subr.mxu0 0.0
    %457 = vmatpush1.msra.mxu0 0.0
    %458 = vmatprep.subr.mxu0 0.0
    %459 = vmatpush1.msra.mxu0 0.0
    %460 = vmatprep.subr.mxu0 0.0
    %461 = vmatpush1.msra.mxu0 0.0
    %462 = vmatprep.subr.mxu0 0.0
    %463 = vmatpush1.msra.mxu0 0.0
    %464 = vmatprep.subr.mxu0 0.0
    %465 = vmatpush1.msra.mxu0 0.0
    %466 = vmatprep.subr.mxu0 0.0
    %467 = vmatpush1.msra.mxu0 0.0
    %468 = vmatprep.subr.mxu0 0.0
    %469 = vmatpush1.msra.mxu0 0.0
    %470 = vmatprep.subr.mxu0 0.0
    %471 = vmatpush1.msra.mxu0 0.0
    %472 = vmatprep.subr.mxu0 0.0
    %473 = vmatpush1.msra.mxu0 0.0
    %474 = vmatprep.subr.mxu0 0.0
    %475 = vmatpush1.msra.mxu0 0.0
    %476 = vmatprep.subr.mxu0 0.0
    %477 = vmatpush1.msra.mxu0 0.0
    %478 = vmatprep.subr.mxu0 0.0
    %479 = vmatpush1.msra.mxu0 0.0
    %480 = vmatprep.subr.mxu0 0.0
    %481 = vmatpush1.msra.mxu0 0.0
    %482 = vmatprep.subr.mxu0 0.0
    %483 = vmatpush1.msra.mxu0 0.0
    %484 = vmatprep.subr.mxu0 0.0
    %485 = vmatpush1.msra.mxu0 0.0
    %486 = vmatprep.subr.mxu0 0.0
    %487 = vmatpush1.msra.mxu0 0.0
    %488 = vmatprep.subr.mxu0 0.0
    %489 = vmatpush1.msra.mxu0 0.0
    %490 = vmatprep.subr.mxu0 0.0
    %491 = vmatpush1.msra.mxu0 0.0
    %492 = vmatprep.mubr.f32.mxu0 0.0
    %493 = vmatmul.mubr.f32.gmra.mrb[0].mxu0 %v423
    %v494 = vpop.f32.mrb[0].mxu0
    %v495 = vadd.f32 %v420, %v494
    %v496 = vpop.f32.mrb[0].mxu0
    %497 = vmatprep.mubr.f32.mxu0 0.0
    %498 = vmatmul.mubr.f32.gmra.mrb[0].mxu0 %v426
    %v499 = vpop.f32.mrb[0].mxu0
    %v500 = vadd.f32 %v420, %v499
    %v501 = vpop.f32.mrb[0].mxu0
    %502 = vdwg.mxu0
    %503 = vst.msk [vmem:[#allocation21] sm:$0xff] %vm311, %v495
    %504 = vst.msk [vmem:[#allocation21 + $0x8] sm:$0xff] %vm311, %v500
    // Predicated region
    $region94: #{hgin_forward.11} parent=1 // pred_check
      _
    $region95: #{hgin_forward.11} parent=1 // pred_check_branch
      %506 = sbr.rel (0) target = $region97
    $region96: #{hgin_forward.11} parent=1 // pred_region
      %s508 = ssub.s32 256, 256
      %509 = vsyncadd [#allocation5], %s508
      %s510 = sshll.u32 [#allocation21], 4
      %s511 = int_to_ptr.vmem [resolvable:$true] %s510
      %516 = dma.vmem_to_hbm [thread:$0]  %s511, 256, %s12, [#allocation5], 128, 128, 8
    $region97: #{hgin_forward.11} parent=1 // pred_fallthru
      _
    // Predicated region
    $region98: #{hgin_forward.11} parent=1 // pred_check
      _
    $region99: #{hgin_forward.11} parent=1 // pred_check_branch
      %518 = sbr.rel (0) target = $region101
    $region100: #{hgin_forward.11} parent=1 // pred_region
      %519 = dma.done [#allocation5], 256
    $region101: #{hgin_forward.11} parent=1 // pred_fallthru
      _
    %520 = vsyncpa [#allocation4], 1
    %521 = vsyncpa [#allocation7], 1
    %522 = vsyncpa [#allocation10], 1
    %523 = vsyncpa [#allocation13], 1
    %524 = vsyncpa [#allocation16], 1
    %525 = vsyncpa [#allocation19], 1
    %526 = vsyncpa [#allocation5], 1

// kernel: hgin_forward.12
$region0: #{hgin_forward.12}
  #allocation0 [shape = 'u32[]', space=smem, size = 0x4, offset = 0x4, fixed_abs, tag = 'smem constant byte address 0x4 - core index']
  #allocation1 [shape = 'u32[144,128]{1,0:T(1,128)}', space=vmem, size = 0x12000, scoped, tag = 'internal scratch']
  #allocation2 [shape = 'f32[1,1]{1,0:T(1,128)S(6)}', space=smem, size = 0x200, scoped, tag = 'scoped memory for hgin_forward.12']
  %s0 = inlined_call_operand.hbm [shape: f32[24,16], index: 0, kind: input, shape index: {}]
  %s1 = inlined_call_operand.hbm [shape: f32[16,32], index: 1, kind: input, shape index: {}]
  %s2 = inlined_call_operand.hbm [shape: f32[24,16], index: 2, kind: input, shape index: {}]
  %s3 = inlined_call_operand.hbm [shape: f32[16,32], index: 3, kind: input, shape index: {}]
  %s4 = inlined_call_operand.hbm [shape: f32[24,32], index: 4, kind: input, shape index: {}]
  %s5 = inlined_call_operand.hbm [shape: f32[32,32], index: 5, kind: input, shape index: {}]
  %s6 = inlined_call_operand.hbm [shape: f32[1,32], index: 6, kind: input, shape index: {}]
  %s7 = inlined_call_operand.<no memory space> [shape: f32[1,1], index: 7, kind: input, shape index: {}]
  %s8 = inlined_call_operand.hbm [shape: f32[32,32], index: 8, kind: input, shape index: {}]
  %s9 = inlined_call_operand.hbm [shape: f32[1,32], index: 9, kind: input, shape index: {}]
  %s10 = inlined_call_operand.hbm [shape: f32[1,32], index: 10, kind: input, shape index: {}]
  %s11 = inlined_call_operand.hbm [shape: f32[1,32], index: 11, kind: input, shape index: {}]
  %s12 = inlined_call_operand.hbm [shape: f32[1,32], index: 12, kind: input, shape index: {}]
  %s13 = inlined_call_operand.hbm [shape: f32[1,32], index: 13, kind: input, shape index: {}]
  %s14 = inlined_call_operand.hbm [shape: f32[32,32], index: 14, kind: input, shape index: {}]
  %s15 = inlined_call_operand.hbm [shape: f32[1,32], index: 15, kind: input, shape index: {}]
  %s16 = inlined_call_operand.hbm [shape: f32[24,32], index: 16, kind: output, shape index: {}]
  %s17 = sld [smem:[#allocation0]]
  $region134: #{hgin_forward.12} parent=0
    _
  %s19 = ssub.s32 1, %s17
  %s20 = scalar_select 0, %s19, %s17
  %21 = sst [smem:[#allocation2]] %s7
  $region1: #{hgin_forward.12} parent=0
    #allocation3 [shape = 'u8[12288]{0}', space=vmem, size = 0x3000, scoped, tag = 'input window, operand 0, single buffered']
    #allocation4 [shape = 's32[1]{0}', space=sflag, size = 0x4, scoped, tag = 'scoped memory for hgin_forward.12']
    #allocation5 [shape = 's32[1]{0}', space=sflag, size = 0x4, scoped, tag = 'scoped memory for hgin_forward.12']
    #allocation6 [shape = 'u8[8192]{0}', space=vmem, size = 0x2000, scoped, tag = 'input window, operand 1, single buffered']
    #allocation7 [shape = 's32[1]{0}', space=sflag, size = 0x4, scoped, tag = 'scoped memory for hgin_forward.12']
    #allocation8 [shape = 'u8[12288]{0}', space=vmem, size = 0x3000, scoped, tag = 'input window, operand 2, single buffered']
    #allocation9 [shape = 'u8[8192]{0}', space=vmem, size = 0x2000, scoped, tag = 'input window, operand 3, single buffered']
    #allocation10 [shape = 's32[1]{0}', space=sflag, size = 0x4, scoped, tag = 'scoped memory for hgin_forward.12']
    #allocation11 [shape = 'u8[12288]{0}', space=vmem, size = 0x3000, scoped, tag = 'input window, operand 4, single buffered']
    #allocation12 [shape = 'u8[16384]{0}', space=vmem, size = 0x4000, scoped, tag = 'input window, operand 5, single buffered']
    #allocation13 [shape = 's32[1]{0}', space=sflag, size = 0x4, scoped, tag = 'scoped memory for hgin_forward.12']
    #allocation14 [shape = 'u8[512]{0}', space=vmem, size = 0x400, scoped, tag = 'input window, operand 6, single buffered']
    #allocation15 [shape = 'u8[16384]{0}', space=vmem, size = 0x4000, scoped, tag = 'input window, operand 8, single buffered']
    #allocation16 [shape = 's32[1]{0}', space=sflag, size = 0x4, scoped, tag = 'scoped memory for hgin_forward.12']
    #allocation17 [shape = 'u8[512]{0}', space=vmem, size = 0x400, scoped, tag = 'input window, operand 9, single buffered']
    #allocation18 [shape = 'u8[512]{0}', space=vmem, size = 0x400, scoped, tag = 'input window, operand 10, single buffered']
    #allocation19 [shape = 's32[1]{0}', space=sflag, size = 0x4, scoped, tag = 'scoped memory for hgin_forward.12']
    #allocation20 [shape = 'u8[512]{0}', space=vmem, size = 0x400, scoped, tag = 'input window, operand 11, single buffered']
    #allocation21 [shape = 'u8[512]{0}', space=vmem, size = 0x400, scoped, tag = 'input window, operand 12, single buffered']
    #allocation22 [shape = 's32[1]{0}', space=sflag, size = 0x4, scoped, tag = 'scoped memory for hgin_forward.12']
    #allocation23 [shape = 'u8[512]{0}', space=vmem, size = 0x400, scoped, tag = 'input window, operand 13, single buffered']
    #allocation24 [shape = 'u8[16384]{0}', space=vmem, size = 0x4000, scoped, tag = 'input window, operand 14, single buffered']
    #allocation25 [shape = 's32[1]{0}', space=sflag, size = 0x4, scoped, tag = 'scoped memory for hgin_forward.12']
    #allocation26 [shape = 'u8[512]{0}', space=vmem, size = 0x400, scoped, tag = 'input window, operand 15, single buffered']
    #allocation27 [shape = 'u8[12288]{0}', space=vmem, size = 0x3000, scoped, tag = 'output window, operand 0, single buffered']
    %22 = vsyncpa [#allocation4], 0
    %23 = vsyncpa [#allocation7], 0
    %24 = vsyncpa [#allocation10], 0
    %25 = vsyncpa [#allocation13], 0
    %26 = vsyncpa [#allocation16], 0
    %27 = vsyncpa [#allocation19], 0
    %28 = vsyncpa [#allocation22], 0
    %29 = vsyncpa [#allocation25], 0
    %30 = vsyncpa [#allocation5], 0
    // Predicated region
    $region2: #{hgin_forward.12} parent=1 // pred_check
      _
    $region3: #{hgin_forward.12} parent=1 // pred_check_branch
      %32 = sbr.rel (0) target = $region5
    $region4: #{hgin_forward.12} parent=1 // pred_region
      %s34 = ssub.s32 384, 384
      %35 = vsyncadd [#allocation4], %s34
      %s36 = sshll.u32 [#allocation3], 4
      %s37 = int_to_ptr.vmem [resolvable:$true] %s36
      %42 = dma.hbm_to_vmem [thread:$0]  %s0, 384, %s37, [#allocation4], 128, 128, 8
    $region5: #{hgin_forward.12} parent=1 // pred_fallthru
      _
    // Predicated region
    $region6: #{hgin_forward.12} parent=1 // pred_check
      _
    $region7: #{hgin_forward.12} parent=1 // pred_check_branch
      %44 = sbr.rel (0) target = $region9
    $region8: #{hgin_forward.12} parent=1 // pred_region
      %s46 = ssub.s32 256, 256
      %47 = vsyncadd [#allocation7], %s46
      %s48 = sshll.u32 [#allocation6], 4
      %s49 = int_to_ptr.vmem [resolvable:$true] %s48
      %54 = dma.hbm_to_vmem [thread:$0]  %s1, 256, %s49, [#allocation7], 128, 128, 8
    $region9: #{hgin_forward.12} parent=1 // pred_fallthru
      _
    // Predicated region
    $region10: #{hgin_forward.12} parent=1 // pred_check
      _
    $region11: #{hgin_forward.12} parent=1 // pred_check_branch
      %56 = sbr.rel (0) target = $region13
    $region12: #{hgin_forward.12} parent=1 // pred_region
      %s58 = ssub.s32 384, 384
      %59 = vsyncadd [#allocation7], %s58
      %s60 = sshll.u32 [#allocation8], 4
      %s61 = int_to_ptr.vmem [resolvable:$true] %s60
      %66 = dma.hbm_to_vmem [thread:$0]  %s2, 384, %s61, [#allocation7], 128, 128, 8
    $region13: #{hgin_forward.12} parent=1 // pred_fallthru
      _
    // Predicated region
    $region14: #{hgin_forward.12} parent=1 // pred_check
      _
    $region15: #{hgin_forward.12} parent=1 // pred_check_branch
      %68 = sbr.rel (0) target = $region17
    $region16: #{hgin_forward.12} parent=1 // pred_region
      %s70 = ssub.s32 256, 256
      %71 = vsyncadd [#allocation10], %s70
      %s72 = sshll.u32 [#allocation9], 4
      %s73 = int_to_ptr.vmem [resolvable:$true] %s72
      %78 = dma.hbm_to_vmem [thread:$0]  %s3, 256, %s73, [#allocation10], 128, 128, 8
    $region17: #{hgin_forward.12} parent=1 // pred_fallthru
      _
    // Predicated region
    $region18: #{hgin_forward.12} parent=1 // pred_check
      _
    $region19: #{hgin_forward.12} parent=1 // pred_check_branch
      %80 = sbr.rel (0) target = $region21
    $region20: #{hgin_forward.12} parent=1 // pred_region
      %s82 = ssub.s32 384, 384
      %83 = vsyncadd [#allocation10], %s82
      %s84 = sshll.u32 [#allocation11], 4
      %s85 = int_to_ptr.vmem [resolvable:$true] %s84
      %90 = dma.hbm_to_vmem [thread:$0]  %s4, 384, %s85, [#allocation10], 128, 128, 8
    $region21: #{hgin_forward.12} parent=1 // pred_fallthru
      _
    // Predicated region
    $region22: #{hgin_forward.12} parent=1 // pred_check
      _
    $region23: #{hgin_forward.12} parent=1 // pred_check_branch
      %92 = sbr.rel (0) target = $region25
    $region24: #{hgin_forward.12} parent=1 // pred_region
      %s94 = ssub.s32 512, 512
      %95 = vsyncadd [#allocation13], %s94
      %s96 = sshll.u32 [#allocation12], 4
      %s97 = int_to_ptr.vmem [resolvable:$true] %s96
      %102 = dma.hbm_to_vmem [thread:$0]  %s5, 512, %s97, [#allocation13], 128, 128, 8
    $region25: #{hgin_forward.12} parent=1 // pred_fallthru
      _
    // Predicated region
    $region26: #{hgin_forward.12} parent=1 // pred_check
      _
    $region27: #{hgin_forward.12} parent=1 // pred_check_branch
      %104 = sbr.rel (0) target = $region29
    $region28: #{hgin_forward.12} parent=1 // pred_region
      %s106 = ssub.s32 16, 16
      %107 = vsyncadd [#allocation13], %s106
      %s109 = sshll.u32 [#allocation14], 4
      %s110 = int_to_ptr.vmem [resolvable:$true] %s109
      %112 = dma.hbm_to_vmem [thread:$0]  %s6, 16, %s110, [#allocation13]
    $region29: #{hgin_forward.12} parent=1 // pred_fallthru
      _
    // Predicated region
    $region30: #{hgin_forward.12} parent=1 // pred_check
      _
    $region31: #{hgin_forward.12} parent=1 // pred_check_branch
      %114 = sbr.rel (0) target = $region33
    $region32: #{hgin_forward.12} parent=1 // pred_region
      _
    $region33: #{hgin_forward.12} parent=1 // pred_fallthru
      _
    // Predicated region
    $region34: #{hgin_forward.12} parent=1 // pred_check
      _
    $region35: #{hgin_forward.12} parent=1 // pred_check_branch
      %116 = sbr.rel (0) target = $region37
    $region36: #{hgin_forward.12} parent=1 // pred_region
      %s118 = ssub.s32 512, 512
      %119 = vsyncadd [#allocation16], %s118
      %s120 = sshll.u32 [#allocation15], 4
      %s121 = int_to_ptr.vmem [resolvable:$true] %s120
      %126 = dma.hbm_to_vmem [thread:$0]  %s8, 512, %s121, [#allocation16], 128, 128, 8
    $region37: #{hgin_forward.12} parent=1 // pred_fallthru
      _
    // Predicated region
    $region38: #{hgin_forward.12} parent=1 // pred_check
      _
    $region39: #{hgin_forward.12} parent=1 // pred_check_branch
      %128 = sbr.rel (0) target = $region41
    $region40: #{hgin_forward.12} parent=1 // pred_region
      %s130 = ssub.s32 16, 16
      %131 = vsyncadd [#allocation16], %s130
      %s133 = sshll.u32 [#allocation17], 4
      %s134 = int_to_ptr.vmem [resolvable:$true] %s133
      %136 = dma.hbm_to_vmem [thread:$0]  %s9, 16, %s134, [#allocation16]
    $region41: #{hgin_forward.12} parent=1 // pred_fallthru
      _
    // Predicated region
    $region42: #{hgin_forward.12} parent=1 // pred_check
      _
    $region43: #{hgin_forward.12} parent=1 // pred_check_branch
      %138 = sbr.rel (0) target = $region45
    $region44: #{hgin_forward.12} parent=1 // pred_region
      %s140 = ssub.s32 16, 16
      %141 = vsyncadd [#allocation19], %s140
      %s143 = sshll.u32 [#allocation18], 4
      %s144 = int_to_ptr.vmem [resolvable:$true] %s143
      %146 = dma.hbm_to_vmem [thread:$0]  %s10, 16, %s144, [#allocation19]
    $region45: #{hgin_forward.12} parent=1 // pred_fallthru
      _
    // Predicated region
    $region46: #{hgin_forward.12} parent=1 // pred_check
      _
    $region47: #{hgin_forward.12} parent=1 // pred_check_branch
      %148 = sbr.rel (0) target = $region49
    $region48: #{hgin_forward.12} parent=1 // pred_region
      %s150 = ssub.s32 16, 16
      %151 = vsyncadd [#allocation19], %s150
      %s153 = sshll.u32 [#allocation20], 4
      %s154 = int_to_ptr.vmem [resolvable:$true] %s153
      %156 = dma.hbm_to_vmem [thread:$0]  %s11, 16, %s154, [#allocation19]
    $region49: #{hgin_forward.12} parent=1 // pred_fallthru
      _
    // Predicated region
    $region50: #{hgin_forward.12} parent=1 // pred_check
      _
    $region51: #{hgin_forward.12} parent=1 // pred_check_branch
      %158 = sbr.rel (0) target = $region53
    $region52: #{hgin_forward.12} parent=1 // pred_region
      %s160 = ssub.s32 16, 16
      %161 = vsyncadd [#allocation22], %s160
      %s163 = sshll.u32 [#allocation21], 4
      %s164 = int_to_ptr.vmem [resolvable:$true] %s163
      %166 = dma.hbm_to_vmem [thread:$0]  %s12, 16, %s164, [#allocation22]
    $region53: #{hgin_forward.12} parent=1 // pred_fallthru
      _
    // Predicated region
    $region54: #{hgin_forward.12} parent=1 // pred_check
      _
    $region55: #{hgin_forward.12} parent=1 // pred_check_branch
      %168 = sbr.rel (0) target = $region57
    $region56: #{hgin_forward.12} parent=1 // pred_region
      %s170 = ssub.s32 16, 16
      %171 = vsyncadd [#allocation22], %s170
      %s173 = sshll.u32 [#allocation23], 4
      %s174 = int_to_ptr.vmem [resolvable:$true] %s173
      %176 = dma.hbm_to_vmem [thread:$0]  %s13, 16, %s174, [#allocation22]
    $region57: #{hgin_forward.12} parent=1 // pred_fallthru
      _
    // Predicated region
    $region58: #{hgin_forward.12} parent=1 // pred_check
      _
    $region59: #{hgin_forward.12} parent=1 // pred_check_branch
      %178 = sbr.rel (0) target = $region61
    $region60: #{hgin_forward.12} parent=1 // pred_region
      %s180 = ssub.s32 512, 512
      %181 = vsyncadd [#allocation25], %s180
      %s182 = sshll.u32 [#allocation24], 4
      %s183 = int_to_ptr.vmem [resolvable:$true] %s182
      %188 = dma.hbm_to_vmem [thread:$0]  %s14, 512, %s183, [#allocation25], 128, 128, 8
    $region61: #{hgin_forward.12} parent=1 // pred_fallthru
      _
    // Predicated region
    $region62: #{hgin_forward.12} parent=1 // pred_check
      _
    $region63: #{hgin_forward.12} parent=1 // pred_check_branch
      %190 = sbr.rel (0) target = $region65
    $region64: #{hgin_forward.12} parent=1 // pred_region
      %s192 = ssub.s32 16, 16
      %193 = vsyncadd [#allocation25], %s192
      %s195 = sshll.u32 [#allocation26], 4
      %s196 = int_to_ptr.vmem [resolvable:$true] %s195
      %198 = dma.hbm_to_vmem [thread:$0]  %s15, 16, %s196, [#allocation25]
    $region65: #{hgin_forward.12} parent=1 // pred_fallthru
      _
    // Predicated region
    $region66: #{hgin_forward.12} parent=1 // pred_check
      _
    $region67: #{hgin_forward.12} parent=1 // pred_check_branch
      %200 = sbr.rel (0) target = $region69
    $region68: #{hgin_forward.12} parent=1 // pred_region
      %201 = dma.done [#allocation4], 384
    $region69: #{hgin_forward.12} parent=1 // pred_fallthru
      _
    // Predicated region
    $region70: #{hgin_forward.12} parent=1 // pred_check
      _
    $region71: #{hgin_forward.12} parent=1 // pred_check_branch
      %203 = sbr.rel (0) target = $region73
    $region72: #{hgin_forward.12} parent=1 // pred_region
      %204 = dma.done [#allocation7], 256
    $region73: #{hgin_forward.12} parent=1 // pred_fallthru
      _
    // Predicated region
    $region74: #{hgin_forward.12} parent=1 // pred_check
      _
    $region75: #{hgin_forward.12} parent=1 // pred_check_branch
      %206 = sbr.rel (0) target = $region77
    $region76: #{hgin_forward.12} parent=1 // pred_region
      %207 = dma.done [#allocation7], 384
    $region77: #{hgin_forward.12} parent=1 // pred_fallthru
      _
    // Predicated region
    $region78: #{hgin_forward.12} parent=1 // pred_check
      _
    $region79: #{hgin_forward.12} parent=1 // pred_check_branch
      %209 = sbr.rel (0) target = $region81
    $region80: #{hgin_forward.12} parent=1 // pred_region
      %210 = dma.done [#allocation10], 256
    $region81: #{hgin_forward.12} parent=1 // pred_fallthru
      _
    // Predicated region
    $region82: #{hgin_forward.12} parent=1 // pred_check
      _
    $region83: #{hgin_forward.12} parent=1 // pred_check_branch
      %212 = sbr.rel (0) target = $region85
    $region84: #{hgin_forward.12} parent=1 // pred_region
      %213 = dma.done [#allocation10], 384
    $region85: #{hgin_forward.12} parent=1 // pred_fallthru
      _
    // Predicated region
    $region86: #{hgin_forward.12} parent=1 // pred_check
      _
    $region87: #{hgin_forward.12} parent=1 // pred_check_branch
      %215 = sbr.rel (0) target = $region89
    $region88: #{hgin_forward.12} parent=1 // pred_region
      %216 = dma.done [#allocation13], 512
    $region89: #{hgin_forward.12} parent=1 // pred_fallthru
      _
    // Predicated region
    $region90: #{hgin_forward.12} parent=1 // pred_check
      _
    $region91: #{hgin_forward.12} parent=1 // pred_check_branch
      %218 = sbr.rel (0) target = $region93
    $region92: #{hgin_forward.12} parent=1 // pred_region
      %219 = dma.done [#allocation13], 16
    $region93: #{hgin_forward.12} parent=1 // pred_fallthru
      _
    // Predicated region
    $region94: #{hgin_forward.12} parent=1 // pred_check
      _
    $region95: #{hgin_forward.12} parent=1 // pred_check_branch
      %221 = sbr.rel (0) target = $region97
    $region96: #{hgin_forward.12} parent=1 // pred_region
      %222 = dma.done [#allocation16], 512
    $region97: #{hgin_forward.12} parent=1 // pred_fallthru
      _
    // Predicated region
    $region98: #{hgin_forward.12} parent=1 // pred_check
      _
    $region99: #{hgin_forward.12} parent=1 // pred_check_branch
      %224 = sbr.rel (0) target = $region101
    $region100: #{hgin_forward.12} parent=1 // pred_region
      %225 = dma.done [#allocation16], 16
    $region101: #{hgin_forward.12} parent=1 // pred_fallthru
      _
    // Predicated region
    $region102: #{hgin_forward.12} parent=1 // pred_check
      _
    $region103: #{hgin_forward.12} parent=1 // pred_check_branch
      %227 = sbr.rel (0) target = $region105
    $region104: #{hgin_forward.12} parent=1 // pred_region
      %228 = dma.done [#allocation19], 16
    $region105: #{hgin_forward.12} parent=1 // pred_fallthru
      _
    // Predicated region
    $region106: #{hgin_forward.12} parent=1 // pred_check
      _
    $region107: #{hgin_forward.12} parent=1 // pred_check_branch
      %230 = sbr.rel (0) target = $region109
    $region108: #{hgin_forward.12} parent=1 // pred_region
      %231 = dma.done [#allocation19], 16
    $region109: #{hgin_forward.12} parent=1 // pred_fallthru
      _
    // Predicated region
    $region110: #{hgin_forward.12} parent=1 // pred_check
      _
    $region111: #{hgin_forward.12} parent=1 // pred_check_branch
      %233 = sbr.rel (0) target = $region113
    $region112: #{hgin_forward.12} parent=1 // pred_region
      %234 = dma.done [#allocation22], 16
    $region113: #{hgin_forward.12} parent=1 // pred_fallthru
      _
    // Predicated region
    $region114: #{hgin_forward.12} parent=1 // pred_check
      _
    $region115: #{hgin_forward.12} parent=1 // pred_check_branch
      %236 = sbr.rel (0) target = $region117
    $region116: #{hgin_forward.12} parent=1 // pred_region
      %237 = dma.done [#allocation22], 16
    $region117: #{hgin_forward.12} parent=1 // pred_fallthru
      _
    // Predicated region
    $region118: #{hgin_forward.12} parent=1 // pred_check
      _
    $region119: #{hgin_forward.12} parent=1 // pred_check_branch
      %239 = sbr.rel (0) target = $region121
    $region120: #{hgin_forward.12} parent=1 // pred_region
      %240 = dma.done [#allocation25], 512
    $region121: #{hgin_forward.12} parent=1 // pred_fallthru
      _
    // Predicated region
    $region122: #{hgin_forward.12} parent=1 // pred_check
      _
    $region123: #{hgin_forward.12} parent=1 // pred_check_branch
      %242 = sbr.rel (0) target = $region125
    $region124: #{hgin_forward.12} parent=1 // pred_region
      %243 = dma.done [#allocation25], 16
    $region125: #{hgin_forward.12} parent=1 // pred_fallthru
      _
    %v244 = vld [vmem:[#allocation6] sm:$0xff]
    %v245 = vld [vmem:[#allocation6 + $0x8] sm:$0xff]
    %v246 = vld [vmem:[#allocation3] sm:$0xff]
    %v247 = vld [vmem:[#allocation3 + $0x8] sm:$0xff]
    %v248 = vld [vmem:[#allocation3 + $0x10] sm:$0xff]
    %v249 = vld [vmem:[#allocation9] sm:$0xff]
    %v250 = vld [vmem:[#allocation9 + $0x8] sm:$0xff]
    %v251 = vld [vmem:[#allocation8] sm:$0xff]
    %v252 = vld [vmem:[#allocation8 + $0x8] sm:$0xff]
    %v253 = vld [vmem:[#allocation8 + $0x10] sm:$0xff]
    %vm254 = vcmask 130048
    %v256 = vsel %vm254, %v251, 0
    %v259 = vsel %vm254, %v252, 0
    %v262 = vsel %vm254, %v253, 0
    %264 = vmatprep.subr.mxu0 0.0
    %265 = vmatpush1.msra.mxu0 %v249
    %266 = vmatprep.subr.mxu0 0.0
    %267 = vmatpush1.msra.mxu0 %v250
    %268 = vmatprep.subr.mxu0 0.0
    %269 = vmatpush1.msra.mxu0 0.0
    %270 = vmatprep.subr.mxu0 0.0
    %271 = vmatpush1.msra.mxu0 0.0
    %272 = vmatprep.subr.mxu0 0.0
    %273 = vmatpush1.msra.mxu0 0.0
    %274 = vmatprep.subr.mxu0 0.0
    %275 = vmatpush1.msra.mxu0 0.0
    %276 = vmatprep.subr.mxu0 0.0
    %277 = vmatpush1.msra.mxu0 0.0
    %278 = vmatprep.subr.mxu0 0.0
    %279 = vmatpush1.msra.mxu0 0.0
    %280 = vmatprep.subr.mxu0 0.0
    %281 = vmatpush1.msra.mxu0 0.0
    %282 = vmatprep.subr.mxu0 0.0
    %283 = vmatpush1.msra.mxu0 0.0
    %284 = vmatprep.subr.mxu0 0.0
    %285 = vmatpush1.msra.mxu0 0.0
    %286 = vmatprep.subr.mxu0 0.0
    %287 = vmatpush1.msra.mxu0 0.0
    %288 = vmatprep.subr.mxu0 0.0
    %289 = vmatpush1.msra.mxu0 0.0
    %290 = vmatprep.subr.mxu0 0.0
    %291 = vmatpush1.msra.mxu0 0.0
    %292 = vmatprep.subr.mxu0 0.0
    %293 = vmatpush1.msra.mxu0 0.0
    %294 = vmatprep.subr.mxu0 0.0
    %295 = vmatpush1.msra.mxu0 0.0
    %296 = vmatprep.subr.mxu0 0.0
    %297 = vmatpush1.msra.mxu0 0.0
    %298 = vmatprep.subr.mxu0 0.0
    %299 = vmatpush1.msra.mxu0 0.0
    %300 = vmatprep.subr.mxu0 0.0
    %301 = vmatpush1.msra.mxu0 0.0
    %302 = vmatprep.subr.mxu0 0.0
    %303 = vmatpush1.msra.mxu0 0.0
    %304 = vmatprep.subr.mxu0 0.0
    %305 = vmatpush1.msra.mxu0 0.0
    %306 = vmatprep.subr.mxu0 0.0
    %307 = vmatpush1.msra.mxu0 0.0
    %308 = vmatprep.subr.mxu0 0.0
    %309 = vmatpush1.msra.mxu0 0.0
    %310 = vmatprep.subr.mxu0 0.0
    %311 = vmatpush1.msra.mxu0 0.0
    %312 = vmatprep.subr.mxu0 0.0
    %313 = vmatpush1.msra.mxu0 0.0
    %314 = vmatprep.subr.mxu0 0.0
    %315 = vmatpush1.msra.mxu0 0.0
    %316 = vmatprep.subr.mxu0 0.0
    %317 = vmatpush1.msra.mxu0 0.0
    %318 = vmatprep.subr.mxu0 0.0
    %319 = vmatpush1.msra.mxu0 0.0
    %320 = vmatprep.subr.mxu0 0.0
    %321 = vmatpush1.msra.mxu0 0.0
    %322 = vmatprep.subr.mxu0 0.0
    %323 = vmatpush1.msra.mxu0 0.0
    %324 = vmatprep.subr.mxu0 0.0
    %325 = vmatpush1.msra.mxu0 0.0
    %326 = vmatprep.subr.mxu0 0.0
    %327 = vmatpush1.msra.mxu0 0.0
    %328 = vmatprep.mubr.f32.mxu0 0.0
    %329 = vmatmul.mubr.f32.gmra.mrb[0].mxu0 %v256
    %v330 = vpop.f32.mrb[0].mxu0
    %v331 = vadd.f32 0.0, %v330
    %v332 = vpop.f32.mrb[0].mxu0
    %333 = vmatprep.mubr.f32.mxu0 0.0
    %334 = vmatmul.mubr.f32.gmra.mrb[0].mxu0 %v259
    %v335 = vpop.f32.mrb[0].mxu0
    %v336 = vadd.f32 0.0, %v335
    %v337 = vpop.f32.mrb[0].mxu0
    %338 = vmatprep.mubr.f32.mxu0 0.0
    %339 = vmatmul.mubr.f32.gmra.mrb[0].mxu0 %v262
    %v340 = vpop.f32.mrb[0].mxu0
    %v341 = vadd.f32 0.0, %v340
    %v342 = vpop.f32.mrb[0].mxu0
    %343 = vdwg.mxu0
    %v345 = vsel %vm254, %v246, 0
    %v348 = vsel %vm254, %v247, 0
    %v351 = vsel %vm254, %v248, 0
    %353 = vmatprep.subr.mxu0 0.0
    %354 = vmatpush1.msra.mxu0 %v244
    %355 = vmatprep.subr.mxu0 0.0
    %356 = vmatpush1.msra.mxu0 %v245
    %357 = vmatprep.subr.mxu0 0.0
    %358 = vmatpush1.msra.mxu0 0.0
    %359 = vmatprep.subr.mxu0 0.0
    %360 = vmatpush1.msra.mxu0 0.0
    %361 = vmatprep.subr.mxu0 0.0
    %362 = vmatpush1.msra.mxu0 0.0
    %363 = vmatprep.subr.mxu0 0.0
    %364 = vmatpush1.msra.mxu0 0.0
    %365 = vmatprep.subr.mxu0 0.0
    %366 = vmatpush1.msra.mxu0 0.0
    %367 = vmatprep.subr.mxu0 0.0
    %368 = vmatpush1.msra.mxu0 0.0
    %369 = vmatprep.subr.mxu0 0.0
    %370 = vmatpush1.msra.mxu0 0.0
    %371 = vmatprep.subr.mxu0 0.0
    %372 = vmatpush1.msra.mxu0 0.0
    %373 = vmatprep.subr.mxu0 0.0
    %374 = vmatpush1.msra.mxu0 0.0
    %375 = vmatprep.subr.mxu0 0.0
    %376 = vmatpush1.msra.mxu0 0.0
    %377 = vmatprep.subr.mxu0 0.0
    %378 = vmatpush1.msra.mxu0 0.0
    %379 = vmatprep.subr.mxu0 0.0
    %380 = vmatpush1.msra.mxu0 0.0
    %381 = vmatprep.subr.mxu0 0.0
    %382 = vmatpush1.msra.mxu0 0.0
    %383 = vmatprep.subr.mxu0 0.0
    %384 = vmatpush1.msra.mxu0 0.0
    %385 = vmatprep.subr.mxu0 0.0
    %386 = vmatpush1.msra.mxu0 0.0
    %387 = vmatprep.subr.mxu0 0.0
    %388 = vmatpush1.msra.mxu0 0.0
    %389 = vmatprep.subr.mxu0 0.0
    %390 = vmatpush1.msra.mxu0 0.0
    %391 = vmatprep.subr.mxu0 0.0
    %392 = vmatpush1.msra.mxu0 0.0
    %393 = vmatprep.subr.mxu0 0.0
    %394 = vmatpush1.msra.mxu0 0.0
    %395 = vmatprep.subr.mxu0 0.0
    %396 = vmatpush1.msra.mxu0 0.0
    %397 = vmatprep.subr.mxu0 0.0
    %398 = vmatpush1.msra.mxu0 0.0
    %399 = vmatprep.subr.mxu0 0.0
    %400 = vmatpush1.msra.mxu0 0.0
    %401 = vmatprep.subr.mxu0 0.0
    %402 = vmatpush1.msra.mxu0 0.0
    %403 = vmatprep.subr.mxu0 0.0
    %404 = vmatpush1.msra.mxu0 0.0
    %405 = vmatprep.subr.mxu0 0.0
    %406 = vmatpush1.msra.mxu0 0.0
    %407 = vmatprep.subr.mxu0 0.0
    %408 = vmatpush1.msra.mxu0 0.0
    %409 = vmatprep.subr.mxu0 0.0
    %410 = vmatpush1.msra.mxu0 0.0
    %411 = vmatprep.subr.mxu0 0.0
    %412 = vmatpush1.msra.mxu0 0.0
    %413 = vmatprep.subr.mxu0 0.0
    %414 = vmatpush1.msra.mxu0 0.0
    %415 = vmatprep.subr.mxu0 0.0
    %416 = vmatpush1.msra.mxu0 0.0
    %417 = vmatprep.mubr.f32.mxu0 0.0
    %418 = vmatmul.mubr.f32.gmra.mrb[0].mxu0 %v345
    %v419 = vpop.f32.mrb[0].mxu0
    %v420 = vadd.f32 %v331, %v419
    %v421 = vpop.f32.mrb[0].mxu0
    %422 = vmatprep.mubr.f32.mxu0 0.0
    %423 = vmatmul.mubr.f32.gmra.mrb[0].mxu0 %v348
    %v424 = vpop.f32.mrb[0].mxu0
    %v425 = vadd.f32 %v336, %v424
    %v426 = vpop.f32.mrb[0].mxu0
    %427 = vmatprep.mubr.f32.mxu0 0.0
    %428 = vmatmul.mubr.f32.gmra.mrb[0].mxu0 %v351
    %v429 = vpop.f32.mrb[0].mxu0
    %v430 = vadd.f32 %v341, %v429
    %v431 = vpop.f32.mrb[0].mxu0
    %432 = vdwg.mxu0
    %v433 = vld [vmem:[#allocation11] sm:$0xff]
    %v434 = vld [vmem:[#allocation11 + $0x8] sm:$0xff]
    %v435 = vld [vmem:[#allocation11 + $0x10] sm:$0xff]
    %vm436 = vcmp.ge.f32.partialorder %v433, 0.0
    %vm437 = vcmp.ge.f32.partialorder %v434, 0.0
    %vm438 = vcmp.ge.f32.partialorder %v435, 0.0
    %v439 = vmul.f32 %v433, 0.01
    %v440 = vmul.f32 %v434, 0.01
    %v441 = vmul.f32 %v435, 0.01
    %v442 = vsel %vm436, %v433, %v439
    %v443 = vsel %vm437, %v434, %v440
    %v444 = vsel %vm438, %v435, %v441
    %v445 = vld [vmem:[#allocation12] sm:$0xff]
    %v446 = vld [vmem:[#allocation12 + $0x8] sm:$0xff]
    %v447 = vld [vmem:[#allocation12 + $0x10] sm:$0xff]
    %v448 = vld [vmem:[#allocation12 + $0x18] sm:$0xff]
    %v449 = vld [vmem:[#allocation14] sm:$0x1]
    %v451 = vlaneseq
    %v452 = vshrl.u32 %v451, 7
    %v453 = vsub.s32 0, %v452
    %v454 = vrot.slane %v449, %v453
    %vm456 = vcmask 261120
    %v458 = vsel %vm456, %v442, 0
    %v461 = vsel %vm456, %v443, 0
    %v464 = vsel %vm456, %v444, 0
    %466 = vmatprep.subr.mxu0 0.0
    %467 = vmatpush1.msra.mxu0 %v445
    %468 = vmatprep.subr.mxu0 0.0
    %469 = vmatpush1.msra.mxu0 %v446
    %470 = vmatprep.subr.mxu0 0.0
    %471 = vmatpush1.msra.mxu0 %v447
    %472 = vmatprep.subr.mxu0 0.0
    %473 = vmatpush1.msra.mxu0 %v448
    %474 = vmatprep.subr.mxu0 0.0
    %475 = vmatpush1.msra.mxu0 0.0
    %476 = vmatprep.subr.mxu0 0.0
    %477 = vmatpush1.msra.mxu0 0.0
    %478 = vmatprep.subr.mxu0 0.0
    %479 = vmatpush1.msra.mxu0 0.0
    %480 = vmatprep.subr.mxu0 0.0
    %481 = vmatpush1.msra.mxu0 0.0
    %482 = vmatprep.subr.mxu0 0.0
    %483 = vmatpush1.msra.mxu0 0.0
    %484 = vmatprep.subr.mxu0 0.0
    %485 = vmatpush1.msra.mxu0 0.0
    %486 = vmatprep.subr.mxu0 0.0
    %487 = vmatpush1.msra.mxu0 0.0
    %488 = vmatprep.subr.mxu0 0.0
    %489 = vmatpush1.msra.mxu0 0.0
    %490 = vmatprep.subr.mxu0 0.0
    %491 = vmatpush1.msra.mxu0 0.0
    %492 = vmatprep.subr.mxu0 0.0
    %493 = vmatpush1.msra.mxu0 0.0
    %494 = vmatprep.subr.mxu0 0.0
    %495 = vmatpush1.msra.mxu0 0.0
    %496 = vmatprep.subr.mxu0 0.0
    %497 = vmatpush1.msra.mxu0 0.0
    %498 = vmatprep.subr.mxu0 0.0
    %499 = vmatpush1.msra.mxu0 0.0
    %500 = vmatprep.subr.mxu0 0.0
    %501 = vmatpush1.msra.mxu0 0.0
    %502 = vmatprep.subr.mxu0 0.0
    %503 = vmatpush1.msra.mxu0 0.0
    %504 = vmatprep.subr.mxu0 0.0
    %505 = vmatpush1.msra.mxu0 0.0
    %506 = vmatprep.subr.mxu0 0.0
    %507 = vmatpush1.msra.mxu0 0.0
    %508 = vmatprep.subr.mxu0 0.0
    %509 = vmatpush1.msra.mxu0 0.0
    %510 = vmatprep.subr.mxu0 0.0
    %511 = vmatpush1.msra.mxu0 0.0
    %512 = vmatprep.subr.mxu0 0.0
    %513 = vmatpush1.msra.mxu0 0.0
    %514 = vmatprep.subr.mxu0 0.0
    %515 = vmatpush1.msra.mxu0 0.0
    %516 = vmatprep.subr.mxu0 0.0
    %517 = vmatpush1.msra.mxu0 0.0
    %518 = vmatprep.subr.mxu0 0.0
    %519 = vmatpush1.msra.mxu0 0.0
    %520 = vmatprep.subr.mxu0 0.0
    %521 = vmatpush1.msra.mxu0 0.0
    %522 = vmatprep.subr.mxu0 0.0
    %523 = vmatpush1.msra.mxu0 0.0
    %524 = vmatprep.subr.mxu0 0.0
    %525 = vmatpush1.msra.mxu0 0.0
    %526 = vmatprep.subr.mxu0 0.0
    %527 = vmatpush1.msra.mxu0 0.0
    %528 = vmatprep.subr.mxu0 0.0
    %529 = vmatpush1.msra.mxu0 0.0
    %530 = vmatprep.mubr.f32.mxu0 0.0
    %531 = vmatmul.mubr.f32.gmra.mrb[0].mxu0 %v458
    %v532 = vpop.f32.mrb[0].mxu0
    %v533 = vadd.f32 %v454, %v532
    %v534 = vpop.f32.mrb[0].mxu0
    %535 = vmatprep.mubr.f32.mxu0 0.0
    %536 = vmatmul.mubr.f32.gmra.mrb[0].mxu0 %v461
    %v537 = vpop.f32.mrb[0].mxu0
    %v538 = vadd.f32 %v454, %v537
    %v539 = vpop.f32.mrb[0].mxu0
    %540 = vmatprep.mubr.f32.mxu0 0.0
    %541 = vmatmul.mubr.f32.gmra.mrb[0].mxu0 %v464
    %v542 = vpop.f32.mrb[0].mxu0
    %v543 = vadd.f32 %v454, %v542
    %v544 = vpop.f32.mrb[0].mxu0
    %545 = vdwg.mxu0
    %s546 = sld [smem:[#allocation2]]
    %s547 = sadd.f32 %s546, 1.0
    %v548 = vstv %s547
    %v549 = vmul.f32 %v548, %v533
    %v550 = vmul.f32 %v548, %v538
    %v551 = vmul.f32 %v548, %v543
    %v552 = vadd.f32 %v549, %v420
    %v553 = vadd.f32 %v550, %v425
    %v554 = vadd.f32 %v551, %v430
    %v555 = vld [vmem:[#allocation18] sm:$0x1]
    %v556 = vld [vmem:[#allocation23] sm:$0x1]
    %v557 = vadd.f32 %v556, 1e-05
    %v558 = vrsqrt.pop %v557
    %v559 = vmul.f32 %v555, %v558
    %v560 = vld [vmem:[#allocation20] sm:$0x1]
    %v561 = vld [vmem:[#allocation21] sm:$0x1]
    %v562 = vmul.f32 %v561, %v559
    %v563 = vsub.f32 %v560, %v562
    %v564 = vld [vmem:[#allocation15] sm:$0xff]
    %v565 = vld [vmem:[#allocation15 + $0x8] sm:$0xff]
    %v566 = vld [vmem:[#allocation15 + $0x10] sm:$0xff]
    %v567 = vld [vmem:[#allocation15 + $0x18] sm:$0xff]
    %v568 = vld [vmem:[#allocation17] sm:$0x1]
    %v570 = vlaneseq
    %v571 = vshrl.u32 %v570, 7
    %v572 = vsub.s32 0, %v571
    %v573 = vrot.slane %v568, %v572
    %v576 = vsel %vm456, %v552, 0
    %v579 = vsel %vm456, %v553, 0
    %v582 = vsel %vm456, %v554, 0
    %584 = vmatprep.subr.mxu0 0.0
    %585 = vmatpush1.msra.mxu0 %v564
    %586 = vmatprep.subr.mxu0 0.0
    %587 = vmatpush1.msra.mxu0 %v565
    %588 = vmatprep.subr.mxu0 0.0
    %589 = vmatpush1.msra.mxu0 %v566
    %590 = vmatprep.subr.mxu0 0.0
    %591 = vmatpush1.msra.mxu0 %v567
    %592 = vmatprep.subr.mxu0 0.0
    %593 = vmatpush1.msra.mxu0 0.0
    %594 = vmatprep.subr.mxu0 0.0
    %595 = vmatpush1.msra.mxu0 0.0
    %596 = vmatprep.subr.mxu0 0.0
    %597 = vmatpush1.msra.mxu0 0.0
    %598 = vmatprep.subr.mxu0 0.0
    %599 = vmatpush1.msra.mxu0 0.0
    %600 = vmatprep.subr.mxu0 0.0
    %601 = vmatpush1.msra.mxu0 0.0
    %602 = vmatprep.subr.mxu0 0.0
    %603 = vmatpush1.msra.mxu0 0.0
    %604 = vmatprep.subr.mxu0 0.0
    %605 = vmatpush1.msra.mxu0 0.0
    %606 = vmatprep.subr.mxu0 0.0
    %607 = vmatpush1.msra.mxu0 0.0
    %608 = vmatprep.subr.mxu0 0.0
    %609 = vmatpush1.msra.mxu0 0.0
    %610 = vmatprep.subr.mxu0 0.0
    %611 = vmatpush1.msra.mxu0 0.0
    %612 = vmatprep.subr.mxu0 0.0
    %613 = vmatpush1.msra.mxu0 0.0
    %614 = vmatprep.subr.mxu0 0.0
    %615 = vmatpush1.msra.mxu0 0.0
    %616 = vmatprep.subr.mxu0 0.0
    %617 = vmatpush1.msra.mxu0 0.0
    %618 = vmatprep.subr.mxu0 0.0
    %619 = vmatpush1.msra.mxu0 0.0
    %620 = vmatprep.subr.mxu0 0.0
    %621 = vmatpush1.msra.mxu0 0.0
    %622 = vmatprep.subr.mxu0 0.0
    %623 = vmatpush1.msra.mxu0 0.0
    %624 = vmatprep.subr.mxu0 0.0
    %625 = vmatpush1.msra.mxu0 0.0
    %626 = vmatprep.subr.mxu0 0.0
    %627 = vmatpush1.msra.mxu0 0.0
    %628 = vmatprep.subr.mxu0 0.0
    %629 = vmatpush1.msra.mxu0 0.0
    %630 = vmatprep.subr.mxu0 0.0
    %631 = vmatpush1.msra.mxu0 0.0
    %632 = vmatprep.subr.mxu0 0.0
    %633 = vmatpush1.msra.mxu0 0.0
    %634 = vmatprep.subr.mxu0 0.0
    %635 = vmatpush1.msra.mxu0 0.0
    %636 = vmatprep.subr.mxu0 0.0
    %637 = vmatpush1.msra.mxu0 0.0
    %638 = vmatprep.subr.mxu0 0.0
    %639 = vmatpush1.msra.mxu0 0.0
    %640 = vmatprep.subr.mxu0 0.0
    %641 = vmatpush1.msra.mxu0 0.0
    %642 = vmatprep.subr.mxu0 0.0
    %643 = vmatpush1.msra.mxu0 0.0
    %644 = vmatprep.subr.mxu0 0.0
    %645 = vmatpush1.msra.mxu0 0.0
    %646 = vmatprep.subr.mxu0 0.0
    %647 = vmatpush1.msra.mxu0 0.0
    %648 = vmatprep.mubr.f32.mxu0 0.0
    %649 = vmatmul.mubr.f32.gmra.mrb[0].mxu0 %v576
    %v650 = vpop.f32.mrb[0].mxu0
    %v651 = vadd.f32 %v573, %v650
    %v652 = vpop.f32.mrb[0].mxu0
    %653 = vmatprep.mubr.f32.mxu0 0.0
    %654 = vmatmul.mubr.f32.gmra.mrb[0].mxu0 %v579
    %v655 = vpop.f32.mrb[0].mxu0
    %v656 = vadd.f32 %v573, %v655
    %v657 = vpop.f32.mrb[0].mxu0
    %658 = vmatprep.mubr.f32.mxu0 0.0
    %659 = vmatmul.mubr.f32.gmra.mrb[0].mxu0 %v582
    %v660 = vpop.f32.mrb[0].mxu0
    %v661 = vadd.f32 %v573, %v660
    %v662 = vpop.f32.mrb[0].mxu0
    %663 = vdwg.mxu0
    %v665 = vlaneseq
    %v666 = vshrl.u32 %v665, 7
    %v667 = vsub.s32 0, %v666
    %v668 = vrot.slane %v559, %v667
    %v670 = vmul.f32 %v651, %v668
    %v671 = vmul.f32 %v656, %v668
    %v672 = vmul.f32 %v661, %v668
    %v674 = vlaneseq
    %v675 = vshrl.u32 %v674, 7
    %v676 = vsub.s32 0, %v675
    %v677 = vrot.slane %v563, %v676
    %v679 = vadd.f32 %v670, %v677
    %v680 = vadd.f32 %v671, %v677
    %v681 = vadd.f32 %v672, %v677
    %v682 = vmax.f32 %v679, 0.0
    %v683 = vmax.f32 %v680, 0.0
    %v684 = vmax.f32 %v681, 0.0
    %v685 = vld [vmem:[#allocation24] sm:$0xff]
    %v686 = vld [vmem:[#allocation24 + $0x8] sm:$0xff]
    %v687 = vld [vmem:[#allocation24 + $0x10] sm:$0xff]
    %v688 = vld [vmem:[#allocation24 + $0x18] sm:$0xff]
    %v689 = vld [vmem:[#allocation26] sm:$0x1]
    %v691 = vlaneseq
    %v692 = vshrl.u32 %v691, 7
    %v693 = vsub.s32 0, %v692
    %v694 = vrot.slane %v689, %v693
    %v697 = vsel %vm456, %v682, 0
    %v700 = vsel %vm456, %v683, 0
    %v703 = vsel %vm456, %v684, 0
    %705 = vmatprep.subr.mxu0 0.0
    %706 = vmatpush1.msra.mxu0 %v685
    %707 = vmatprep.subr.mxu0 0.0
    %708 = vmatpush1.msra.mxu0 %v686
    %709 = vmatprep.subr.mxu0 0.0
    %710 = vmatpush1.msra.mxu0 %v687
    %711 = vmatprep.subr.mxu0 0.0
    %712 = vmatpush1.msra.mxu0 %v688
    %713 = vmatprep.subr.mxu0 0.0
    %714 = vmatpush1.msra.mxu0 0.0
    %715 = vmatprep.subr.mxu0 0.0
    %716 = vmatpush1.msra.mxu0 0.0
    %717 = vmatprep.subr.mxu0 0.0
    %718 = vmatpush1.msra.mxu0 0.0
    %719 = vmatprep.subr.mxu0 0.0
    %720 = vmatpush1.msra.mxu0 0.0
    %721 = vmatprep.subr.mxu0 0.0
    %722 = vmatpush1.msra.mxu0 0.0
    %723 = vmatprep.subr.mxu0 0.0
    %724 = vmatpush1.msra.mxu0 0.0
    %725 = vmatprep.subr.mxu0 0.0
    %726 = vmatpush1.msra.mxu0 0.0
    %727 = vmatprep.subr.mxu0 0.0
    %728 = vmatpush1.msra.mxu0 0.0
    %729 = vmatprep.subr.mxu0 0.0
    %730 = vmatpush1.msra.mxu0 0.0
    %731 = vmatprep.subr.mxu0 0.0
    %732 = vmatpush1.msra.mxu0 0.0
    %733 = vmatprep.subr.mxu0 0.0
    %734 = vmatpush1.msra.mxu0 0.0
    %735 = vmatprep.subr.mxu0 0.0
    %736 = vmatpush1.msra.mxu0 0.0
    %737 = vmatprep.subr.mxu0 0.0
    %738 = vmatpush1.msra.mxu0 0.0
    %739 = vmatprep.subr.mxu0 0.0
    %740 = vmatpush1.msra.mxu0 0.0
    %741 = vmatprep.subr.mxu0 0.0
    %742 = vmatpush1.msra.mxu0 0.0
    %743 = vmatprep.subr.mxu0 0.0
    %744 = vmatpush1.msra.mxu0 0.0
    %745 = vmatprep.subr.mxu0 0.0
    %746 = vmatpush1.msra.mxu0 0.0
    %747 = vmatprep.subr.mxu0 0.0
    %748 = vmatpush1.msra.mxu0 0.0
    %749 = vmatprep.subr.mxu0 0.0
    %750 = vmatpush1.msra.mxu0 0.0
    %751 = vmatprep.subr.mxu0 0.0
    %752 = vmatpush1.msra.mxu0 0.0
    %753 = vmatprep.subr.mxu0 0.0
    %754 = vmatpush1.msra.mxu0 0.0
    %755 = vmatprep.subr.mxu0 0.0
    %756 = vmatpush1.msra.mxu0 0.0
    %757 = vmatprep.subr.mxu0 0.0
    %758 = vmatpush1.msra.mxu0 0.0
    %759 = vmatprep.subr.mxu0 0.0
    %760 = vmatpush1.msra.mxu0 0.0
    %761 = vmatprep.subr.mxu0 0.0
    %762 = vmatpush1.msra.mxu0 0.0
    %763 = vmatprep.subr.mxu0 0.0
    %764 = vmatpush1.msra.mxu0 0.0
    %765 = vmatprep.subr.mxu0 0.0
    %766 = vmatpush1.msra.mxu0 0.0
    %767 = vmatprep.subr.mxu0 0.0
    %768 = vmatpush1.msra.mxu0 0.0
    %769 = vmatprep.mubr.f32.mxu0 0.0
    %770 = vmatmul.mubr.f32.gmra.mrb[0].mxu0 %v697
    %v771 = vpop.f32.mrb[0].mxu0
    %v772 = vadd.f32 %v694, %v771
    %v773 = vpop.f32.mrb[0].mxu0
    %774 = vmatprep.mubr.f32.mxu0 0.0
    %775 = vmatmul.mubr.f32.gmra.mrb[0].mxu0 %v700
    %v776 = vpop.f32.mrb[0].mxu0
    %v777 = vadd.f32 %v694, %v776
    %v778 = vpop.f32.mrb[0].mxu0
    %779 = vmatprep.mubr.f32.mxu0 0.0
    %780 = vmatmul.mubr.f32.gmra.mrb[0].mxu0 %v703
    %v781 = vpop.f32.mrb[0].mxu0
    %v782 = vadd.f32 %v694, %v781
    %v783 = vpop.f32.mrb[0].mxu0
    %784 = vdwg.mxu0
    %785 = vst.msk [vmem:[#allocation27] sm:$0xff] %vm456, %v772
    %786 = vst.msk [vmem:[#allocation27 + $0x8] sm:$0xff] %vm456, %v777
    %787 = vst.msk [vmem:[#allocation27 + $0x10] sm:$0xff] %vm456, %v782
    // Predicated region
    $region126: #{hgin_forward.12} parent=1 // pred_check
      _
    $region127: #{hgin_forward.12} parent=1 // pred_check_branch
      %789 = sbr.rel (0) target = $region129
    $region128: #{hgin_forward.12} parent=1 // pred_region
      %s791 = ssub.s32 384, 384
      %792 = vsyncadd [#allocation5], %s791
      %s793 = sshll.u32 [#allocation27], 4
      %s794 = int_to_ptr.vmem [resolvable:$true] %s793
      %799 = dma.vmem_to_hbm [thread:$0]  %s794, 384, %s16, [#allocation5], 128, 128, 8
    $region129: #{hgin_forward.12} parent=1 // pred_fallthru
      _
    // Predicated region
    $region130: #{hgin_forward.12} parent=1 // pred_check
      _
    $region131: #{hgin_forward.12} parent=1 // pred_check_branch
      %801 = sbr.rel (0) target = $region133
    $region132: #{hgin_forward.12} parent=1 // pred_region
      %802 = dma.done [#allocation5], 384
    $region133: #{hgin_forward.12} parent=1 // pred_fallthru
      _
    %803 = vsyncpa [#allocation4], 1
    %804 = vsyncpa [#allocation7], 1
    %805 = vsyncpa [#allocation10], 1
    %806 = vsyncpa [#allocation13], 1
    %807 = vsyncpa [#allocation16], 1
    %808 = vsyncpa [#allocation19], 1
    %809 = vsyncpa [#allocation22], 1
    %810 = vsyncpa [#allocation25], 1
    %811 = vsyncpa [#allocation5], 1

// kernel: hgin_forward.13
$region0: #{hgin_forward.13}
  #allocation0 [shape = 'u32[]', space=smem, size = 0x4, offset = 0x4, fixed_abs, tag = 'smem constant byte address 0x4 - core index']
  #allocation1 [shape = 'u32[144,128]{1,0:T(1,128)}', space=vmem, size = 0x12000, scoped, tag = 'internal scratch']
  %s0 = inlined_call_operand.hbm [shape: f32[24,32], index: 0, kind: input, shape index: {}]
  %s1 = inlined_call_operand.hbm [shape: f32[32,8], index: 1, kind: input, shape index: {}]
  %s2 = inlined_call_operand.hbm [shape: f32[1,8], index: 2, kind: input, shape index: {}]
  %s3 = inlined_call_operand.hbm [shape: f32[24,8], index: 3, kind: output, shape index: {}]
  %s4 = sld [smem:[#allocation0]]
  $region34: #{hgin_forward.13} parent=0
    _
  %s6 = ssub.s32 1, %s4
  %s7 = scalar_select 0, %s6, %s4
  $region1: #{hgin_forward.13} parent=0
    #allocation2 [shape = 'u8[12288]{0}', space=vmem, size = 0x3000, scoped, tag = 'input window, operand 0, single buffered']
    #allocation3 [shape = 's32[1]{0}', space=sflag, size = 0x4, scoped, tag = 'scoped memory for hgin_forward.13']
    #allocation4 [shape = 's32[1]{0}', space=sflag, size = 0x4, scoped, tag = 'scoped memory for hgin_forward.13']
    #allocation5 [shape = 'u8[16384]{0}', space=vmem, size = 0x4000, scoped, tag = 'input window, operand 1, single buffered']
    #allocation6 [shape = 's32[1]{0}', space=sflag, size = 0x4, scoped, tag = 'scoped memory for hgin_forward.13']
    #allocation7 [shape = 'u8[512]{0}', space=vmem, size = 0x400, scoped, tag = 'input window, operand 2, single buffered']
    #allocation8 [shape = 'u8[12288]{0}', space=vmem, size = 0x3000, scoped, tag = 'output window, operand 0, single buffered']
    %8 = vsyncpa [#allocation3], 0
    %9 = vsyncpa [#allocation6], 0
    %10 = vsyncpa [#allocation4], 0
    // Predicated region
    $region2: #{hgin_forward.13} parent=1 // pred_check
      _
    $region3: #{hgin_forward.13} parent=1 // pred_check_branch
      %12 = sbr.rel (0) target = $region5
    $region4: #{hgin_forward.13} parent=1 // pred_region
      %s14 = ssub.s32 384, 384
      %15 = vsyncadd [#allocation3], %s14
      %s16 = sshll.u32 [#allocation2], 4
      %s17 = int_to_ptr.vmem [resolvable:$true] %s16
      %22 = dma.hbm_to_vmem [thread:$0]  %s0, 384, %s17, [#allocation3], 128, 128, 8
    $region5: #{hgin_forward.13} parent=1 // pred_fallthru
      _
    // Predicated region
    $region6: #{hgin_forward.13} parent=1 // pred_check
      _
    $region7: #{hgin_forward.13} parent=1 // pred_check_branch
      %24 = sbr.rel (0) target = $region9
    $region8: #{hgin_forward.13} parent=1 // pred_region
      %s26 = ssub.s32 512, 512
      %27 = vsyncadd [#allocation6], %s26
      %s28 = sshll.u32 [#allocation5], 4
      %s29 = int_to_ptr.vmem [resolvable:$true] %s28
      %34 = dma.hbm_to_vmem [thread:$0]  %s1, 512, %s29, [#allocation6], 128, 128, 8
    $region9: #{hgin_forward.13} parent=1 // pred_fallthru
      _
    // Predicated region
    $region10: #{hgin_forward.13} parent=1 // pred_check
      _
    $region11: #{hgin_forward.13} parent=1 // pred_check_branch
      %36 = sbr.rel (0) target = $region13
    $region12: #{hgin_forward.13} parent=1 // pred_region
      %s38 = ssub.s32 16, 16
      %39 = vsyncadd [#allocation6], %s38
      %s41 = sshll.u32 [#allocation7], 4
      %s42 = int_to_ptr.vmem [resolvable:$true] %s41
      %44 = dma.hbm_to_vmem [thread:$0]  %s2, 16, %s42, [#allocation6]
    $region13: #{hgin_forward.13} parent=1 // pred_fallthru
      _
    // Predicated region
    $region14: #{hgin_forward.13} parent=1 // pred_check
      _
    $region15: #{hgin_forward.13} parent=1 // pred_check_branch
      %46 = sbr.rel (0) target = $region17
    $region16: #{hgin_forward.13} parent=1 // pred_region
      %47 = dma.done [#allocation3], 384
    $region17: #{hgin_forward.13} parent=1 // pred_fallthru
      _
    // Predicated region
    $region18: #{hgin_forward.13} parent=1 // pred_check
      _
    $region19: #{hgin_forward.13} parent=1 // pred_check_branch
      %49 = sbr.rel (0) target = $region21
    $region20: #{hgin_forward.13} parent=1 // pred_region
      %50 = dma.done [#allocation6], 512
    $region21: #{hgin_forward.13} parent=1 // pred_fallthru
      _
    // Predicated region
    $region22: #{hgin_forward.13} parent=1 // pred_check
      _
    $region23: #{hgin_forward.13} parent=1 // pred_check_branch
      %52 = sbr.rel (0) target = $region25
    $region24: #{hgin_forward.13} parent=1 // pred_region
      %53 = dma.done [#allocation6], 16
    $region25: #{hgin_forward.13} parent=1 // pred_fallthru
      _
    %v54 = vld [vmem:[#allocation2] sm:$0xff]
    %v55 = vld [vmem:[#allocation2 + $0x8] sm:$0xff]
    %v56 = vld [vmem:[#allocation2 + $0x10] sm:$0xff]
    %vm57 = vcmp.ge.f32.partialorder %v54, 0.0
    %vm58 = vcmp.ge.f32.partialorder %v55, 0.0
    %vm59 = vcmp.ge.f32.partialorder %v56, 0.0
    %v60 = vmul.f32 %v54, 0.01
    %v61 = vmul.f32 %v55, 0.01
    %v62 = vmul.f32 %v56, 0.01
    %v63 = vsel %vm57, %v54, %v60
    %v64 = vsel %vm58, %v55, %v61
    %v65 = vsel %vm59, %v56, %v62
    %v66 = vld [vmem:[#allocation5] sm:$0xff]
    %v67 = vld [vmem:[#allocation5 + $0x8] sm:$0xff]
    %v68 = vld [vmem:[#allocation5 + $0x10] sm:$0xff]
    %v69 = vld [vmem:[#allocation5 + $0x18] sm:$0xff]
    %v70 = vld [vmem:[#allocation7] sm:$0x1]
    %v72 = vlaneseq
    %v73 = vshrl.u32 %v72, 7
    %v74 = vsub.s32 0, %v73
    %v75 = vrot.slane %v70, %v74
    %vm77 = vcmask 261120
    %v79 = vsel %vm77, %v63, 0
    %v82 = vsel %vm77, %v64, 0
    %v85 = vsel %vm77, %v65, 0
    %87 = vmatprep.subr.mxu0 0.0
    %88 = vmatpush1.msra.mxu0 %v66
    %89 = vmatprep.subr.mxu0 0.0
    %90 = vmatpush1.msra.mxu0 %v67
    %91 = vmatprep.subr.mxu0 0.0
    %92 = vmatpush1.msra.mxu0 %v68
    %93 = vmatprep.subr.mxu0 0.0
    %94 = vmatpush1.msra.mxu0 %v69
    %95 = vmatprep.subr.mxu0 0.0
    %96 = vmatpush1.msra.mxu0 0.0
    %97 = vmatprep.subr.mxu0 0.0
    %98 = vmatpush1.msra.mxu0 0.0
    %99 = vmatprep.subr.mxu0 0.0
    %100 = vmatpush1.msra.mxu0 0.0
    %101 = vmatprep.subr.mxu0 0.0
    %102 = vmatpush1.msra.mxu0 0.0
    %103 = vmatprep.subr.mxu0 0.0
    %104 = vmatpush1.msra.mxu0 0.0
    %105 = vmatprep.subr.mxu0 0.0
    %106 = vmatpush1.msra.mxu0 0.0
    %107 = vmatprep.subr.mxu0 0.0
    %108 = vmatpush1.msra.mxu0 0.0
    %109 = vmatprep.subr.mxu0 0.0
    %110 = vmatpush1.msra.mxu0 0.0
    %111 = vmatprep.subr.mxu0 0.0
    %112 = vmatpush1.msra.mxu0 0.0
    %113 = vmatprep.subr.mxu0 0.0
    %114 = vmatpush1.msra.mxu0 0.0
    %115 = vmatprep.subr.mxu0 0.0
    %116 = vmatpush1.msra.mxu0 0.0
    %117 = vmatprep.subr.mxu0 0.0
    %118 = vmatpush1.msra.mxu0 0.0
    %119 = vmatprep.subr.mxu0 0.0
    %120 = vmatpush1.msra.mxu0 0.0
    %121 = vmatprep.subr.mxu0 0.0
    %122 = vmatpush1.msra.mxu0 0.0
    %123 = vmatprep.subr.mxu0 0.0
    %124 = vmatpush1.msra.mxu0 0.0
    %125 = vmatprep.subr.mxu0 0.0
    %126 = vmatpush1.msra.mxu0 0.0
    %127 = vmatprep.subr.mxu0 0.0
    %128 = vmatpush1.msra.mxu0 0.0
    %129 = vmatprep.subr.mxu0 0.0
    %130 = vmatpush1.msra.mxu0 0.0
    %131 = vmatprep.subr.mxu0 0.0
    %132 = vmatpush1.msra.mxu0 0.0
    %133 = vmatprep.subr.mxu0 0.0
    %134 = vmatpush1.msra.mxu0 0.0
    %135 = vmatprep.subr.mxu0 0.0
    %136 = vmatpush1.msra.mxu0 0.0
    %137 = vmatprep.subr.mxu0 0.0
    %138 = vmatpush1.msra.mxu0 0.0
    %139 = vmatprep.subr.mxu0 0.0
    %140 = vmatpush1.msra.mxu0 0.0
    %141 = vmatprep.subr.mxu0 0.0
    %142 = vmatpush1.msra.mxu0 0.0
    %143 = vmatprep.subr.mxu0 0.0
    %144 = vmatpush1.msra.mxu0 0.0
    %145 = vmatprep.subr.mxu0 0.0
    %146 = vmatpush1.msra.mxu0 0.0
    %147 = vmatprep.subr.mxu0 0.0
    %148 = vmatpush1.msra.mxu0 0.0
    %149 = vmatprep.subr.mxu0 0.0
    %150 = vmatpush1.msra.mxu0 0.0
    %151 = vmatprep.mubr.f32.mxu0 0.0
    %152 = vmatmul.mubr.f32.gmra.mrb[0].mxu0 %v79
    %v153 = vpop.f32.mrb[0].mxu0
    %v154 = vadd.f32 %v75, %v153
    %v155 = vpop.f32.mrb[0].mxu0
    %156 = vmatprep.mubr.f32.mxu0 0.0
    %157 = vmatmul.mubr.f32.gmra.mrb[0].mxu0 %v82
    %v158 = vpop.f32.mrb[0].mxu0
    %v159 = vadd.f32 %v75, %v158
    %v160 = vpop.f32.mrb[0].mxu0
    %161 = vmatprep.mubr.f32.mxu0 0.0
    %162 = vmatmul.mubr.f32.gmra.mrb[0].mxu0 %v85
    %v163 = vpop.f32.mrb[0].mxu0
    %v164 = vadd.f32 %v75, %v163
    %v165 = vpop.f32.mrb[0].mxu0
    %166 = vdwg.mxu0
    %vm167 = vcmask 64512
    %168 = vst.msk [vmem:[#allocation8] sm:$0xff] %vm167, %v154
    %169 = vst.msk [vmem:[#allocation8 + $0x8] sm:$0xff] %vm167, %v159
    %170 = vst.msk [vmem:[#allocation8 + $0x10] sm:$0xff] %vm167, %v164
    // Predicated region
    $region26: #{hgin_forward.13} parent=1 // pred_check
      _
    $region27: #{hgin_forward.13} parent=1 // pred_check_branch
      %172 = sbr.rel (0) target = $region29
    $region28: #{hgin_forward.13} parent=1 // pred_region
      %s174 = ssub.s32 384, 384
      %175 = vsyncadd [#allocation4], %s174
      %s176 = sshll.u32 [#allocation8], 4
      %s177 = int_to_ptr.vmem [resolvable:$true] %s176
      %182 = dma.vmem_to_hbm [thread:$0]  %s177, 384, %s3, [#allocation4], 128, 128, 8
    $region29: #{hgin_forward.13} parent=1 // pred_fallthru
      _
    // Predicated region
    $region30: #{hgin_forward.13} parent=1 // pred_check
      _
    $region31: #{hgin_forward.13} parent=1 // pred_check_branch
      %184 = sbr.rel (0) target = $region33
    $region32: #{hgin_forward.13} parent=1 // pred_region
      %185 = dma.done [#allocation4], 384
    $region33: #{hgin_forward.13} parent=1 // pred_fallthru
      _
    %186 = vsyncpa [#allocation3], 1
    %187 = vsyncpa [#allocation6], 1
    %188 = vsyncpa [#allocation4], 1

</llo_original>
